<compile_context>
chip_gen: v5e
topology: v5e:2x2
jax: 0.10.0
libtpu: 0.0.40
codegen_flags: <defaults>
</compile_context>

<pallas_src>
import functools

import numpy as np
import jax
import jax.numpy as jnp
from jax.experimental import pallas as pl
from jax.experimental.pallas import tpu as pltpu


_MIN_MACS_PER_STEP = 4_000_000  # only split M across grid steps when each step has real MXU work


def _split_m(M, K, N):
    # Core-count/work-size aware: on 1-TC chips (v5e/v6e) and for every tiny GEMM in this
    # model a single full-M step is fastest; only split for large-M GEMMs (v7x dual TC).
    for tm in (256, 128, 64, 32, 16, 8):
        if M % tm == 0 and M // tm >= 2 and tm * K * N >= _MIN_MACS_PER_STEP:
            return tm
    return M


# ---------------------------- in-kernel helpers ----------------------------

def _batchnorm(o, gamma, beta):
    # PyTorch BatchNorm2d training-mode forward: batch stats over the M = B*Ho*Wo rows,
    # biased variance, eps=1e-5.  Channels sit on lanes -> stats are a sublane reduce.
    mean = jnp.mean(o, axis=0, keepdims=True)
    var = jnp.mean(jnp.square(o - mean), axis=0, keepdims=True)
    inv = jax.lax.rsqrt(var + 1e-5)
    return (o - mean) * (inv * gamma) + beta


def _lrelu(x):
    return jnp.where(x >= 0, x, 0.2 * x)


# ---------------------------- kernels ----------------------------

def _gemm_bias_kernel(act, a_ref, w_ref, b_ref, o_ref):
    # o = A @ W + b, then optional LeakyReLU(0.2) / Tanh, single store.
    o = jnp.dot(a_ref[...], w_ref[...], preferred_element_type=jnp.float32)
    o = o + b_ref[...]
    if act == "lrelu":
        o = _lrelu(o)
    elif act == "tanh":
        o = jnp.tanh(o)
    o_ref[...] = o.astype(o_ref.dtype)


def _mid_block_kernel(a_ref, wc_ref, gam_ref, bet_ref,
                      wq_ref, bq_ref, wk_ref, bk_ref, wv_ref, bv_ref,
                      s_ref,
                      h_ref, q_ref, kp_ref, vp_ref):
    # Fused: stride-2 conv GEMM (no bias) + training-mode BatchNorm, then the Self_Attn
    # q/k/v 1x1 convs, then the 2x2/2 max-pool of k and v done as 4 constant row-gather
    # matmuls (MXU) + elementwise max.  No intermediate ever leaves VMEM.
    h = jnp.dot(a_ref[...], wc_ref[...], preferred_element_type=jnp.float32)
    h = _batchnorm(h, gam_ref[...], bet_ref[...])
    h_ref[...] = h.astype(h_ref.dtype)

    q = jnp.dot(h, wq_ref[...], preferred_element_type=jnp.float32) + bq_ref[...]
    k = jnp.dot(h, wk_ref[...], preferred_element_type=jnp.float32) + bk_ref[...]
    v = jnp.dot(h, wv_ref[...], preferred_element_type=jnp.float32) + bv_ref[...]
    q_ref[...] = q.astype(q_ref.dtype)

    def pool(x):  # MaxPool2d(2,2) over rows ordered (b, h, w)
        p = jnp.dot(s_ref[0], x, preferred_element_type=jnp.float32)
        for i in range(1, 4):
            p = jnp.maximum(p, jnp.dot(s_ref[i], x, preferred_element_type=jnp.float32))
        return p

    kp_ref[...] = pool(k).astype(kp_ref.dtype)
    vp_ref[...] = pool(v).astype(vp_ref.dtype)


def _attn_kernel(q_ref, k_ref, v_ref, x_ref, o_ref):
    # Whole batch in one grid step: QK^T -> softmax(dim=-1) -> @V -> +x -> LeakyReLU.
    # Key is contracted over its channel axis (no pre-transpose needed).
    q = q_ref[...]                                   # (B, N, C//4)   == proj_query
    k = k_ref[...]                                   # (B, Nd, C//4)  == pooled key rows
    v = v_ref[...]                                   # (B, Nd, C)     == proj_value (torch .view quirk applied outside)
    energy = jnp.einsum('bqc,bkc->bqk', q, k, preferred_element_type=jnp.float32)
    energy = energy - jnp.max(energy, axis=-1, keepdims=True)
    p = jnp.exp(energy)
    attn = p * pl.reciprocal(jnp.sum(p, axis=-1, keepdims=True), approx=True)
    out = jnp.einsum('bqk,bkd->bqd', attn, v, preferred_element_type=jnp.float32) + x_ref[...]
    o_ref[...] = _lrelu(out).astype(o_ref.dtype)


def _tail_kernel(a_ref, wp_ref, gam_ref, bet_ref, gat_ref, w2_ref, b2_ref, o_ref):
    # Fused: penultimate conv GEMM + BatchNorm + LeakyReLU, then the final 4x4 stride-1
    # conv with its im2col done in-kernel via 16 tiny constant row-gather matmuls, + bias,
    # Tanh.  The (18, 64) intermediate never hits HBM.
    h = jnp.dot(a_ref[...], wp_ref[...], preferred_element_type=jnp.float32)
    h = _batchnorm(h, gam_ref[...], bet_ref[...])
    h = _lrelu(h)
    acc = jnp.zeros(o_ref.shape, jnp.float32)
    for kk in range(gat_ref.shape[0]):
        rows = jnp.dot(gat_ref[kk], h, preferred_element_type=jnp.float32)
        acc = acc + jnp.dot(rows, w2_ref[kk], preferred_element_type=jnp.float32)
    o_ref[...] = jnp.tanh(acc + b2_ref[...]).astype(o_ref.dtype)


# ---------------------------- pallas_call wrappers ----------------------------

def conv_gemm_bias(a, w, b, act):
    M, K = a.shape
    N = w.shape[1]
    tm = _split_m(M, K, N)
    sem = "parallel" if tm != M else "arbitrary"
    return pl.pallas_call(
        functools.partial(_gemm_bias_kernel, act),
        out_shape=jax.ShapeDtypeStruct((M, N), jnp.float32),
        grid_spec=pltpu.PrefetchScalarGridSpec(
            num_scalar_prefetch=0, grid=(M // tm,),
            in_specs=[pl.BlockSpec((tm, K), lambda i: (i, 0)),
                      pl.BlockSpec((K, N), lambda i: (0, 0)),
                      pl.BlockSpec((1, N), lambda i: (0, 0))],
            out_specs=pl.BlockSpec((tm, N), lambda i: (i, 0))),
        compiler_params=pltpu.CompilerParams(dimension_semantics=(sem,)),
    )(a, w, b)


def mid_block_call(patches, lp, pool_sel):
    M, K = patches.shape
    C = lp["wc"].shape[1]
    C4 = C // 4
    P = pool_sel.shape[1]
    f2 = lambda s: pl.BlockSpec(s, lambda i: (0, 0))
    f3 = lambda s: pl.BlockSpec(s, lambda i: (0, 0, 0))
    return pl.pallas_call(
        _mid_block_kernel,
        out_shape=(jax.ShapeDtypeStruct((M, C), jnp.float32),
                   jax.ShapeDtypeStruct((M, C4), jnp.float32),
                   jax.ShapeDtypeStruct((P, C4), jnp.float32),
                   jax.ShapeDtypeStruct((P, C), jnp.float32)),
        grid_spec=pltpu.PrefetchScalarGridSpec(
            num_scalar_prefetch=0, grid=(1,),
            in_specs=[f2((M, K)), f2((K, C)), f2((1, C)), f2((1, C)),
                      f2((C, C4)), f2((1, C4)), f2((C, C4)), f2((1, C4)),
                      f2((C, C)), f2((1, C)),
                      f3((4, P, M))],
            out_specs=[f2((M, C)), f2((M, C4)), f2((P, C4)), f2((P, C))]),
        compiler_params=pltpu.CompilerParams(dimension_semantics=("arbitrary",)),
    )(patches, lp["wc"], lp["gamma"], lp["beta"],
      lp["wq"], lp["bq"], lp["wk"], lp["bk"], lp["wv"], lp["bv"], pool_sel)


def attention_call(q, k, v, xz):
    B, N, C4 = q.shape
    Nd = k.shape[1]
    C = v.shape[2]
    f3 = lambda s: pl.BlockSpec(s, lambda i: (0, 0, 0))
    return pl.pallas_call(
        _attn_kernel,
        out_shape=jax.ShapeDtypeStruct((B, N, C), jnp.float32),
        grid_spec=pltpu.PrefetchScalarGridSpec(
            num_scalar_prefetch=0, grid=(1,),
            in_specs=[f3((B, N, C4)), f3((B, Nd, C4)), f3((B, Nd, C)), f3((B, N, C))],
            out_specs=f3((B, N, C))),
        compiler_params=pltpu.CompilerParams(dimension_semantics=("arbitrary",)),
    )(q, k, v, xz)


def tail_call(patches, p, G):
    M, K = patches.shape
    Cp = p["w_pen"].shape[1]
    nk, Mo, Mi = G.shape
    No = p["w_out"].shape[2]
    f2 = lambda s: pl.BlockSpec(s, lambda i: (0, 0))
    f3 = lambda s: pl.BlockSpec(s, lambda i: (0, 0, 0))
    return pl.pallas_call(
        _tail_kernel,
        out_shape=jax.ShapeDtypeStruct((Mo, No), jnp.float32),
        grid_spec=pltpu.PrefetchScalarGridSpec(
            num_scalar_prefetch=0, grid=(1,),
            in_specs=[f2((M, K)), f2((K, Cp)), f2((1, Cp)), f2((1, Cp)),
                      f3((nk, Mo, Mi)), f3((nk, Cp, No)), f2((1, No))],
            out_specs=f2((Mo, No))),
        compiler_params=pltpu.CompilerParams(dimension_semantics=("arbitrary",)),
    )(patches, p["w_pen"], p["gamma_pen"], p["beta_pen"], G, p["w_out"], p["b_out"])


# ---------------------------- constant gather/pool matrices (trace-time numpy) ----------------------------

def _pool_select_mats(B, H, W):
    # MaxPool2d(2,2) over rows ordered (b, h, w): 4 one-hot row-selection matrices.
    Hd, Wd = H // 2, W // 2
    M, P = B * H * W, B * Hd * Wd
    S = np.zeros((4, P, M), dtype=np.float32)
    for b in range(B):
        for hd in range(Hd):
            for wd in range(Wd):
                pr = (b * Hd + hd) * Wd + wd
                for idx, (a, c) in enumerate(((0, 0), (0, 1), (1, 0), (1, 1))):
                    S[idx, pr, (b * H + 2 * hd + a) * W + 2 * wd + c] = 1.0
    return jnp.asarray(S)


def _im2col_gather_mats(B, Hi, Wi, k=4, pad=1):
    # Row-gather matrices for a stride-1 kxk conv with zero padding on rows ordered (b,h,w);
    # out-of-bounds taps are all-zero rows (implicit zero padding).
    Ho, Wo = Hi + 2 * pad - k + 1, Wi + 2 * pad - k + 1
    Mo, Mi = B * Ho * Wo, B * Hi * Wi
    G = np.zeros((k * k, Mo, Mi), dtype=np.float32)
    for b in range(B):
        for ho in range(Ho):
            for wo in range(Wo):
                ro = (b * Ho + ho) * Wo + wo
                for kh in range(k):
                    for kw in range(k):
                        hi, wi = ho - pad + kh, wo - pad + kw
                        if 0 <= hi < Hi and 0 <= wi < Wi:
                            G[kh * k + kw, ro, (b * Hi + hi) * Wi + wi] = 1.0
    return jnp.asarray(G)


def _patches(x_nhwc, k, stride, pad):
    # im2col for the stride-2 convs (one XLA op; feature dim ordered (Cin, kh, kw)).
    # TODO(synk): could be moved in-kernel (shifted sub-GEMMs) for production sizes.
    return jax.lax.conv_general_dilated_patches(
        x_nhwc, filter_shape=(k, k), window_strides=(stride, stride),
        padding=((pad, pad), (pad, pad)),
        dimension_numbers=("NHWC", "HWIO", "NHWC"))


# ---------------------------- model ----------------------------

def init_params(key, input_nc=3, ndf=8, n_layers=3):
    state = {"key": key}

    def nxt():
        state["key"], sub = jax.random.split(state["key"])
        return sub

    def conv_wmat(cout, cin, k):
        # torch (Cout, Cin, kh, kw) -> GEMM layout (Cin*kh*kw, Cout), (Cin,kh,kw)-ordered K.
        w = 0.02 * jax.random.normal(nxt(), (cout, cin, k, k), jnp.float32)
        return w.reshape(cout, cin * k * k).T

    def vec(n, scale=0.01):
        return scale * jax.random.normal(nxt(), (1, n), jnp.float32)

    p = {"w0": conv_wmat(ndf, input_nc, 4), "b0": vec(ndf)}
    nf_mult = 1
    mid = []
    for n in range(1, n_layers):
        nf_prev, nf_mult = nf_mult, min(2 ** n, 8)
        cin, cout = ndf * nf_prev, ndf * nf_mult
        mid.append({
            "wc": conv_wmat(cout, cin, 4),             # bias=False (BatchNorm2d norm layer)
            "gamma": 1.0 + 0.02 * jax.random.normal(nxt(), (1, cout), jnp.float32),
            "beta": vec(cout),
            "wq": 0.02 * jax.random.normal(nxt(), (cout, cout // 4), jnp.float32),
            "bq": vec(cout // 4),
            "wk": 0.02 * jax.random.normal(nxt(), (cout, cout // 4), jnp.float32),
            "bk": vec(cout // 4),
            "wv": 0.02 * jax.random.normal(nxt(), (cout, cout), jnp.float32),
            "bv": vec(cout),
        })
    p["mid"] = mid
    nf_prev, nf_mult = nf_mult, min(2 ** n_layers, 8)
    cpen = ndf * nf_mult
    p["w_pen"] = conv_wmat(cpen, ndf * nf_prev, 4)
    p["gamma_pen"] = 1.0 + 0.02 * jax.random.normal(nxt(), (1, cpen), jnp.float32)
    p["beta_pen"] = vec(cpen)
    # final 4x4 conv (cpen -> 1): stored per kernel position for the fused tail kernel,
    # single output channel zero-padded to 8 lanes.
    w_out = 0.02 * jax.random.normal(nxt(), (1, cpen, 4, 4), jnp.float32)
    w2 = jnp.transpose(w_out, (2, 3, 1, 0)).reshape(16, cpen, 1)
    p["w_out"] = jnp.pad(w2, ((0, 0), (0, 0), (0, 7)))
    p["b_out"] = jnp.pad(vec(1), ((0, 0), (0, 7)))
    return p


def nlayer_discriminator(x_nchw, p):
    B = x_nchw.shape[0]
    h = x_nchw.transpose(0, 2, 3, 1)                              # NCHW -> NHWC once

    # layer 0: conv(s2) + bias + LeakyReLU (one fused GEMM kernel)
    pa = _patches(h, 4, 2, 1)
    _, Ho, Wo, K = pa.shape
    C = p["w0"].shape[1]
    h = conv_gemm_bias(pa.reshape(B * Ho * Wo, K), p["w0"], p["b0"], "lrelu")
    h = h.reshape(B, Ho, Wo, C)

    # mid blocks: [conv(s2)+BN + qkv + k/v maxpool] kernel, then [attention+residual+lrelu] kernel
    for lp in p["mid"]:
        pa = _patches(h, 4, 2, 1)
        _, Ho, Wo, K = pa.shape
        C = lp["wc"].shape[1]
        C4, N, Nd = C // 4, Ho * Wo, (Ho * Wo) // 4
        S = _pool_select_mats(B, Ho, Wo)
        hh, q, kp, vp = mid_block_call(pa.reshape(B * N, K), lp, S)
        # TODO(synk): the raw torch .view() reinterpretations (proj_value and the x / out
        # views) stay as XLA layout glue; the equivalent in-kernel reshape crosses the
        # (sublane, lane) tiling and is not reliably lowerable.
        q3 = q.reshape(B, N, C4)                                   # proj_query
        kp3 = kp.reshape(B, Nd, C4)                                # pooled key rows (contracted over C4 in-kernel)
        vq = vp.reshape(B, Ho // 2, Wo // 2, C).transpose(0, 3, 1, 2).reshape(B, Nd, C)  # proj_value .view() quirk
        xz = hh.reshape(B, Ho, Wo, C).transpose(0, 3, 1, 2).reshape(B, N, C)             # x as raw NCHW-flat (N, C)
        y = attention_call(q3, kp3, vq, xz)                        # (B, N, C), residual + LeakyReLU fused
        h = y.reshape(B, C, Ho, Wo).transpose(0, 2, 3, 1)          # torch out.view(B,C,H,W) quirk, back to NHWC

    # penultimate conv(s1)+BN+LeakyReLU and final conv(s1)+bias+Tanh in ONE kernel
    pa = _patches(h, 4, 1, 1)
    _, Hp, Wp, K = pa.shape
    G = _im2col_gather_mats(B, Hp, Wp, 4, 1)
    out = tail_call(pa.reshape(B * Hp * Wp, K), p, G)              # (B*(Hp-1)*(Wp-1), 8)
    Ho2, Wo2 = Hp - 1, Wp - 1
    return out[:, :1].reshape(B, Ho2, Wo2, 1).transpose(0, 3, 1, 2)


if __name__ == "__main__":
    key = jax.random.PRNGKey(0)
    pkey, xkey = jax.random.split(key)
    # small shapes: batch=2, input_nc=3, ndf=8, n_layers=3, spatial=32
    params = init_params(pkey, input_nc=3, ndf=8, n_layers=3)
    x = jax.random.normal(xkey, (2, 3, 32, 32), jnp.float32)

    fwd = jax.jit(nlayer_discriminator)
    y = jax.block_until_ready(fwd(x, params))
    assert y.shape == (2, 1, 2, 2), y.shape
    assert bool(jnp.all(jnp.isfinite(y)))
    print("KERNEL_OK")
</pallas_src>

<mosaic_0001>
module attributes {stable_mosaic.version = 11 : i64} {
  func.func @_gemm_bias_kernel(%arg0: i32, %arg1: memref<512x48xf32, #tpu.memory_space<vmem>>, %arg2: memref<48x8xf32, #tpu.memory_space<vmem>>, %arg3: memref<1x8xf32, #tpu.memory_space<vmem>>, %arg4: memref<512x8xf32, #tpu.memory_space<vmem>>) attributes {dimension_semantics = [#tpu.dimension_semantics<arbitrary>], iteration_bounds = array<i64: 1>, scalar_prefetch = 0 : i64, scratch_operands = 0 : i64, tpu.core_type = #tpu.core_type<tc>, window_params = [{transform_indices = @transform_0, window_bounds = array<i64: 512, 48>}, {pipeline_mode = #tpu.pipeline_mode<synchronous>, transform_indices = @transform_1, window_bounds = array<i64: 48, 8>}, {pipeline_mode = #tpu.pipeline_mode<synchronous>, transform_indices = @transform_2, window_bounds = array<i64: 1, 8>}, {transform_indices = @transform_3, window_bounds = array<i64: 512, 8>}]} {
    %c0 = arith.constant 0 : index
    %c0_0 = arith.constant 0 : index
    %0 = vector.load %arg1[%c0, %c0_0] : memref<512x48xf32, #tpu.memory_space<vmem>>, vector<512x48xf32>
    %c0_1 = arith.constant 0 : index
    %c0_2 = arith.constant 0 : index
    %1 = vector.load %arg2[%c0_1, %c0_2] : memref<48x8xf32, #tpu.memory_space<vmem>>, vector<48x8xf32>
    %cst = arith.constant dense<0.000000e+00> : vector<512x8xf32>
    %2 = tpu.matmul %0, %1, %cst {dimension_numbers = #tpu.dot_dimension_numbers<[1], [0], [0], [1], [0, 0, 1, 1], [], []>} : vector<512x48xf32>, vector<48x8xf32>, vector<512x8xf32> -> vector<512x8xf32>
    %c0_3 = arith.constant 0 : index
    %c0_4 = arith.constant 0 : index
    %3 = vector.load %arg3[%c0_3, %c0_4] : memref<1x8xf32, #tpu.memory_space<vmem>>, vector<1x8xf32>
    %4 = vector.broadcast %3 : vector<1x8xf32> to vector<512x8xf32>
    %5 = arith.addf %2, %4 : vector<512x8xf32>
    %cst_5 = arith.constant 0.000000e+00 : f32
    %6 = vector.broadcast %cst_5 : f32 to vector<512x8xf32>
    %7 = arith.cmpf oge, %5, %6 : vector<512x8xf32>
    %cst_6 = arith.constant 2.000000e-01 : f32
    %8 = vector.broadcast %cst_6 : f32 to vector<512x8xf32>
    %9 = arith.mulf %8, %5 : vector<512x8xf32>
    %10 = arith.select %7, %5, %9 : vector<512x8xi1>, vector<512x8xf32>
    %c0_7 = arith.constant 0 : index
    %c0_8 = arith.constant 0 : index
    %11 = vector.load %arg4[%c0_7, %c0_8] : memref<512x8xf32, #tpu.memory_space<vmem>>, vector<512x8xf32>
    tpu.vector_store %arg4[%c0_7, %c0_8], %10 {strides = array<i32>} : memref<512x8xf32, #tpu.memory_space<vmem>>, vector<512x8xf32>,
    return
  }
  func.func @transform_0(%arg0: i32) -> (i32, i32) {
    %c0_i32 = arith.constant 0 : i32
    %c0_i32_0 = arith.constant 0 : i32
    return %arg0, %c0_i32 : i32, i32
  }
  func.func @transform_1(%arg0: i32) -> (i32, i32) {
    %c0_i32 = arith.constant 0 : i32
    %c0_i32_0 = arith.constant 0 : i32
    %c0_i32_1 = arith.constant 0 : i32
    return %c0_i32, %c0_i32_0 : i32, i32
  }
  func.func @transform_2(%arg0: i32) -> (i32, i32) {
    %c0_i32 = arith.constant 0 : i32
    %c0_i32_0 = arith.constant 0 : i32
    %c0_i32_1 = arith.constant 0 : i32
    return %c0_i32, %c0_i32_0 : i32, i32
  }
  func.func @transform_3(%arg0: i32) -> (i32, i32) {
    %c0_i32 = arith.constant 0 : i32
    %c0_i32_0 = arith.constant 0 : i32
    return %arg0, %c0_i32 : i32, i32
  }
}

module attributes {stable_mosaic.version = 11 : i64} {
  func.func @_mid_block_kernel(%arg0: i32, %arg1: memref<128x128xf32, #tpu.memory_space<vmem>>, %arg2: memref<128x16xf32, #tpu.memory_space<vmem>>, %arg3: memref<1x16xf32, #tpu.memory_space<vmem>>, %arg4: memref<1x16xf32, #tpu.memory_space<vmem>>, %arg5: memref<16x4xf32, #tpu.memory_space<vmem>>, %arg6: memref<1x4xf32, #tpu.memory_space<vmem>>, %arg7: memref<16x4xf32, #tpu.memory_space<vmem>>, %arg8: memref<1x4xf32, #tpu.memory_space<vmem>>, %arg9: memref<16x16xf32, #tpu.memory_space<vmem>>, %arg10: memref<1x16xf32, #tpu.memory_space<vmem>>, %arg11: memref<4x32x128xf32, #tpu.memory_space<vmem>>, %arg12: memref<128x16xf32, #tpu.memory_space<vmem>>, %arg13: memref<128x4xf32, #tpu.memory_space<vmem>>, %arg14: memref<32x4xf32, #tpu.memory_space<vmem>>, %arg15: memref<32x16xf32, #tpu.memory_space<vmem>>) attributes {dimension_semantics = [#tpu.dimension_semantics<arbitrary>], iteration_bounds = array<i64: 1>, scalar_prefetch = 0 : i64, scratch_operands = 0 : i64, tpu.core_type = #tpu.core_type<tc>, window_params = [{pipeline_mode = #tpu.pipeline_mode<synchronous>, transform_indices = @transform_0, window_bounds = array<i64: 128, 128>}, {pipeline_mode = #tpu.pipeline_mode<synchronous>, transform_indices = @transform_1, window_bounds = array<i64: 128, 16>}, {pipeline_mode = #tpu.pipeline_mode<synchronous>, transform_indices = @transform_2, window_bounds = array<i64: 1, 16>}, {pipeline_mode = #tpu.pipeline_mode<synchronous>, transform_indices = @transform_3, window_bounds = array<i64: 1, 16>}, {pipeline_mode = #tpu.pipeline_mode<synchronous>, transform_indices = @transform_4, window_bounds = array<i64: 16, 4>}, {pipeline_mode = #tpu.pipeline_mode<synchronous>, transform_indices = @transform_5, window_bounds = array<i64: 1, 4>}, {pipeline_mode = #tpu.pipeline_mode<synchronous>, transform_indices = @transform_6, window_bounds = array<i64: 16, 4>}, {pipeline_mode = #tpu.pipeline_mode<synchronous>, transform_indices = @transform_7, window_bounds = array<i64: 1, 4>}, {pipeline_mode = #tpu.pipeline_mode<synchronous>, transform_indices = @transform_8, window_bounds = array<i64: 16, 16>}, {pipeline_mode = #tpu.pipeline_mode<synchronous>, transform_indices = @transform_9, window_bounds = array<i64: 1, 16>}, {pipeline_mode = #tpu.pipeline_mode<synchronous>, transform_indices = @transform_10, window_bounds = array<i64: 4, 32, 128>}, {pipeline_mode = #tpu.pipeline_mode<synchronous>, transform_indices = @transform_11, window_bounds = array<i64: 128, 16>}, {pipeline_mode = #tpu.pipeline_mode<synchronous>, transform_indices = @transform_12, window_bounds = array<i64: 128, 4>}, {pipeline_mode = #tpu.pipeline_mode<synchronous>, transform_indices = @transform_13, window_bounds = array<i64: 32, 4>}, {pipeline_mode = #tpu.pipeline_mode<synchronous>, transform_indices = @transform_14, window_bounds = array<i64: 32, 16>}]} {
    %c0 = arith.constant 0 : index
    %c0_0 = arith.constant 0 : index
    %0 = vector.load %arg1[%c0, %c0_0] : memref<128x128xf32, #tpu.memory_space<vmem>>, vector<128x128xf32>
    %c0_1 = arith.constant 0 : index
    %c0_2 = arith.constant 0 : index
    %1 = vector.load %arg2[%c0_1, %c0_2] : memref<128x16xf32, #tpu.memory_space<vmem>>, vector<128x16xf32>
    %cst = arith.constant dense<0.000000e+00> : vector<128x16xf32>
    %2 = tpu.matmul %0, %1, %cst {dimension_numbers = #tpu.dot_dimension_numbers<[1], [0], [0], [1], [0, 0, 1, 1], [], []>} : vector<128x128xf32>, vector<128x16xf32>, vector<128x16xf32> -> vector<128x16xf32>
    %c0_3 = arith.constant 0 : index
    %c0_4 = arith.constant 0 : index
    %3 = vector.load %arg3[%c0_3, %c0_4] : memref<1x16xf32, #tpu.memory_space<vmem>>, vector<1x16xf32>
    %c0_5 = arith.constant 0 : index
    %c0_6 = arith.constant 0 : index
    %4 = vector.load %arg4[%c0_5, %c0_6] : memref<1x16xf32, #tpu.memory_space<vmem>>, vector<1x16xf32>
    %cst_7 = arith.constant dense<0.000000e+00> : vector<16xf32>
    %5 = vector.multi_reduction <add>, %2, %cst_7 [0] : vector<128x16xf32> to vector<16xf32>
    %6 = vector.shape_cast %5 : vector<16xf32> to vector<1x16xf32>
    %cst_8 = arith.constant 1.280000e+02 : f32
    %7 = vector.broadcast %cst_8 : f32 to vector<1x16xf32>
    %8 = arith.divf %6, %7 : vector<1x16xf32>
    %9 = vector.broadcast %8 : vector<1x16xf32> to vector<128x16xf32>
    %10 = arith.subf %2, %9 : vector<128x16xf32>
    %11 = arith.mulf %10, %10 : vector<128x16xf32>
    %cst_9 = arith.constant dense<0.000000e+00> : vector<16xf32>
    %12 = vector.multi_reduction <add>, %11, %cst_9 [0] : vector<128x16xf32> to vector<16xf32>
    %13 = vector.shape_cast %12 : vector<16xf32> to vector<1x16xf32>
    %cst_10 = arith.constant 1.280000e+02 : f32
    %14 = vector.broadcast %cst_10 : f32 to vector<1x16xf32>
    %15 = arith.divf %13, %14 : vector<1x16xf32>
    %cst_11 = arith.constant 9.99999974E-6 : f32
    %16 = vector.broadcast %cst_11 : f32 to vector<1x16xf32>
    %17 = arith.addf %15, %16 : vector<1x16xf32>
    %18 = math.rsqrt %17 : vector<1x16xf32>
    %19 = vector.broadcast %8 : vector<1x16xf32> to vector<128x16xf32>
    %20 = arith.subf %2, %19 : vector<128x16xf32>
    %21 = arith.mulf %18, %3 : vector<1x16xf32>
    %22 = vector.broadcast %21 : vector<1x16xf32> to vector<128x16xf32>
    %23 = arith.mulf %20, %22 : vector<128x16xf32>
    %24 = vector.broadcast %4 : vector<1x16xf32> to vector<128x16xf32>
    %25 = arith.addf %23, %24 : vector<128x16xf32>
    %c0_12 = arith.constant 0 : index
    %c0_13 = arith.constant 0 : index
    %26 = vector.load %arg12[%c0_12, %c0_13] : memref<128x16xf32, #tpu.memory_space<vmem>>, vector<128x16xf32>
    tpu.vector_store %arg12[%c0_12, %c0_13], %25 {strides = array<i32>} : memref<128x16xf32, #tpu.memory_space<vmem>>, vector<128x16xf32>,
    %c0_14 = arith.constant 0 : index
    %c0_15 = arith.constant 0 : index
    %27 = vector.load %arg5[%c0_14, %c0_15] : memref<16x4xf32, #tpu.memory_space<vmem>>, vector<16x4xf32>
    %cst_16 = arith.constant dense<0.000000e+00> : vector<128x4xf32>
    %28 = tpu.matmul %25, %27, %cst_16 {dimension_numbers = #tpu.dot_dimension_numbers<[1], [0], [0], [1], [0, 0, 1, 1], [], []>} : vector<128x16xf32>, vector<16x4xf32>, vector<128x4xf32> -> vector<128x4xf32>
    %c0_17 = arith.constant 0 : index
    %c0_18 = arith.constant 0 : index
    %29 = vector.load %arg6[%c0_17, %c0_18] : memref<1x4xf32, #tpu.memory_space<vmem>>, vector<1x4xf32>
    %30 = vector.broadcast %29 : vector<1x4xf32> to vector<128x4xf32>
    %31 = arith.addf %28, %30 : vector<128x4xf32>
    %c0_19 = arith.constant 0 : index
    %c0_20 = arith.constant 0 : index
    %32 = vector.load %arg7[%c0_19, %c0_20] : memref<16x4xf32, #tpu.memory_space<vmem>>, vector<16x4xf32>
    %cst_21 = arith.constant dense<0.000000e+00> : vector<128x4xf32>
    %33 = tpu.matmul %25, %32, %cst_21 {dimension_numbers = #tpu.dot_dimension_numbers<[1], [0], [0], [1], [0, 0, 1, 1], [], []>} : vector<128x16xf32>, vector<16x4xf32>, vector<128x4xf32> -> vector<128x4xf32>
    %c0_22 = arith.constant 0 : index
    %c0_23 = arith.constant 0 : index
    %34 = vector.load %arg8[%c0_22, %c0_23] : memref<1x4xf32, #tpu.memory_space<vmem>>, vector<1x4xf32>
    %35 = vector.broadcast %34 : vector<1x4xf32> to vector<128x4xf32>
    %36 = arith.addf %33, %35 : vector<128x4xf32>
    %c0_24 = arith.constant 0 : index
    %c0_25 = arith.constant 0 : index
    %37 = vector.load %arg9[%c0_24, %c0_25] : memref<16x16xf32, #tpu.memory_space<vmem>>, vector<16x16xf32>
    %cst_26 = arith.constant dense<0.000000e+00> : vector<128x16xf32>
    %38 = tpu.matmul %25, %37, %cst_26 {dimension_numbers = #tpu.dot_dimension_numbers<[1], [0], [0], [1], [0, 0, 1, 1], [], []>} : vector<128x16xf32>, vector<16x16xf32>, vector<128x16xf32> -> vector<128x16xf32>
    %c0_27 = arith.constant 0 : index
    %c0_28 = arith.constant 0 : index
    %39 = vector.load %arg10[%c0_27, %c0_28] : memref<1x16xf32, #tpu.memory_space<vmem>>, vector<1x16xf32>
    %40 = vector.broadcast %39 : vector<1x16xf32> to vector<128x16xf32>
    %41 = arith.addf %38, %40 : vector<128x16xf32>
    %c0_29 = arith.constant 0 : index
    %c0_30 = arith.constant 0 : index
    %42 = vector.load %arg13[%c0_29, %c0_30] : memref<128x4xf32, #tpu.memory_space<vmem>>, vector<128x4xf32>
    tpu.vector_store %arg13[%c0_29, %c0_30], %31 {strides = array<i32>} : memref<128x4xf32, #tpu.memory_space<vmem>>, vector<128x4xf32>,
    %c0_31 = arith.constant 0 : index
    %c0_32 = arith.constant 0 : index
    %c0_33 = arith.constant 0 : index
    %43 = vector.load %arg11[%c0_31, %c0_32, %c0_33] : memref<4x32x128xf32, #tpu.memory_space<vmem>>, vector<1x32x128xf32>
    %44 = vector.shape_cast %43 : vector<1x32x128xf32> to vector<32x128xf32>
    %cst_34 = arith.constant dense<0.000000e+00> : vector<32x4xf32>
    %45 = tpu.matmul %44, %36, %cst_34 {dimension_numbers = #tpu.dot_dimension_numbers<[1], [0], [0], [1], [0, 0, 1, 1], [], []>} : vector<32x128xf32>, vector<128x4xf32>, vector<32x4xf32> -> vector<32x4xf32>
    %c1 = arith.constant 1 : index
    %c0_35 = arith.constant 0 : index
    %c0_36 = arith.constant 0 : index
    %46 = vector.load %arg11[%c1, %c0_35, %c0_36] : memref<4x32x128xf32, #tpu.memory_space<vmem>>, vector<1x32x128xf32>
    %47 = vector.shape_cast %46 : vector<1x32x128xf32> to vector<32x128xf32>
    %cst_37 = arith.constant dense<0.000000e+00> : vector<32x4xf32>
    %48 = tpu.matmul %47, %36, %cst_37 {dimension_numbers = #tpu.dot_dimension_numbers<[1], [0], [0], [1], [0, 0, 1, 1], [], []>} : vector<32x128xf32>, vector<128x4xf32>, vector<32x4xf32> -> vector<32x4xf32>
    %49 = arith.maximumf %45, %48 : vector<32x4xf32>
    %c2 = arith.constant 2 : index
    %c0_38 = arith.constant 0 : index
    %c0_39 = arith.constant 0 : index
    %50 = vector.load %arg11[%c2, %c0_38, %c0_39] : memref<4x32x128xf32, #tpu.memory_space<vmem>>, vector<1x32x128xf32>
    %51 = vector.shape_cast %50 : vector<1x32x128xf32> to vector<32x128xf32>
    %cst_40 = arith.constant dense<0.000000e+00> : vector<32x4xf32>
    %52 = tpu.matmul %51, %36, %cst_40 {dimension_numbers = #tpu.dot_dimension_numbers<[1], [0], [0], [1], [0, 0, 1, 1], [], []>} : vector<32x128xf32>, vector<128x4xf32>, vector<32x4xf32> -> vector<32x4xf32>
    %53 = arith.maximumf %49, %52 : vector<32x4xf32>
    %c3 = arith.constant 3 : index
    %c0_41 = arith.constant 0 : index
    %c0_42 = arith.constant 0 : index
    %54 = vector.load %arg11[%c3, %c0_41, %c0_42] : memref<4x32x128xf32, #tpu.memory_space<vmem>>, vector<1x32x128xf32>
    %55 = vector.shape_cast %54 : vector<1x32x128xf32> to vector<32x128xf32>
    %cst_43 = arith.constant dense<0.000000e+00> : vector<32x4xf32>
    %56 = tpu.matmul %55, %36, %cst_43 {dimension_numbers = #tpu.dot_dimension_numbers<[1], [0], [0], [1], [0, 0, 1, 1], [], []>} : vector<32x128xf32>, vector<128x4xf32>, vector<32x4xf32> -> vector<32x4xf32>
    %57 = arith.maximumf %53, %56 : vector<32x4xf32>
    %c0_44 = arith.constant 0 : index
    %c0_45 = arith.constant 0 : index
    %58 = vector.load %arg14[%c0_44, %c0_45] : memref<32x4xf32, #tpu.memory_space<vmem>>, vector<32x4xf32>
    tpu.vector_store %arg14[%c0_44, %c0_45], %57 {strides = array<i32>} : memref<32x4xf32, #tpu.memory_space<vmem>>, vector<32x4xf32>,
    %c0_46 = arith.constant 0 : index
    %c0_47 = arith.constant 0 : index
    %c0_48 = arith.constant 0 : index
    %59 = vector.load %arg11[%c0_46, %c0_47, %c0_48] : memref<4x32x128xf32, #tpu.memory_space<vmem>>, vector<1x32x128xf32>
    %60 = vector.shape_cast %59 : vector<1x32x128xf32> to vector<32x128xf32>
    %cst_49 = arith.constant dense<0.000000e+00> : vector<32x16xf32>
    %61 = tpu.matmul %60, %41, %cst_49 {dimension_numbers = #tpu.dot_dimension_numbers<[1], [0], [0], [1], [0, 0, 1, 1], [], []>} : vector<32x128xf32>, vector<128x16xf32>, vector<32x16xf32> -> vector<32x16xf32>
    %c1_50 = arith.constant 1 : index
    %c0_51 = arith.constant 0 : index
    %c0_52 = arith.constant 0 : index
    %62 = vector.load %arg11[%c1_50, %c0_51, %c0_52] : memref<4x32x128xf32, #tpu.memory_space<vmem>>, vector<1x32x128xf32>
    %63 = vector.shape_cast %62 : vector<1x32x128xf32> to vector<32x128xf32>
    %cst_53 = arith.constant dense<0.000000e+00> : vector<32x16xf32>
    %64 = tpu.matmul %63, %41, %cst_53 {dimension_numbers = #tpu.dot_dimension_numbers<[1], [0], [0], [1], [0, 0, 1, 1], [], []>} : vector<32x128xf32>, vector<128x16xf32>, vector<32x16xf32> -> vector<32x16xf32>
    %65 = arith.maximumf %61, %64 : vector<32x16xf32>
    %c2_54 = arith.constant 2 : index
    %c0_55 = arith.constant 0 : index
    %c0_56 = arith.constant 0 : index
    %66 = vector.load %arg11[%c2_54, %c0_55, %c0_56] : memref<4x32x128xf32, #tpu.memory_space<vmem>>, vector<1x32x128xf32>
    %67 = vector.shape_cast %66 : vector<1x32x128xf32> to vector<32x128xf32>
    %cst_57 = arith.constant dense<0.000000e+00> : vector<32x16xf32>
    %68 = tpu.matmul %67, %41, %cst_57 {dimension_numbers = #tpu.dot_dimension_numbers<[1], [0], [0], [1], [0, 0, 1, 1], [], []>} : vector<32x128xf32>, vector<128x16xf32>, vector<32x16xf32> -> vector<32x16xf32>
    %69 = arith.maximumf %65, %68 : vector<32x16xf32>
    %c3_58 = arith.constant 3 : index
    %c0_59 = arith.constant 0 : index
    %c0_60 = arith.constant 0 : index
    %70 = vector.load %arg11[%c3_58, %c0_59, %c0_60] : memref<4x32x128xf32, #tpu.memory_space<vmem>>, vector<1x32x128xf32>
    %71 = vector.shape_cast %70 : vector<1x32x128xf32> to vector<32x128xf32>
    %cst_61 = arith.constant dense<0.000000e+00> : vector<32x16xf32>
    %72 = tpu.matmul %71, %41, %cst_61 {dimension_numbers = #tpu.dot_dimension_numbers<[1], [0], [0], [1], [0, 0, 1, 1], [], []>} : vector<32x128xf32>, vector<128x16xf32>, vector<32x16xf32> -> vector<32x16xf32>
    %73 = arith.maximumf %69, %72 : vector<32x16xf32>
    %c0_62 = arith.constant 0 : index
    %c0_63 = arith.constant 0 : index
    %74 = vector.load %arg15[%c0_62, %c0_63] : memref<32x16xf32, #tpu.memory_space<vmem>>, vector<32x16xf32>
    tpu.vector_store %arg15[%c0_62, %c0_63], %73 {strides = array<i32>} : memref<32x16xf32, #tpu.memory_space<vmem>>, vector<32x16xf32>,
    return
  }
  func.func @transform_0(%arg0: i32) -> (i32, i32) {
    %c0_i32 = arith.constant 0 : i32
    %c0_i32_0 = arith.constant 0 : i32
    %c0_i32_1 = arith.constant 0 : i32
    return %c0_i32, %c0_i32_0 : i32, i32
  }
  func.func @transform_1(%arg0: i32) -> (i32, i32) {
    %c0_i32 = arith.constant 0 : i32
    %c0_i32_0 = arith.constant 0 : i32
    %c0_i32_1 = arith.constant 0 : i32
    return %c0_i32, %c0_i32_0 : i32, i32
  }
  func.func @transform_2(%arg0: i32) -> (i32, i32) {
    %c0_i32 = arith.constant 0 : i32
    %c0_i32_0 = arith.constant 0 : i32
    %c0_i32_1 = arith.constant 0 : i32
    return %c0_i32, %c0_i32_0 : i32, i32
  }
  func.func @transform_3(%arg0: i32) -> (i32, i32) {
    %c0_i32 = arith.constant 0 : i32
    %c0_i32_0 = arith.constant 0 : i32
    %c0_i32_1 = arith.constant 0 : i32
    return %c0_i32, %c0_i32_0 : i32, i32
  }
  func.func @transform_4(%arg0: i32) -> (i32, i32) {
    %c0_i32 = arith.constant 0 : i32
    %c0_i32_0 = arith.constant 0 : i32
    %c0_i32_1 = arith.constant 0 : i32
    return %c0_i32, %c0_i32_0 : i32, i32
  }
  func.func @transform_5(%arg0: i32) -> (i32, i32) {
    %c0_i32 = arith.constant 0 : i32
    %c0_i32_0 = arith.constant 0 : i32
    %c0_i32_1 = arith.constant 0 : i32
    return %c0_i32, %c0_i32_0 : i32, i32
  }
  func.func @transform_6(%arg0: i32) -> (i32, i32) {
    %c0_i32 = arith.constant 0 : i32
    %c0_i32_0 = arith.constant 0 : i32
    %c0_i32_1 = arith.constant 0 : i32
    return %c0_i32, %c0_i32_0 : i32, i32
  }
  func.func @transform_7(%arg0: i32) -> (i32, i32) {
    %c0_i32 = arith.constant 0 : i32
    %c0_i32_0 = arith.constant 0 : i32
    %c0_i32_1 = arith.constant 0 : i32
    return %c0_i32, %c0_i32_0 : i32, i32
  }
  func.func @transform_8(%arg0: i32) -> (i32, i32) {
    %c0_i32 = arith.constant 0 : i32
    %c0_i32_0 = arith.constant 0 : i32
    %c0_i32_1 = arith.constant 0 : i32
    return %c0_i32, %c0_i32_0 : i32, i32
  }
  func.func @transform_9(%arg0: i32) -> (i32, i32) {
    %c0_i32 = arith.constant 0 : i32
    %c0_i32_0 = arith.constant 0 : i32
    %c0_i32_1 = arith.constant 0 : i32
    return %c0_i32, %c0_i32_0 : i32, i32
  }
  func.func @transform_10(%arg0: i32) -> (i32, i32, i32) {
    %c0_i32 = arith.constant 0 : i32
    %c0_i32_0 = arith.constant 0 : i32
    %c0_i32_1 = arith.constant 0 : i32
    %c0_i32_2 = arith.constant 0 : i32
    return %c0_i32, %c0_i32_0, %c0_i32_1 : i32, i32, i32
  }
  func.func @transform_11(%arg0: i32) -> (i32, i32) {
    %c0_i32 = arith.constant 0 : i32
    %c0_i32_0 = arith.constant 0 : i32
    %c0_i32_1 = arith.constant 0 : i32
    return %c0_i32, %c0_i32_0 : i32, i32
  }
  func.func @transform_12(%arg0: i32) -> (i32, i32) {
    %c0_i32 = arith.constant 0 : i32
    %c0_i32_0 = arith.constant 0 : i32
    %c0_i32_1 = arith.constant 0 : i32
    return %c0_i32, %c0_i32_0 : i32, i32
  }
  func.func @transform_13(%arg0: i32) -> (i32, i32) {
    %c0_i32 = arith.constant 0 : i32
    %c0_i32_0 = arith.constant 0 : i32
    %c0_i32_1 = arith.constant 0 : i32
    return %c0_i32, %c0_i32_0 : i32, i32
  }
  func.func @transform_14(%arg0: i32) -> (i32, i32) {
    %c0_i32 = arith.constant 0 : i32
    %c0_i32_0 = arith.constant 0 : i32
    %c0_i32_1 = arith.constant 0 : i32
    return %c0_i32, %c0_i32_0 : i32, i32
  }
}

module attributes {stable_mosaic.version = 11 : i64} {
  func.func @_attn_kernel(%arg0: i32, %arg1: memref<2x64x4xf32, #tpu.memory_space<vmem>>, %arg2: memref<2x16x4xf32, #tpu.memory_space<vmem>>, %arg3: memref<2x16x16xf32, #tpu.memory_space<vmem>>, %arg4: memref<2x64x16xf32, #tpu.memory_space<vmem>>, %arg5: memref<2x64x16xf32, #tpu.memory_space<vmem>>) attributes {dimension_semantics = [#tpu.dimension_semantics<arbitrary>], iteration_bounds = array<i64: 1>, scalar_prefetch = 0 : i64, scratch_operands = 0 : i64, tpu.core_type = #tpu.core_type<tc>, window_params = [{pipeline_mode = #tpu.pipeline_mode<synchronous>, transform_indices = @transform_0, window_bounds = array<i64: 2, 64, 4>}, {pipeline_mode = #tpu.pipeline_mode<synchronous>, transform_indices = @transform_1, window_bounds = array<i64: 2, 16, 4>}, {pipeline_mode = #tpu.pipeline_mode<synchronous>, transform_indices = @transform_2, window_bounds = array<i64: 2, 16, 16>}, {pipeline_mode = #tpu.pipeline_mode<synchronous>, transform_indices = @transform_3, window_bounds = array<i64: 2, 64, 16>}, {pipeline_mode = #tpu.pipeline_mode<synchronous>, transform_indices = @transform_4, window_bounds = array<i64: 2, 64, 16>}]} {
    %c0 = arith.constant 0 : index
    %c0_0 = arith.constant 0 : index
    %c0_1 = arith.constant 0 : index
    %0 = vector.load %arg1[%c0, %c0_0, %c0_1] : memref<2x64x4xf32, #tpu.memory_space<vmem>>, vector<2x64x4xf32>
    %c0_2 = arith.constant 0 : index
    %c0_3 = arith.constant 0 : index
    %c0_4 = arith.constant 0 : index
    %1 = vector.load %arg2[%c0_2, %c0_3, %c0_4] : memref<2x16x4xf32, #tpu.memory_space<vmem>>, vector<2x16x4xf32>
    %c0_5 = arith.constant 0 : index
    %c0_6 = arith.constant 0 : index
    %c0_7 = arith.constant 0 : index
    %2 = vector.load %arg3[%c0_5, %c0_6, %c0_7] : memref<2x16x16xf32, #tpu.memory_space<vmem>>, vector<2x16x16xf32>
    "tpu.trace_start"() <{level = 10 : i32, message = "bqc,bkc->bqk"}> : () -> ()
    %cst = arith.constant dense<0.000000e+00> : vector<2x64x16xf32>
    %3 = tpu.matmul %0, %1, %cst {dimension_numbers = #tpu.dot_dimension_numbers<[2], [2], [1], [1], [0, 0, 0, 1, 1, 1], [0], [0]>} : vector<2x64x4xf32>, vector<2x16x4xf32>, vector<2x64x16xf32> -> vector<2x64x16xf32>
    "tpu.trace_stop"() : () -> ()
    %cst_8 = arith.constant dense<0xFF800000> : vector<2x64xf32>
    %4 = vector.multi_reduction <maximumf>, %3, %cst_8 [2] : vector<2x64x16xf32> to vector<2x64xf32>
    %5 = vector.shape_cast %4 : vector<2x64xf32> to vector<2x64x1xf32>
    %6 = vector.broadcast %5 : vector<2x64x1xf32> to vector<2x64x16xf32>
    %7 = arith.subf %3, %6 : vector<2x64x16xf32>
    %8 = math.exp %7 : vector<2x64x16xf32>
    %cst_9 = arith.constant dense<0.000000e+00> : vector<2x64xf32>
    %9 = vector.multi_reduction <add>, %8, %cst_9 [2] : vector<2x64x16xf32> to vector<2x64xf32>
    %10 = vector.shape_cast %9 : vector<2x64xf32> to vector<2x64x1xf32>
    %11 = tpu.reciprocal %10 {approx = true} : vector<2x64x1xf32> -> vector<2x64x1xf32>
    %12 = vector.broadcast %11 : vector<2x64x1xf32> to vector<2x64x16xf32>
    %13 = arith.mulf %8, %12 : vector<2x64x16xf32>
    "tpu.trace_start"() <{level = 10 : i32, message = "bqk,bkd->bqd"}> : () -> ()
    %cst_10 = arith.constant dense<0.000000e+00> : vector<2x64x16xf32>
    %14 = tpu.matmul %13, %2, %cst_10 {dimension_numbers = #tpu.dot_dimension_numbers<[2], [1], [1], [2], [0, 0, 0, 1, 1, 2], [0], [0]>} : vector<2x64x16xf32>, vector<2x16x16xf32>, vector<2x64x16xf32> -> vector<2x64x16xf32>
    "tpu.trace_stop"() : () -> ()
    %c0_11 = arith.constant 0 : index
    %c0_12 = arith.constant 0 : index
    %c0_13 = arith.constant 0 : index
    %15 = vector.load %arg4[%c0_11, %c0_12, %c0_13] : memref<2x64x16xf32, #tpu.memory_space<vmem>>, vector<2x64x16xf32>
    %16 = arith.addf %14, %15 : vector<2x64x16xf32>
    %cst_14 = arith.constant 0.000000e+00 : f32
    %17 = vector.broadcast %cst_14 : f32 to vector<2x64x16xf32>
    %18 = arith.cmpf oge, %16, %17 : vector<2x64x16xf32>
    %cst_15 = arith.constant 2.000000e-01 : f32
    %19 = vector.broadcast %cst_15 : f32 to vector<2x64x16xf32>
    %20 = arith.mulf %19, %16 : vector<2x64x16xf32>
    %21 = arith.select %18, %16, %20 : vector<2x64x16xi1>, vector<2x64x16xf32>
    %c0_16 = arith.constant 0 : index
    %c0_17 = arith.constant 0 : index
    %c0_18 = arith.constant 0 : index
    %22 = vector.load %arg5[%c0_16, %c0_17, %c0_18] : memref<2x64x16xf32, #tpu.memory_space<vmem>>, vector<2x64x16xf32>
    tpu.vector_store %arg5[%c0_16, %c0_17, %c0_18], %21 {strides = array<i32>} : memref<2x64x16xf32, #tpu.memory_space<vmem>>, vector<2x64x16xf32>,
    return
  }
  func.func @transform_0(%arg0: i32) -> (i32, i32, i32) {
    %c0_i32 = arith.constant 0 : i32
    %c0_i32_0 = arith.constant 0 : i32
    %c0_i32_1 = arith.constant 0 : i32
    %c0_i32_2 = arith.constant 0 : i32
    return %c0_i32, %c0_i32_0, %c0_i32_1 : i32, i32, i32
  }
  func.func @transform_1(%arg0: i32) -> (i32, i32, i32) {
    %c0_i32 = arith.constant 0 : i32
    %c0_i32_0 = arith.constant 0 : i32
    %c0_i32_1 = arith.constant 0 : i32
    %c0_i32_2 = arith.constant 0 : i32
    return %c0_i32, %c0_i32_0, %c0_i32_1 : i32, i32, i32
  }
  func.func @transform_2(%arg0: i32) -> (i32, i32, i32) {
    %c0_i32 = arith.constant 0 : i32
    %c0_i32_0 = arith.constant 0 : i32
    %c0_i32_1 = arith.constant 0 : i32
    %c0_i32_2 = arith.constant 0 : i32
    return %c0_i32, %c0_i32_0, %c0_i32_1 : i32, i32, i32
  }
  func.func @transform_3(%arg0: i32) -> (i32, i32, i32) {
    %c0_i32 = arith.constant 0 : i32
    %c0_i32_0 = arith.constant 0 : i32
    %c0_i32_1 = arith.constant 0 : i32
    %c0_i32_2 = arith.constant 0 : i32
    return %c0_i32, %c0_i32_0, %c0_i32_1 : i32, i32, i32
  }
  func.func @transform_4(%arg0: i32) -> (i32, i32, i32) {
    %c0_i32 = arith.constant 0 : i32
    %c0_i32_0 = arith.constant 0 : i32
    %c0_i32_1 = arith.constant 0 : i32
    %c0_i32_2 = arith.constant 0 : i32
    return %c0_i32, %c0_i32_0, %c0_i32_1 : i32, i32, i32
  }
}

module attributes {stable_mosaic.version = 11 : i64} {
  func.func @_mid_block_kernel(%arg0: i32, %arg1: memref<32x256xf32, #tpu.memory_space<vmem>>, %arg2: memref<256x32xf32, #tpu.memory_space<vmem>>, %arg3: memref<1x32xf32, #tpu.memory_space<vmem>>, %arg4: memref<1x32xf32, #tpu.memory_space<vmem>>, %arg5: memref<32x8xf32, #tpu.memory_space<vmem>>, %arg6: memref<1x8xf32, #tpu.memory_space<vmem>>, %arg7: memref<32x8xf32, #tpu.memory_space<vmem>>, %arg8: memref<1x8xf32, #tpu.memory_space<vmem>>, %arg9: memref<32x32xf32, #tpu.memory_space<vmem>>, %arg10: memref<1x32xf32, #tpu.memory_space<vmem>>, %arg11: memref<4x8x32xf32, #tpu.memory_space<vmem>>, %arg12: memref<32x32xf32, #tpu.memory_space<vmem>>, %arg13: memref<32x8xf32, #tpu.memory_space<vmem>>, %arg14: memref<8x8xf32, #tpu.memory_space<vmem>>, %arg15: memref<8x32xf32, #tpu.memory_space<vmem>>) attributes {dimension_semantics = [#tpu.dimension_semantics<arbitrary>], iteration_bounds = array<i64: 1>, scalar_prefetch = 0 : i64, scratch_operands = 0 : i64, tpu.core_type = #tpu.core_type<tc>, window_params = [{pipeline_mode = #tpu.pipeline_mode<synchronous>, transform_indices = @transform_0, window_bounds = array<i64: 32, 256>}, {pipeline_mode = #tpu.pipeline_mode<synchronous>, transform_indices = @transform_1, window_bounds = array<i64: 256, 32>}, {pipeline_mode = #tpu.pipeline_mode<synchronous>, transform_indices = @transform_2, window_bounds = array<i64: 1, 32>}, {pipeline_mode = #tpu.pipeline_mode<synchronous>, transform_indices = @transform_3, window_bounds = array<i64: 1, 32>}, {pipeline_mode = #tpu.pipeline_mode<synchronous>, transform_indices = @transform_4, window_bounds = array<i64: 32, 8>}, {pipeline_mode = #tpu.pipeline_mode<synchronous>, transform_indices = @transform_5, window_bounds = array<i64: 1, 8>}, {pipeline_mode = #tpu.pipeline_mode<synchronous>, transform_indices = @transform_6, window_bounds = array<i64: 32, 8>}, {pipeline_mode = #tpu.pipeline_mode<synchronous>, transform_indices = @transform_7, window_bounds = array<i64: 1, 8>}, {pipeline_mode = #tpu.pipeline_mode<synchronous>, transform_indices = @transform_8, window_bounds = array<i64: 32, 32>}, {pipeline_mode = #tpu.pipeline_mode<synchronous>, transform_indices = @transform_9, window_bounds = array<i64: 1, 32>}, {pipeline_mode = #tpu.pipeline_mode<synchronous>, transform_indices = @transform_10, window_bounds = array<i64: 4, 8, 32>}, {pipeline_mode = #tpu.pipeline_mode<synchronous>, transform_indices = @transform_11, window_bounds = array<i64: 32, 32>}, {pipeline_mode = #tpu.pipeline_mode<synchronous>, transform_indices = @transform_12, window_bounds = array<i64: 32, 8>}, {pipeline_mode = #tpu.pipeline_mode<synchronous>, transform_indices = @transform_13, window_bounds = array<i64: 8, 8>}, {pipeline_mode = #tpu.pipeline_mode<synchronous>, transform_indices = @transform_14, window_bounds = array<i64: 8, 32>}]} {
    %c0 = arith.constant 0 : index
    %c0_0 = arith.constant 0 : index
    %0 = vector.load %arg1[%c0, %c0_0] : memref<32x256xf32, #tpu.memory_space<vmem>>, vector<32x256xf32>
    %c0_1 = arith.constant 0 : index
    %c0_2 = arith.constant 0 : index
    %1 = vector.load %arg2[%c0_1, %c0_2] : memref<256x32xf32, #tpu.memory_space<vmem>>, vector<256x32xf32>
    %cst = arith.constant dense<0.000000e+00> : vector<32x32xf32>
    %2 = tpu.matmul %0, %1, %cst {dimension_numbers = #tpu.dot_dimension_numbers<[1], [0], [0], [1], [0, 0, 1, 1], [], []>} : vector<32x256xf32>, vector<256x32xf32>, vector<32x32xf32> -> vector<32x32xf32>
    %c0_3 = arith.constant 0 : index
    %c0_4 = arith.constant 0 : index
    %3 = vector.load %arg3[%c0_3, %c0_4] : memref<1x32xf32, #tpu.memory_space<vmem>>, vector<1x32xf32>
    %c0_5 = arith.constant 0 : index
    %c0_6 = arith.constant 0 : index
    %4 = vector.load %arg4[%c0_5, %c0_6] : memref<1x32xf32, #tpu.memory_space<vmem>>, vector<1x32xf32>
    %cst_7 = arith.constant dense<0.000000e+00> : vector<32xf32>
    %5 = vector.multi_reduction <add>, %2, %cst_7 [0] : vector<32x32xf32> to vector<32xf32>
    %6 = vector.shape_cast %5 : vector<32xf32> to vector<1x32xf32>
    %cst_8 = arith.constant 3.200000e+01 : f32
    %7 = vector.broadcast %cst_8 : f32 to vector<1x32xf32>
    %8 = arith.divf %6, %7 : vector<1x32xf32>
    %9 = vector.broadcast %8 : vector<1x32xf32> to vector<32x32xf32>
    %10 = arith.subf %2, %9 : vector<32x32xf32>
    %11 = arith.mulf %10, %10 : vector<32x32xf32>
    %cst_9 = arith.constant dense<0.000000e+00> : vector<32xf32>
    %12 = vector.multi_reduction <add>, %11, %cst_9 [0] : vector<32x32xf32> to vector<32xf32>
    %13 = vector.shape_cast %12 : vector<32xf32> to vector<1x32xf32>
    %cst_10 = arith.constant 3.200000e+01 : f32
    %14 = vector.broadcast %cst_10 : f32 to vector<1x32xf32>
    %15 = arith.divf %13, %14 : vector<1x32xf32>
    %cst_11 = arith.constant 9.99999974E-6 : f32
    %16 = vector.broadcast %cst_11 : f32 to vector<1x32xf32>
    %17 = arith.addf %15, %16 : vector<1x32xf32>
    %18 = math.rsqrt %17 : vector<1x32xf32>
    %19 = vector.broadcast %8 : vector<1x32xf32> to vector<32x32xf32>
    %20 = arith.subf %2, %19 : vector<32x32xf32>
    %21 = arith.mulf %18, %3 : vector<1x32xf32>
    %22 = vector.broadcast %21 : vector<1x32xf32> to vector<32x32xf32>
    %23 = arith.mulf %20, %22 : vector<32x32xf32>
    %24 = vector.broadcast %4 : vector<1x32xf32> to vector<32x32xf32>
    %25 = arith.addf %23, %24 : vector<32x32xf32>
    %c0_12 = arith.constant 0 : index
    %c0_13 = arith.constant 0 : index
    %26 = vector.load %arg12[%c0_12, %c0_13] : memref<32x32xf32, #tpu.memory_space<vmem>>, vector<32x32xf32>
    tpu.vector_store %arg12[%c0_12, %c0_13], %25 {strides = array<i32>} : memref<32x32xf32, #tpu.memory_space<vmem>>, vector<32x32xf32>,
    %c0_14 = arith.constant 0 : index
    %c0_15 = arith.constant 0 : index
    %27 = vector.load %arg5[%c0_14, %c0_15] : memref<32x8xf32, #tpu.memory_space<vmem>>, vector<32x8xf32>
    %cst_16 = arith.constant dense<0.000000e+00> : vector<32x8xf32>
    %28 = tpu.matmul %25, %27, %cst_16 {dimension_numbers = #tpu.dot_dimension_numbers<[1], [0], [0], [1], [0, 0, 1, 1], [], []>} : vector<32x32xf32>, vector<32x8xf32>, vector<32x8xf32> -> vector<32x8xf32>
    %c0_17 = arith.constant 0 : index
    %c0_18 = arith.constant 0 : index
    %29 = vector.load %arg6[%c0_17, %c0_18] : memref<1x8xf32, #tpu.memory_space<vmem>>, vector<1x8xf32>
    %30 = vector.broadcast %29 : vector<1x8xf32> to vector<32x8xf32>
    %31 = arith.addf %28, %30 : vector<32x8xf32>
    %c0_19 = arith.constant 0 : index
    %c0_20 = arith.constant 0 : index
    %32 = vector.load %arg7[%c0_19, %c0_20] : memref<32x8xf32, #tpu.memory_space<vmem>>, vector<32x8xf32>
    %cst_21 = arith.constant dense<0.000000e+00> : vector<32x8xf32>
    %33 = tpu.matmul %25, %32, %cst_21 {dimension_numbers = #tpu.dot_dimension_numbers<[1], [0], [0], [1], [0, 0, 1, 1], [], []>} : vector<32x32xf32>, vector<32x8xf32>, vector<32x8xf32> -> vector<32x8xf32>
    %c0_22 = arith.constant 0 : index
    %c0_23 = arith.constant 0 : index
    %34 = vector.load %arg8[%c0_22, %c0_23] : memref<1x8xf32, #tpu.memory_space<vmem>>, vector<1x8xf32>
    %35 = vector.broadcast %34 : vector<1x8xf32> to vector<32x8xf32>
    %36 = arith.addf %33, %35 : vector<32x8xf32>
    %c0_24 = arith.constant 0 : index
    %c0_25 = arith.constant 0 : index
    %37 = vector.load %arg9[%c0_24, %c0_25] : memref<32x32xf32, #tpu.memory_space<vmem>>, vector<32x32xf32>
    %cst_26 = arith.constant dense<0.000000e+00> : vector<32x32xf32>
    %38 = tpu.matmul %25, %37, %cst_26 {dimension_numbers = #tpu.dot_dimension_numbers<[1], [0], [0], [1], [0, 0, 1, 1], [], []>} : vector<32x32xf32>, vector<32x32xf32>, vector<32x32xf32> -> vector<32x32xf32>
    %c0_27 = arith.constant 0 : index
    %c0_28 = arith.constant 0 : index
    %39 = vector.load %arg10[%c0_27, %c0_28] : memref<1x32xf32, #tpu.memory_space<vmem>>, vector<1x32xf32>
    %40 = vector.broadcast %39 : vector<1x32xf32> to vector<32x32xf32>
    %41 = arith.addf %38, %40 : vector<32x32xf32>
    %c0_29 = arith.constant 0 : index
    %c0_30 = arith.constant 0 : index
    %42 = vector.load %arg13[%c0_29, %c0_30] : memref<32x8xf32, #tpu.memory_space<vmem>>, vector<32x8xf32>
    tpu.vector_store %arg13[%c0_29, %c0_30], %31 {strides = array<i32>} : memref<32x8xf32, #tpu.memory_space<vmem>>, vector<32x8xf32>,
    %c0_31 = arith.constant 0 : index
    %c0_32 = arith.constant 0 : index
    %c0_33 = arith.constant 0 : index
    %43 = vector.load %arg11[%c0_31, %c0_32, %c0_33] : memref<4x8x32xf32, #tpu.memory_space<vmem>>, vector<1x8x32xf32>
    %44 = vector.shape_cast %43 : vector<1x8x32xf32> to vector<8x32xf32>
    %cst_34 = arith.constant dense<0.000000e+00> : vector<8x8xf32>
    %45 = tpu.matmul %44, %36, %cst_34 {dimension_numbers = #tpu.dot_dimension_numbers<[1], [0], [0], [1], [0, 0, 1, 1], [], []>} : vector<8x32xf32>, vector<32x8xf32>, vector<8x8xf32> -> vector<8x8xf32>
    %c1 = arith.constant 1 : index
    %c0_35 = arith.constant 0 : index
    %c0_36 = arith.constant 0 : index
    %46 = vector.load %arg11[%c1, %c0_35, %c0_36] : memref<4x8x32xf32, #tpu.memory_space<vmem>>, vector<1x8x32xf32>
    %47 = vector.shape_cast %46 : vector<1x8x32xf32> to vector<8x32xf32>
    %cst_37 = arith.constant dense<0.000000e+00> : vector<8x8xf32>
    %48 = tpu.matmul %47, %36, %cst_37 {dimension_numbers = #tpu.dot_dimension_numbers<[1], [0], [0], [1], [0, 0, 1, 1], [], []>} : vector<8x32xf32>, vector<32x8xf32>, vector<8x8xf32> -> vector<8x8xf32>
    %49 = arith.maximumf %45, %48 : vector<8x8xf32>
    %c2 = arith.constant 2 : index
    %c0_38 = arith.constant 0 : index
    %c0_39 = arith.constant 0 : index
    %50 = vector.load %arg11[%c2, %c0_38, %c0_39] : memref<4x8x32xf32, #tpu.memory_space<vmem>>, vector<1x8x32xf32>
    %51 = vector.shape_cast %50 : vector<1x8x32xf32> to vector<8x32xf32>
    %cst_40 = arith.constant dense<0.000000e+00> : vector<8x8xf32>
    %52 = tpu.matmul %51, %36, %cst_40 {dimension_numbers = #tpu.dot_dimension_numbers<[1], [0], [0], [1], [0, 0, 1, 1], [], []>} : vector<8x32xf32>, vector<32x8xf32>, vector<8x8xf32> -> vector<8x8xf32>
    %53 = arith.maximumf %49, %52 : vector<8x8xf32>
    %c3 = arith.constant 3 : index
    %c0_41 = arith.constant 0 : index
    %c0_42 = arith.constant 0 : index
    %54 = vector.load %arg11[%c3, %c0_41, %c0_42] : memref<4x8x32xf32, #tpu.memory_space<vmem>>, vector<1x8x32xf32>
    %55 = vector.shape_cast %54 : vector<1x8x32xf32> to vector<8x32xf32>
    %cst_43 = arith.constant dense<0.000000e+00> : vector<8x8xf32>
    %56 = tpu.matmul %55, %36, %cst_43 {dimension_numbers = #tpu.dot_dimension_numbers<[1], [0], [0], [1], [0, 0, 1, 1], [], []>} : vector<8x32xf32>, vector<32x8xf32>, vector<8x8xf32> -> vector<8x8xf32>
    %57 = arith.maximumf %53, %56 : vector<8x8xf32>
    %c0_44 = arith.constant 0 : index
    %c0_45 = arith.constant 0 : index
    %58 = vector.load %arg14[%c0_44, %c0_45] : memref<8x8xf32, #tpu.memory_space<vmem>>, vector<8x8xf32>
    tpu.vector_store %arg14[%c0_44, %c0_45], %57 {strides = array<i32>} : memref<8x8xf32, #tpu.memory_space<vmem>>, vector<8x8xf32>,
    %c0_46 = arith.constant 0 : index
    %c0_47 = arith.constant 0 : index
    %c0_48 = arith.constant 0 : index
    %59 = vector.load %arg11[%c0_46, %c0_47, %c0_48] : memref<4x8x32xf32, #tpu.memory_space<vmem>>, vector<1x8x32xf32>
    %60 = vector.shape_cast %59 : vector<1x8x32xf32> to vector<8x32xf32>
    %cst_49 = arith.constant dense<0.000000e+00> : vector<8x32xf32>
    %61 = tpu.matmul %60, %41, %cst_49 {dimension_numbers = #tpu.dot_dimension_numbers<[1], [0], [0], [1], [0, 0, 1, 1], [], []>} : vector<8x32xf32>, vector<32x32xf32>, vector<8x32xf32> -> vector<8x32xf32>
    %c1_50 = arith.constant 1 : index
    %c0_51 = arith.constant 0 : index
    %c0_52 = arith.constant 0 : index
    %62 = vector.load %arg11[%c1_50, %c0_51, %c0_52] : memref<4x8x32xf32, #tpu.memory_space<vmem>>, vector<1x8x32xf32>
    %63 = vector.shape_cast %62 : vector<1x8x32xf32> to vector<8x32xf32>
    %cst_53 = arith.constant dense<0.000000e+00> : vector<8x32xf32>
    %64 = tpu.matmul %63, %41, %cst_53 {dimension_numbers = #tpu.dot_dimension_numbers<[1], [0], [0], [1], [0, 0, 1, 1], [], []>} : vector<8x32xf32>, vector<32x32xf32>, vector<8x32xf32> -> vector<8x32xf32>
    %65 = arith.maximumf %61, %64 : vector<8x32xf32>
    %c2_54 = arith.constant 2 : index
    %c0_55 = arith.constant 0 : index
    %c0_56 = arith.constant 0 : index
    %66 = vector.load %arg11[%c2_54, %c0_55, %c0_56] : memref<4x8x32xf32, #tpu.memory_space<vmem>>, vector<1x8x32xf32>
    %67 = vector.shape_cast %66 : vector<1x8x32xf32> to vector<8x32xf32>
    %cst_57 = arith.constant dense<0.000000e+00> : vector<8x32xf32>
    %68 = tpu.matmul %67, %41, %cst_57 {dimension_numbers = #tpu.dot_dimension_numbers<[1], [0], [0], [1], [0, 0, 1, 1], [], []>} : vector<8x32xf32>, vector<32x32xf32>, vector<8x32xf32> -> vector<8x32xf32>
    %69 = arith.maximumf %65, %68 : vector<8x32xf32>
    %c3_58 = arith.constant 3 : index
    %c0_59 = arith.constant 0 : index
    %c0_60 = arith.constant 0 : index
    %70 = vector.load %arg11[%c3_58, %c0_59, %c0_60] : memref<4x8x32xf32, #tpu.memory_space<vmem>>, vector<1x8x32xf32>
    %71 = vector.shape_cast %70 : vector<1x8x32xf32> to vector<8x32xf32>
    %cst_61 = arith.constant dense<0.000000e+00> : vector<8x32xf32>
    %72 = tpu.matmul %71, %41, %cst_61 {dimension_numbers = #tpu.dot_dimension_numbers<[1], [0], [0], [1], [0, 0, 1, 1], [], []>} : vector<8x32xf32>, vector<32x32xf32>, vector<8x32xf32> -> vector<8x32xf32>
    %73 = arith.maximumf %69, %72 : vector<8x32xf32>
    %c0_62 = arith.constant 0 : index
    %c0_63 = arith.constant 0 : index
    %74 = vector.load %arg15[%c0_62, %c0_63] : memref<8x32xf32, #tpu.memory_space<vmem>>, vector<8x32xf32>
    tpu.vector_store %arg15[%c0_62, %c0_63], %73 {strides = array<i32>} : memref<8x32xf32, #tpu.memory_space<vmem>>, vector<8x32xf32>,
    return
  }
  func.func @transform_0(%arg0: i32) -> (i32, i32) {
    %c0_i32 = arith.constant 0 : i32
    %c0_i32_0 = arith.constant 0 : i32
    %c0_i32_1 = arith.constant 0 : i32
    return %c0_i32, %c0_i32_0 : i32, i32
  }
  func.func @transform_1(%arg0: i32) -> (i32, i32) {
    %c0_i32 = arith.constant 0 : i32
    %c0_i32_0 = arith.constant 0 : i32
    %c0_i32_1 = arith.constant 0 : i32
    return %c0_i32, %c0_i32_0 : i32, i32
  }
  func.func @transform_2(%arg0: i32) -> (i32, i32) {
    %c0_i32 = arith.constant 0 : i32
    %c0_i32_0 = arith.constant 0 : i32
    %c0_i32_1 = arith.constant 0 : i32
    return %c0_i32, %c0_i32_0 : i32, i32
  }
  func.func @transform_3(%arg0: i32) -> (i32, i32) {
    %c0_i32 = arith.constant 0 : i32
    %c0_i32_0 = arith.constant 0 : i32
    %c0_i32_1 = arith.constant 0 : i32
    return %c0_i32, %c0_i32_0 : i32, i32
  }
  func.func @transform_4(%arg0: i32) -> (i32, i32) {
    %c0_i32 = arith.constant 0 : i32
    %c0_i32_0 = arith.constant 0 : i32
    %c0_i32_1 = arith.constant 0 : i32
    return %c0_i32, %c0_i32_0 : i32, i32
  }
  func.func @transform_5(%arg0: i32) -> (i32, i32) {
    %c0_i32 = arith.constant 0 : i32
    %c0_i32_0 = arith.constant 0 : i32
    %c0_i32_1 = arith.constant 0 : i32
    return %c0_i32, %c0_i32_0 : i32, i32
  }
  func.func @transform_6(%arg0: i32) -> (i32, i32) {
    %c0_i32 = arith.constant 0 : i32
    %c0_i32_0 = arith.constant 0 : i32
    %c0_i32_1 = arith.constant 0 : i32
    return %c0_i32, %c0_i32_0 : i32, i32
  }
  func.func @transform_7(%arg0: i32) -> (i32, i32) {
    %c0_i32 = arith.constant 0 : i32
    %c0_i32_0 = arith.constant 0 : i32
    %c0_i32_1 = arith.constant 0 : i32
    return %c0_i32, %c0_i32_0 : i32, i32
  }
  func.func @transform_8(%arg0: i32) -> (i32, i32) {
    %c0_i32 = arith.constant 0 : i32
    %c0_i32_0 = arith.constant 0 : i32
    %c0_i32_1 = arith.constant 0 : i32
    return %c0_i32, %c0_i32_0 : i32, i32
  }
  func.func @transform_9(%arg0: i32) -> (i32, i32) {
    %c0_i32 = arith.constant 0 : i32
    %c0_i32_0 = arith.constant 0 : i32
    %c0_i32_1 = arith.constant 0 : i32
    return %c0_i32, %c0_i32_0 : i32, i32
  }
  func.func @transform_10(%arg0: i32) -> (i32, i32, i32) {
    %c0_i32 = arith.constant 0 : i32
    %c0_i32_0 = arith.constant 0 : i32
    %c0_i32_1 = arith.constant 0 : i32
    %c0_i32_2 = arith.constant 0 : i32
    return %c0_i32, %c0_i32_0, %c0_i32_1 : i32, i32, i32
  }
  func.func @transform_11(%arg0: i32) -> (i32, i32) {
    %c0_i32 = arith.constant 0 : i32
    %c0_i32_0 = arith.constant 0 : i32
    %c0_i32_1 = arith.constant 0 : i32
    return %c0_i32, %c0_i32_0 : i32, i32
  }
  func.func @transform_12(%arg0: i32) -> (i32, i32) {
    %c0_i32 = arith.constant 0 : i32
    %c0_i32_0 = arith.constant 0 : i32
    %c0_i32_1 = arith.constant 0 : i32
    return %c0_i32, %c0_i32_0 : i32, i32
  }
  func.func @transform_13(%arg0: i32) -> (i32, i32) {
    %c0_i32 = arith.constant 0 : i32
    %c0_i32_0 = arith.constant 0 : i32
    %c0_i32_1 = arith.constant 0 : i32
    return %c0_i32, %c0_i32_0 : i32, i32
  }
  func.func @transform_14(%arg0: i32) -> (i32, i32) {
    %c0_i32 = arith.constant 0 : i32
    %c0_i32_0 = arith.constant 0 : i32
    %c0_i32_1 = arith.constant 0 : i32
    return %c0_i32, %c0_i32_0 : i32, i32
  }
}

module attributes {stable_mosaic.version = 11 : i64} {
  func.func @_attn_kernel(%arg0: i32, %arg1: memref<2x16x8xf32, #tpu.memory_space<vmem>>, %arg2: memref<2x4x8xf32, #tpu.memory_space<vmem>>, %arg3: memref<2x4x32xf32, #tpu.memory_space<vmem>>, %arg4: memref<2x16x32xf32, #tpu.memory_space<vmem>>, %arg5: memref<2x16x32xf32, #tpu.memory_space<vmem>>) attributes {dimension_semantics = [#tpu.dimension_semantics<arbitrary>], iteration_bounds = array<i64: 1>, scalar_prefetch = 0 : i64, scratch_operands = 0 : i64, tpu.core_type = #tpu.core_type<tc>, window_params = [{pipeline_mode = #tpu.pipeline_mode<synchronous>, transform_indices = @transform_0, window_bounds = array<i64: 2, 16, 8>}, {pipeline_mode = #tpu.pipeline_mode<synchronous>, transform_indices = @transform_1, window_bounds = array<i64: 2, 4, 8>}, {pipeline_mode = #tpu.pipeline_mode<synchronous>, transform_indices = @transform_2, window_bounds = array<i64: 2, 4, 32>}, {pipeline_mode = #tpu.pipeline_mode<synchronous>, transform_indices = @transform_3, window_bounds = array<i64: 2, 16, 32>}, {pipeline_mode = #tpu.pipeline_mode<synchronous>, transform_indices = @transform_4, window_bounds = array<i64: 2, 16, 32>}]} {
    %c0 = arith.constant 0 : index
    %c0_0 = arith.constant 0 : index
    %c0_1 = arith.constant 0 : index
    %0 = vector.load %arg1[%c0, %c0_0, %c0_1] : memref<2x16x8xf32, #tpu.memory_space<vmem>>, vector<2x16x8xf32>
    %c0_2 = arith.constant 0 : index
    %c0_3 = arith.constant 0 : index
    %c0_4 = arith.constant 0 : index
    %1 = vector.load %arg2[%c0_2, %c0_3, %c0_4] : memref<2x4x8xf32, #tpu.memory_space<vmem>>, vector<2x4x8xf32>
    %c0_5 = arith.constant 0 : index
    %c0_6 = arith.constant 0 : index
    %c0_7 = arith.constant 0 : index
    %2 = vector.load %arg3[%c0_5, %c0_6, %c0_7] : memref<2x4x32xf32, #tpu.memory_space<vmem>>, vector<2x4x32xf32>
    "tpu.trace_start"() <{level = 10 : i32, message = "bqc,bkc->bqk"}> : () -> ()
    %cst = arith.constant dense<0.000000e+00> : vector<2x16x4xf32>
    %3 = tpu.matmul %0, %1, %cst {dimension_numbers = #tpu.dot_dimension_numbers<[2], [2], [1], [1], [0, 0, 0, 1, 1, 1], [0], [0]>} : vector<2x16x8xf32>, vector<2x4x8xf32>, vector<2x16x4xf32> -> vector<2x16x4xf32>
    "tpu.trace_stop"() : () -> ()
    %cst_8 = arith.constant dense<0xFF800000> : vector<2x16xf32>
    %4 = vector.multi_reduction <maximumf>, %3, %cst_8 [2] : vector<2x16x4xf32> to vector<2x16xf32>
    %5 = vector.shape_cast %4 : vector<2x16xf32> to vector<2x16x1xf32>
    %6 = vector.broadcast %5 : vector<2x16x1xf32> to vector<2x16x4xf32>
    %7 = arith.subf %3, %6 : vector<2x16x4xf32>
    %8 = math.exp %7 : vector<2x16x4xf32>
    %cst_9 = arith.constant dense<0.000000e+00> : vector<2x16xf32>
    %9 = vector.multi_reduction <add>, %8, %cst_9 [2] : vector<2x16x4xf32> to vector<2x16xf32>
    %10 = vector.shape_cast %9 : vector<2x16xf32> to vector<2x16x1xf32>
    %11 = tpu.reciprocal %10 {approx = true} : vector<2x16x1xf32> -> vector<2x16x1xf32>
    %12 = vector.broadcast %11 : vector<2x16x1xf32> to vector<2x16x4xf32>
    %13 = arith.mulf %8, %12 : vector<2x16x4xf32>
    "tpu.trace_start"() <{level = 10 : i32, message = "bqk,bkd->bqd"}> : () -> ()
    %cst_10 = arith.constant dense<0.000000e+00> : vector<2x16x32xf32>
    %14 = tpu.matmul %13, %2, %cst_10 {dimension_numbers = #tpu.dot_dimension_numbers<[2], [1], [1], [2], [0, 0, 0, 1, 1, 2], [0], [0]>} : vector<2x16x4xf32>, vector<2x4x32xf32>, vector<2x16x32xf32> -> vector<2x16x32xf32>
    "tpu.trace_stop"() : () -> ()
    %c0_11 = arith.constant 0 : index
    %c0_12 = arith.constant 0 : index
    %c0_13 = arith.constant 0 : index
    %15 = vector.load %arg4[%c0_11, %c0_12, %c0_13] : memref<2x16x32xf32, #tpu.memory_space<vmem>>, vector<2x16x32xf32>
    %16 = arith.addf %14, %15 : vector<2x16x32xf32>
    %cst_14 = arith.constant 0.000000e+00 : f32
    %17 = vector.broadcast %cst_14 : f32 to vector<2x16x32xf32>
    %18 = arith.cmpf oge, %16, %17 : vector<2x16x32xf32>
    %cst_15 = arith.constant 2.000000e-01 : f32
    %19 = vector.broadcast %cst_15 : f32 to vector<2x16x32xf32>
    %20 = arith.mulf %19, %16 : vector<2x16x32xf32>
    %21 = arith.select %18, %16, %20 : vector<2x16x32xi1>, vector<2x16x32xf32>
    %c0_16 = arith.constant 0 : index
    %c0_17 = arith.constant 0 : index
    %c0_18 = arith.constant 0 : index
    %22 = vector.load %arg5[%c0_16, %c0_17, %c0_18] : memref<2x16x32xf32, #tpu.memory_space<vmem>>, vector<2x16x32xf32>
    tpu.vector_store %arg5[%c0_16, %c0_17, %c0_18], %21 {strides = array<i32>} : memref<2x16x32xf32, #tpu.memory_space<vmem>>, vector<2x16x32xf32>,
    return
  }
  func.func @transform_0(%arg0: i32) -> (i32, i32, i32) {
    %c0_i32 = arith.constant 0 : i32
    %c0_i32_0 = arith.constant 0 : i32
    %c0_i32_1 = arith.constant 0 : i32
    %c0_i32_2 = arith.constant 0 : i32
    return %c0_i32, %c0_i32_0, %c0_i32_1 : i32, i32, i32
  }
  func.func @transform_1(%arg0: i32) -> (i32, i32, i32) {
    %c0_i32 = arith.constant 0 : i32
    %c0_i32_0 = arith.constant 0 : i32
    %c0_i32_1 = arith.constant 0 : i32
    %c0_i32_2 = arith.constant 0 : i32
    return %c0_i32, %c0_i32_0, %c0_i32_1 : i32, i32, i32
  }
  func.func @transform_2(%arg0: i32) -> (i32, i32, i32) {
    %c0_i32 = arith.constant 0 : i32
    %c0_i32_0 = arith.constant 0 : i32
    %c0_i32_1 = arith.constant 0 : i32
    %c0_i32_2 = arith.constant 0 : i32
    return %c0_i32, %c0_i32_0, %c0_i32_1 : i32, i32, i32
  }
  func.func @transform_3(%arg0: i32) -> (i32, i32, i32) {
    %c0_i32 = arith.constant 0 : i32
    %c0_i32_0 = arith.constant 0 : i32
    %c0_i32_1 = arith.constant 0 : i32
    %c0_i32_2 = arith.constant 0 : i32
    return %c0_i32, %c0_i32_0, %c0_i32_1 : i32, i32, i32
  }
  func.func @transform_4(%arg0: i32) -> (i32, i32, i32) {
    %c0_i32 = arith.constant 0 : i32
    %c0_i32_0 = arith.constant 0 : i32
    %c0_i32_1 = arith.constant 0 : i32
    %c0_i32_2 = arith.constant 0 : i32
    return %c0_i32, %c0_i32_0, %c0_i32_1 : i32, i32, i32
  }
}

module attributes {stable_mosaic.version = 11 : i64} {
  func.func @_tail_kernel(%arg0: i32, %arg1: memref<18x512xf32, #tpu.memory_space<vmem>>, %arg2: memref<512x64xf32, #tpu.memory_space<vmem>>, %arg3: memref<1x64xf32, #tpu.memory_space<vmem>>, %arg4: memref<1x64xf32, #tpu.memory_space<vmem>>, %arg5: memref<16x8x18xf32, #tpu.memory_space<vmem>>, %arg6: memref<16x64x8xf32, #tpu.memory_space<vmem>>, %arg7: memref<1x8xf32, #tpu.memory_space<vmem>>, %arg8: memref<8x8xf32, #tpu.memory_space<vmem>>) attributes {dimension_semantics = [#tpu.dimension_semantics<arbitrary>], iteration_bounds = array<i64: 1>, scalar_prefetch = 0 : i64, scratch_operands = 0 : i64, tpu.core_type = #tpu.core_type<tc>, window_params = [{pipeline_mode = #tpu.pipeline_mode<synchronous>, transform_indices = @transform_0, window_bounds = array<i64: 18, 512>}, {pipeline_mode = #tpu.pipeline_mode<synchronous>, transform_indices = @transform_1, window_bounds = array<i64: 512, 64>}, {pipeline_mode = #tpu.pipeline_mode<synchronous>, transform_indices = @transform_2, window_bounds = array<i64: 1, 64>}, {pipeline_mode = #tpu.pipeline_mode<synchronous>, transform_indices = @transform_3, window_bounds = array<i64: 1, 64>}, {pipeline_mode = #tpu.pipeline_mode<synchronous>, transform_indices = @transform_4, window_bounds = array<i64: 16, 8, 18>}, {pipeline_mode = #tpu.pipeline_mode<synchronous>, transform_indices = @transform_5, window_bounds = array<i64: 16, 64, 8>}, {pipeline_mode = #tpu.pipeline_mode<synchronous>, transform_indices = @transform_6, window_bounds = array<i64: 1, 8>}, {pipeline_mode = #tpu.pipeline_mode<synchronous>, transform_indices = @transform_7, window_bounds = array<i64: 8, 8>}]} {
    %c0 = arith.constant 0 : index
    %c0_0 = arith.constant 0 : index
    %0 = vector.load %arg1[%c0, %c0_0] : memref<18x512xf32, #tpu.memory_space<vmem>>, vector<18x512xf32>
    %c0_1 = arith.constant 0 : index
    %c0_2 = arith.constant 0 : index
    %1 = vector.load %arg2[%c0_1, %c0_2] : memref<512x64xf32, #tpu.memory_space<vmem>>, vector<512x64xf32>
    %cst = arith.constant dense<0.000000e+00> : vector<18x64xf32>
    %2 = tpu.matmul %0, %1, %cst {dimension_numbers = #tpu.dot_dimension_numbers<[1], [0], [0], [1], [0, 0, 1, 1], [], []>} : vector<18x512xf32>, vector<512x64xf32>, vector<18x64xf32> -> vector<18x64xf32>
    %c0_3 = arith.constant 0 : index
    %c0_4 = arith.constant 0 : index
    %3 = vector.load %arg3[%c0_3, %c0_4] : memref<1x64xf32, #tpu.memory_space<vmem>>, vector<1x64xf32>
    %c0_5 = arith.constant 0 : index
    %c0_6 = arith.constant 0 : index
    %4 = vector.load %arg4[%c0_5, %c0_6] : memref<1x64xf32, #tpu.memory_space<vmem>>, vector<1x64xf32>
    %cst_7 = arith.constant dense<0.000000e+00> : vector<64xf32>
    %5 = vector.multi_reduction <add>, %2, %cst_7 [0] : vector<18x64xf32> to vector<64xf32>
    %6 = vector.shape_cast %5 : vector<64xf32> to vector<1x64xf32>
    %cst_8 = arith.constant 1.800000e+01 : f32
    %7 = vector.broadcast %cst_8 : f32 to vector<1x64xf32>
    %8 = arith.divf %6, %7 : vector<1x64xf32>
    %9 = vector.broadcast %8 : vector<1x64xf32> to vector<18x64xf32>
    %10 = arith.subf %2, %9 : vector<18x64xf32>
    %11 = arith.mulf %10, %10 : vector<18x64xf32>
    %cst_9 = arith.constant dense<0.000000e+00> : vector<64xf32>
    %12 = vector.multi_reduction <add>, %11, %cst_9 [0] : vector<18x64xf32> to vector<64xf32>
    %13 = vector.shape_cast %12 : vector<64xf32> to vector<1x64xf32>
    %cst_10 = arith.constant 1.800000e+01 : f32
    %14 = vector.broadcast %cst_10 : f32 to vector<1x64xf32>
    %15 = arith.divf %13, %14 : vector<1x64xf32>
    %cst_11 = arith.constant 9.99999974E-6 : f32
    %16 = vector.broadcast %cst_11 : f32 to vector<1x64xf32>
    %17 = arith.addf %15, %16 : vector<1x64xf32>
    %18 = math.rsqrt %17 : vector<1x64xf32>
    %19 = vector.broadcast %8 : vector<1x64xf32> to vector<18x64xf32>
    %20 = arith.subf %2, %19 : vector<18x64xf32>
    %21 = arith.mulf %18, %3 : vector<1x64xf32>
    %22 = vector.broadcast %21 : vector<1x64xf32> to vector<18x64xf32>
    %23 = arith.mulf %20, %22 : vector<18x64xf32>
    %24 = vector.broadcast %4 : vector<1x64xf32> to vector<18x64xf32>
    %25 = arith.addf %23, %24 : vector<18x64xf32>
    %cst_12 = arith.constant 0.000000e+00 : f32
    %26 = vector.broadcast %cst_12 : f32 to vector<18x64xf32>
    %27 = arith.cmpf oge, %25, %26 : vector<18x64xf32>
    %cst_13 = arith.constant 2.000000e-01 : f32
    %28 = vector.broadcast %cst_13 : f32 to vector<18x64xf32>
    %29 = arith.mulf %28, %25 : vector<18x64xf32>
    %30 = arith.select %27, %25, %29 : vector<18x64xi1>, vector<18x64xf32>
    %cst_14 = arith.constant 0.000000e+00 : f32
    %31 = vector.broadcast %cst_14 : f32 to vector<8x8xf32>
    %c0_15 = arith.constant 0 : index
    %c0_16 = arith.constant 0 : index
    %c0_17 = arith.constant 0 : index
    %32 = vector.load %arg5[%c0_15, %c0_16, %c0_17] : memref<16x8x18xf32, #tpu.memory_space<vmem>>, vector<1x8x18xf32>
    %33 = vector.shape_cast %32 : vector<1x8x18xf32> to vector<8x18xf32>
    %cst_18 = arith.constant dense<0.000000e+00> : vector<8x64xf32>
    %34 = tpu.matmul %33, %30, %cst_18 {dimension_numbers = #tpu.dot_dimension_numbers<[1], [0], [0], [1], [0, 0, 1, 1], [], []>} : vector<8x18xf32>, vector<18x64xf32>, vector<8x64xf32> -> vector<8x64xf32>
    %c0_19 = arith.constant 0 : index
    %c0_20 = arith.constant 0 : index
    %c0_21 = arith.constant 0 : index
    %35 = vector.load %arg6[%c0_19, %c0_20, %c0_21] : memref<16x64x8xf32, #tpu.memory_space<vmem>>, vector<1x64x8xf32>
    %36 = vector.shape_cast %35 : vector<1x64x8xf32> to vector<64x8xf32>
    %cst_22 = arith.constant dense<0.000000e+00> : vector<8x8xf32>
    %37 = tpu.matmul %34, %36, %cst_22 {dimension_numbers = #tpu.dot_dimension_numbers<[1], [0], [0], [1], [0, 0, 1, 1], [], []>} : vector<8x64xf32>, vector<64x8xf32>, vector<8x8xf32> -> vector<8x8xf32>
    %38 = arith.addf %31, %37 : vector<8x8xf32>
    %c1 = arith.constant 1 : index
    %c0_23 = arith.constant 0 : index
    %c0_24 = arith.constant 0 : index
    %39 = vector.load %arg5[%c1, %c0_23, %c0_24] : memref<16x8x18xf32, #tpu.memory_space<vmem>>, vector<1x8x18xf32>
    %40 = vector.shape_cast %39 : vector<1x8x18xf32> to vector<8x18xf32>
    %cst_25 = arith.constant dense<0.000000e+00> : vector<8x64xf32>
    %41 = tpu.matmul %40, %30, %cst_25 {dimension_numbers = #tpu.dot_dimension_numbers<[1], [0], [0], [1], [0, 0, 1, 1], [], []>} : vector<8x18xf32>, vector<18x64xf32>, vector<8x64xf32> -> vector<8x64xf32>
    %c1_26 = arith.constant 1 : index
    %c0_27 = arith.constant 0 : index
    %c0_28 = arith.constant 0 : index
    %42 = vector.load %arg6[%c1_26, %c0_27, %c0_28] : memref<16x64x8xf32, #tpu.memory_space<vmem>>, vector<1x64x8xf32>
    %43 = vector.shape_cast %42 : vector<1x64x8xf32> to vector<64x8xf32>
    %cst_29 = arith.constant dense<0.000000e+00> : vector<8x8xf32>
    %44 = tpu.matmul %41, %43, %cst_29 {dimension_numbers = #tpu.dot_dimension_numbers<[1], [0], [0], [1], [0, 0, 1, 1], [], []>} : vector<8x64xf32>, vector<64x8xf32>, vector<8x8xf32> -> vector<8x8xf32>
    %45 = arith.addf %38, %44 : vector<8x8xf32>
    %c2 = arith.constant 2 : index
    %c0_30 = arith.constant 0 : index
    %c0_31 = arith.constant 0 : index
    %46 = vector.load %arg5[%c2, %c0_30, %c0_31] : memref<16x8x18xf32, #tpu.memory_space<vmem>>, vector<1x8x18xf32>
    %47 = vector.shape_cast %46 : vector<1x8x18xf32> to vector<8x18xf32>
    %cst_32 = arith.constant dense<0.000000e+00> : vector<8x64xf32>
    %48 = tpu.matmul %47, %30, %cst_32 {dimension_numbers = #tpu.dot_dimension_numbers<[1], [0], [0], [1], [0, 0, 1, 1], [], []>} : vector<8x18xf32>, vector<18x64xf32>, vector<8x64xf32> -> vector<8x64xf32>
    %c2_33 = arith.constant 2 : index
    %c0_34 = arith.constant 0 : index
    %c0_35 = arith.constant 0 : index
    %49 = vector.load %arg6[%c2_33, %c0_34, %c0_35] : memref<16x64x8xf32, #tpu.memory_space<vmem>>, vector<1x64x8xf32>
    %50 = vector.shape_cast %49 : vector<1x64x8xf32> to vector<64x8xf32>
    %cst_36 = arith.constant dense<0.000000e+00> : vector<8x8xf32>
    %51 = tpu.matmul %48, %50, %cst_36 {dimension_numbers = #tpu.dot_dimension_numbers<[1], [0], [0], [1], [0, 0, 1, 1], [], []>} : vector<8x64xf32>, vector<64x8xf32>, vector<8x8xf32> -> vector<8x8xf32>
    %52 = arith.addf %45, %51 : vector<8x8xf32>
    %c3 = arith.constant 3 : index
    %c0_37 = arith.constant 0 : index
    %c0_38 = arith.constant 0 : index
    %53 = vector.load %arg5[%c3, %c0_37, %c0_38] : memref<16x8x18xf32, #tpu.memory_space<vmem>>, vector<1x8x18xf32>
    %54 = vector.shape_cast %53 : vector<1x8x18xf32> to vector<8x18xf32>
    %cst_39 = arith.constant dense<0.000000e+00> : vector<8x64xf32>
    %55 = tpu.matmul %54, %30, %cst_39 {dimension_numbers = #tpu.dot_dimension_numbers<[1], [0], [0], [1], [0, 0, 1, 1], [], []>} : vector<8x18xf32>, vector<18x64xf32>, vector<8x64xf32> -> vector<8x64xf32>
    %c3_40 = arith.constant 3 : index
    %c0_41 = arith.constant 0 : index
    %c0_42 = arith.constant 0 : index
    %56 = vector.load %arg6[%c3_40, %c0_41, %c0_42] : memref<16x64x8xf32, #tpu.memory_space<vmem>>, vector<1x64x8xf32>
    %57 = vector.shape_cast %56 : vector<1x64x8xf32> to vector<64x8xf32>
    %cst_43 = arith.constant dense<0.000000e+00> : vector<8x8xf32>
    %58 = tpu.matmul %55, %57, %cst_43 {dimension_numbers = #tpu.dot_dimension_numbers<[1], [0], [0], [1], [0, 0, 1, 1], [], []>} : vector<8x64xf32>, vector<64x8xf32>, vector<8x8xf32> -> vector<8x8xf32>
    %59 = arith.addf %52, %58 : vector<8x8xf32>
    %c4 = arith.constant 4 : index
    %c0_44 = arith.constant 0 : index
    %c0_45 = arith.constant 0 : index
    %60 = vector.load %arg5[%c4, %c0_44, %c0_45] : memref<16x8x18xf32, #tpu.memory_space<vmem>>, vector<1x8x18xf32>
    %61 = vector.shape_cast %60 : vector<1x8x18xf32> to vector<8x18xf32>
    %cst_46 = arith.constant dense<0.000000e+00> : vector<8x64xf32>
    %62 = tpu.matmul %61, %30, %cst_46 {dimension_numbers = #tpu.dot_dimension_numbers<[1], [0], [0], [1], [0, 0, 1, 1], [], []>} : vector<8x18xf32>, vector<18x64xf32>, vector<8x64xf32> -> vector<8x64xf32>
    %c4_47 = arith.constant 4 : index
    %c0_48 = arith.constant 0 : index
    %c0_49 = arith.constant 0 : index
    %63 = vector.load %arg6[%c4_47, %c0_48, %c0_49] : memref<16x64x8xf32, #tpu.memory_space<vmem>>, vector<1x64x8xf32>
    %64 = vector.shape_cast %63 : vector<1x64x8xf32> to vector<64x8xf32>
    %cst_50 = arith.constant dense<0.000000e+00> : vector<8x8xf32>
    %65 = tpu.matmul %62, %64, %cst_50 {dimension_numbers = #tpu.dot_dimension_numbers<[1], [0], [0], [1], [0, 0, 1, 1], [], []>} : vector<8x64xf32>, vector<64x8xf32>, vector<8x8xf32> -> vector<8x8xf32>
    %66 = arith.addf %59, %65 : vector<8x8xf32>
    %c5 = arith.constant 5 : index
    %c0_51 = arith.constant 0 : index
    %c0_52 = arith.constant 0 : index
    %67 = vector.load %arg5[%c5, %c0_51, %c0_52] : memref<16x8x18xf32, #tpu.memory_space<vmem>>, vector<1x8x18xf32>
    %68 = vector.shape_cast %67 : vector<1x8x18xf32> to vector<8x18xf32>
    %cst_53 = arith.constant dense<0.000000e+00> : vector<8x64xf32>
    %69 = tpu.matmul %68, %30, %cst_53 {dimension_numbers = #tpu.dot_dimension_numbers<[1], [0], [0], [1], [0, 0, 1, 1], [], []>} : vector<8x18xf32>, vector<18x64xf32>, vector<8x64xf32> -> vector<8x64xf32>
    %c5_54 = arith.constant 5 : index
    %c0_55 = arith.constant 0 : index
    %c0_56 = arith.constant 0 : index
    %70 = vector.load %arg6[%c5_54, %c0_55, %c0_56] : memref<16x64x8xf32, #tpu.memory_space<vmem>>, vector<1x64x8xf32>
    %71 = vector.shape_cast %70 : vector<1x64x8xf32> to vector<64x8xf32>
    %cst_57 = arith.constant dense<0.000000e+00> : vector<8x8xf32>
    %72 = tpu.matmul %69, %71, %cst_57 {dimension_numbers = #tpu.dot_dimension_numbers<[1], [0], [0], [1], [0, 0, 1, 1], [], []>} : vector<8x64xf32>, vector<64x8xf32>, vector<8x8xf32> -> vector<8x8xf32>
    %73 = arith.addf %66, %72 : vector<8x8xf32>
    %c6 = arith.constant 6 : index
    %c0_58 = arith.constant 0 : index
    %c0_59 = arith.constant 0 : index
    %74 = vector.load %arg5[%c6, %c0_58, %c0_59] : memref<16x8x18xf32, #tpu.memory_space<vmem>>, vector<1x8x18xf32>
    %75 = vector.shape_cast %74 : vector<1x8x18xf32> to vector<8x18xf32>
    %cst_60 = arith.constant dense<0.000000e+00> : vector<8x64xf32>
    %76 = tpu.matmul %75, %30, %cst_60 {dimension_numbers = #tpu.dot_dimension_numbers<[1], [0], [0], [1], [0, 0, 1, 1], [], []>} : vector<8x18xf32>, vector<18x64xf32>, vector<8x64xf32> -> vector<8x64xf32>
    %c6_61 = arith.constant 6 : index
    %c0_62 = arith.constant 0 : index
    %c0_63 = arith.constant 0 : index
    %77 = vector.load %arg6[%c6_61, %c0_62, %c0_63] : memref<16x64x8xf32, #tpu.memory_space<vmem>>, vector<1x64x8xf32>
    %78 = vector.shape_cast %77 : vector<1x64x8xf32> to vector<64x8xf32>
    %cst_64 = arith.constant dense<0.000000e+00> : vector<8x8xf32>
    %79 = tpu.matmul %76, %78, %cst_64 {dimension_numbers = #tpu.dot_dimension_numbers<[1], [0], [0], [1], [0, 0, 1, 1], [], []>} : vector<8x64xf32>, vector<64x8xf32>, vector<8x8xf32> -> vector<8x8xf32>
    %80 = arith.addf %73, %79 : vector<8x8xf32>
    %c7 = arith.constant 7 : index
    %c0_65 = arith.constant 0 : index
    %c0_66 = arith.constant 0 : index
    %81 = vector.load %arg5[%c7, %c0_65, %c0_66] : memref<16x8x18xf32, #tpu.memory_space<vmem>>, vector<1x8x18xf32>
    %82 = vector.shape_cast %81 : vector<1x8x18xf32> to vector<8x18xf32>
    %cst_67 = arith.constant dense<0.000000e+00> : vector<8x64xf32>
    %83 = tpu.matmul %82, %30, %cst_67 {dimension_numbers = #tpu.dot_dimension_numbers<[1], [0], [0], [1], [0, 0, 1, 1], [], []>} : vector<8x18xf32>, vector<18x64xf32>, vector<8x64xf32> -> vector<8x64xf32>
    %c7_68 = arith.constant 7 : index
    %c0_69 = arith.constant 0 : index
    %c0_70 = arith.constant 0 : index
    %84 = vector.load %arg6[%c7_68, %c0_69, %c0_70] : memref<16x64x8xf32, #tpu.memory_space<vmem>>, vector<1x64x8xf32>
    %85 = vector.shape_cast %84 : vector<1x64x8xf32> to vector<64x8xf32>
    %cst_71 = arith.constant dense<0.000000e+00> : vector<8x8xf32>
    %86 = tpu.matmul %83, %85, %cst_71 {dimension_numbers = #tpu.dot_dimension_numbers<[1], [0], [0], [1], [0, 0, 1, 1], [], []>} : vector<8x64xf32>, vector<64x8xf32>, vector<8x8xf32> -> vector<8x8xf32>
    %87 = arith.addf %80, %86 : vector<8x8xf32>
    %c8 = arith.constant 8 : index
    %c0_72 = arith.constant 0 : index
    %c0_73 = arith.constant 0 : index
    %88 = vector.load %arg5[%c8, %c0_72, %c0_73] : memref<16x8x18xf32, #tpu.memory_space<vmem>>, vector<1x8x18xf32>
    %89 = vector.shape_cast %88 : vector<1x8x18xf32> to vector<8x18xf32>
    %cst_74 = arith.constant dense<0.000000e+00> : vector<8x64xf32>
    %90 = tpu.matmul %89, %30, %cst_74 {dimension_numbers = #tpu.dot_dimension_numbers<[1], [0], [0], [1], [0, 0, 1, 1], [], []>} : vector<8x18xf32>, vector<18x64xf32>, vector<8x64xf32> -> vector<8x64xf32>
    %c8_75 = arith.constant 8 : index
    %c0_76 = arith.constant 0 : index
    %c0_77 = arith.constant 0 : index
    %91 = vector.load %arg6[%c8_75, %c0_76, %c0_77] : memref<16x64x8xf32, #tpu.memory_space<vmem>>, vector<1x64x8xf32>
    %92 = vector.shape_cast %91 : vector<1x64x8xf32> to vector<64x8xf32>
    %cst_78 = arith.constant dense<0.000000e+00> : vector<8x8xf32>
    %93 = tpu.matmul %90, %92, %cst_78 {dimension_numbers = #tpu.dot_dimension_numbers<[1], [0], [0], [1], [0, 0, 1, 1], [], []>} : vector<8x64xf32>, vector<64x8xf32>, vector<8x8xf32> -> vector<8x8xf32>
    %94 = arith.addf %87, %93 : vector<8x8xf32>
    %c9 = arith.constant 9 : index
    %c0_79 = arith.constant 0 : index
    %c0_80 = arith.constant 0 : index
    %95 = vector.load %arg5[%c9, %c0_79, %c0_80] : memref<16x8x18xf32, #tpu.memory_space<vmem>>, vector<1x8x18xf32>
    %96 = vector.shape_cast %95 : vector<1x8x18xf32> to vector<8x18xf32>
    %cst_81 = arith.constant dense<0.000000e+00> : vector<8x64xf32>
    %97 = tpu.matmul %96, %30, %cst_81 {dimension_numbers = #tpu.dot_dimension_numbers<[1], [0], [0], [1], [0, 0, 1, 1], [], []>} : vector<8x18xf32>, vector<18x64xf32>, vector<8x64xf32> -> vector<8x64xf32>
    %c9_82 = arith.constant 9 : index
    %c0_83 = arith.constant 0 : index
    %c0_84 = arith.constant 0 : index
    %98 = vector.load %arg6[%c9_82, %c0_83, %c0_84] : memref<16x64x8xf32, #tpu.memory_space<vmem>>, vector<1x64x8xf32>
    %99 = vector.shape_cast %98 : vector<1x64x8xf32> to vector<64x8xf32>
    %cst_85 = arith.constant dense<0.000000e+00> : vector<8x8xf32>
    %100 = tpu.matmul %97, %99, %cst_85 {dimension_numbers = #tpu.dot_dimension_numbers<[1], [0], [0], [1], [0, 0, 1, 1], [], []>} : vector<8x64xf32>, vector<64x8xf32>, vector<8x8xf32> -> vector<8x8xf32>
    %101 = arith.addf %94, %100 : vector<8x8xf32>
    %c10 = arith.constant 10 : index
    %c0_86 = arith.constant 0 : index
    %c0_87 = arith.constant 0 : index
    %102 = vector.load %arg5[%c10, %c0_86, %c0_87] : memref<16x8x18xf32, #tpu.memory_space<vmem>>, vector<1x8x18xf32>
    %103 = vector.shape_cast %102 : vector<1x8x18xf32> to vector<8x18xf32>
    %cst_88 = arith.constant dense<0.000000e+00> : vector<8x64xf32>
    %104 = tpu.matmul %103, %30, %cst_88 {dimension_numbers = #tpu.dot_dimension_numbers<[1], [0], [0], [1], [0, 0, 1, 1], [], []>} : vector<8x18xf32>, vector<18x64xf32>, vector<8x64xf32> -> vector<8x64xf32>
    %c10_89 = arith.constant 10 : index
    %c0_90 = arith.constant 0 : index
    %c0_91 = arith.constant 0 : index
    %105 = vector.load %arg6[%c10_89, %c0_90, %c0_91] : memref<16x64x8xf32, #tpu.memory_space<vmem>>, vector<1x64x8xf32>
    %106 = vector.shape_cast %105 : vector<1x64x8xf32> to vector<64x8xf32>
    %cst_92 = arith.constant dense<0.000000e+00> : vector<8x8xf32>
    %107 = tpu.matmul %104, %106, %cst_92 {dimension_numbers = #tpu.dot_dimension_numbers<[1], [0], [0], [1], [0, 0, 1, 1], [], []>} : vector<8x64xf32>, vector<64x8xf32>, vector<8x8xf32> -> vector<8x8xf32>
    %108 = arith.addf %101, %107 : vector<8x8xf32>
    %c11 = arith.constant 11 : index
    %c0_93 = arith.constant 0 : index
    %c0_94 = arith.constant 0 : index
    %109 = vector.load %arg5[%c11, %c0_93, %c0_94] : memref<16x8x18xf32, #tpu.memory_space<vmem>>, vector<1x8x18xf32>
    %110 = vector.shape_cast %109 : vector<1x8x18xf32> to vector<8x18xf32>
    %cst_95 = arith.constant dense<0.000000e+00> : vector<8x64xf32>
    %111 = tpu.matmul %110, %30, %cst_95 {dimension_numbers = #tpu.dot_dimension_numbers<[1], [0], [0], [1], [0, 0, 1, 1], [], []>} : vector<8x18xf32>, vector<18x64xf32>, vector<8x64xf32> -> vector<8x64xf32>
    %c11_96 = arith.constant 11 : index
    %c0_97 = arith.constant 0 : index
    %c0_98 = arith.constant 0 : index
    %112 = vector.load %arg6[%c11_96, %c0_97, %c0_98] : memref<16x64x8xf32, #tpu.memory_space<vmem>>, vector<1x64x8xf32>
    %113 = vector.shape_cast %112 : vector<1x64x8xf32> to vector<64x8xf32>
    %cst_99 = arith.constant dense<0.000000e+00> : vector<8x8xf32>
    %114 = tpu.matmul %111, %113, %cst_99 {dimension_numbers = #tpu.dot_dimension_numbers<[1], [0], [0], [1], [0, 0, 1, 1], [], []>} : vector<8x64xf32>, vector<64x8xf32>, vector<8x8xf32> -> vector<8x8xf32>
    %115 = arith.addf %108, %114 : vector<8x8xf32>
    %c12 = arith.constant 12 : index
    %c0_100 = arith.constant 0 : index
    %c0_101 = arith.constant 0 : index
    %116 = vector.load %arg5[%c12, %c0_100, %c0_101] : memref<16x8x18xf32, #tpu.memory_space<vmem>>, vector<1x8x18xf32>
    %117 = vector.shape_cast %116 : vector<1x8x18xf32> to vector<8x18xf32>
    %cst_102 = arith.constant dense<0.000000e+00> : vector<8x64xf32>
    %118 = tpu.matmul %117, %30, %cst_102 {dimension_numbers = #tpu.dot_dimension_numbers<[1], [0], [0], [1], [0, 0, 1, 1], [], []>} : vector<8x18xf32>, vector<18x64xf32>, vector<8x64xf32> -> vector<8x64xf32>
    %c12_103 = arith.constant 12 : index
    %c0_104 = arith.constant 0 : index
    %c0_105 = arith.constant 0 : index
    %119 = vector.load %arg6[%c12_103, %c0_104, %c0_105] : memref<16x64x8xf32, #tpu.memory_space<vmem>>, vector<1x64x8xf32>
    %120 = vector.shape_cast %119 : vector<1x64x8xf32> to vector<64x8xf32>
    %cst_106 = arith.constant dense<0.000000e+00> : vector<8x8xf32>
    %121 = tpu.matmul %118, %120, %cst_106 {dimension_numbers = #tpu.dot_dimension_numbers<[1], [0], [0], [1], [0, 0, 1, 1], [], []>} : vector<8x64xf32>, vector<64x8xf32>, vector<8x8xf32> -> vector<8x8xf32>
    %122 = arith.addf %115, %121 : vector<8x8xf32>
    %c13 = arith.constant 13 : index
    %c0_107 = arith.constant 0 : index
    %c0_108 = arith.constant 0 : index
    %123 = vector.load %arg5[%c13, %c0_107, %c0_108] : memref<16x8x18xf32, #tpu.memory_space<vmem>>, vector<1x8x18xf32>
    %124 = vector.shape_cast %123 : vector<1x8x18xf32> to vector<8x18xf32>
    %cst_109 = arith.constant dense<0.000000e+00> : vector<8x64xf32>
    %125 = tpu.matmul %124, %30, %cst_109 {dimension_numbers = #tpu.dot_dimension_numbers<[1], [0], [0], [1], [0, 0, 1, 1], [], []>} : vector<8x18xf32>, vector<18x64xf32>, vector<8x64xf32> -> vector<8x64xf32>
    %c13_110 = arith.constant 13 : index
    %c0_111 = arith.constant 0 : index
    %c0_112 = arith.constant 0 : index
    %126 = vector.load %arg6[%c13_110, %c0_111, %c0_112] : memref<16x64x8xf32, #tpu.memory_space<vmem>>, vector<1x64x8xf32>
    %127 = vector.shape_cast %126 : vector<1x64x8xf32> to vector<64x8xf32>
    %cst_113 = arith.constant dense<0.000000e+00> : vector<8x8xf32>
    %128 = tpu.matmul %125, %127, %cst_113 {dimension_numbers = #tpu.dot_dimension_numbers<[1], [0], [0], [1], [0, 0, 1, 1], [], []>} : vector<8x64xf32>, vector<64x8xf32>, vector<8x8xf32> -> vector<8x8xf32>
    %129 = arith.addf %122, %128 : vector<8x8xf32>
    %c14 = arith.constant 14 : index
    %c0_114 = arith.constant 0 : index
    %c0_115 = arith.constant 0 : index
    %130 = vector.load %arg5[%c14, %c0_114, %c0_115] : memref<16x8x18xf32, #tpu.memory_space<vmem>>, vector<1x8x18xf32>
    %131 = vector.shape_cast %130 : vector<1x8x18xf32> to vector<8x18xf32>
    %cst_116 = arith.constant dense<0.000000e+00> : vector<8x64xf32>
    %132 = tpu.matmul %131, %30, %cst_116 {dimension_numbers = #tpu.dot_dimension_numbers<[1], [0], [0], [1], [0, 0, 1, 1], [], []>} : vector<8x18xf32>, vector<18x64xf32>, vector<8x64xf32> -> vector<8x64xf32>
    %c14_117 = arith.constant 14 : index
    %c0_118 = arith.constant 0 : index
    %c0_119 = arith.constant 0 : index
    %133 = vector.load %arg6[%c14_117, %c0_118, %c0_119] : memref<16x64x8xf32, #tpu.memory_space<vmem>>, vector<1x64x8xf32>
    %134 = vector.shape_cast %133 : vector<1x64x8xf32> to vector<64x8xf32>
    %cst_120 = arith.constant dense<0.000000e+00> : vector<8x8xf32>
    %135 = tpu.matmul %132, %134, %cst_120 {dimension_numbers = #tpu.dot_dimension_numbers<[1], [0], [0], [1], [0, 0, 1, 1], [], []>} : vector<8x64xf32>, vector<64x8xf32>, vector<8x8xf32> -> vector<8x8xf32>
    %136 = arith.addf %129, %135 : vector<8x8xf32>
    %c15 = arith.constant 15 : index
    %c0_121 = arith.constant 0 : index
    %c0_122 = arith.constant 0 : index
    %137 = vector.load %arg5[%c15, %c0_121, %c0_122] : memref<16x8x18xf32, #tpu.memory_space<vmem>>, vector<1x8x18xf32>
    %138 = vector.shape_cast %137 : vector<1x8x18xf32> to vector<8x18xf32>
    %cst_123 = arith.constant dense<0.000000e+00> : vector<8x64xf32>
    %139 = tpu.matmul %138, %30, %cst_123 {dimension_numbers = #tpu.dot_dimension_numbers<[1], [0], [0], [1], [0, 0, 1, 1], [], []>} : vector<8x18xf32>, vector<18x64xf32>, vector<8x64xf32> -> vector<8x64xf32>
    %c15_124 = arith.constant 15 : index
    %c0_125 = arith.constant 0 : index
    %c0_126 = arith.constant 0 : index
    %140 = vector.load %arg6[%c15_124, %c0_125, %c0_126] : memref<16x64x8xf32, #tpu.memory_space<vmem>>, vector<1x64x8xf32>
    %141 = vector.shape_cast %140 : vector<1x64x8xf32> to vector<64x8xf32>
    %cst_127 = arith.constant dense<0.000000e+00> : vector<8x8xf32>
    %142 = tpu.matmul %139, %141, %cst_127 {dimension_numbers = #tpu.dot_dimension_numbers<[1], [0], [0], [1], [0, 0, 1, 1], [], []>} : vector<8x64xf32>, vector<64x8xf32>, vector<8x8xf32> -> vector<8x8xf32>
    %143 = arith.addf %136, %142 : vector<8x8xf32>
    %c0_128 = arith.constant 0 : index
    %c0_129 = arith.constant 0 : index
    %144 = vector.load %arg7[%c0_128, %c0_129] : memref<1x8xf32, #tpu.memory_space<vmem>>, vector<1x8xf32>
    %145 = vector.broadcast %144 : vector<1x8xf32> to vector<8x8xf32>
    %146 = arith.addf %143, %145 : vector<8x8xf32>
    %147 = math.tanh %146 : vector<8x8xf32>
    %c0_130 = arith.constant 0 : index
    %c0_131 = arith.constant 0 : index
    %148 = vector.load %arg8[%c0_130, %c0_131] : memref<8x8xf32, #tpu.memory_space<vmem>>, vector<8x8xf32>
    tpu.vector_store %arg8[%c0_130, %c0_131], %147 {strides = array<i32>} : memref<8x8xf32, #tpu.memory_space<vmem>>, vector<8x8xf32>,
    return
  }
  func.func @transform_0(%arg0: i32) -> (i32, i32) {
    %c0_i32 = arith.constant 0 : i32
    %c0_i32_0 = arith.constant 0 : i32
    %c0_i32_1 = arith.constant 0 : i32
    return %c0_i32, %c0_i32_0 : i32, i32
  }
  func.func @transform_1(%arg0: i32) -> (i32, i32) {
    %c0_i32 = arith.constant 0 : i32
    %c0_i32_0 = arith.constant 0 : i32
    %c0_i32_1 = arith.constant 0 : i32
    return %c0_i32, %c0_i32_0 : i32, i32
  }
  func.func @transform_2(%arg0: i32) -> (i32, i32) {
    %c0_i32 = arith.constant 0 : i32
    %c0_i32_0 = arith.constant 0 : i32
    %c0_i32_1 = arith.constant 0 : i32
    return %c0_i32, %c0_i32_0 : i32, i32
  }
  func.func @transform_3(%arg0: i32) -> (i32, i32) {
    %c0_i32 = arith.constant 0 : i32
    %c0_i32_0 = arith.constant 0 : i32
    %c0_i32_1 = arith.constant 0 : i32
    return %c0_i32, %c0_i32_0 : i32, i32
  }
  func.func @transform_4(%arg0: i32) -> (i32, i32, i32) {
    %c0_i32 = arith.constant 0 : i32
    %c0_i32_0 = arith.constant 0 : i32
    %c0_i32_1 = arith.constant 0 : i32
    %c0_i32_2 = arith.constant 0 : i32
    return %c0_i32, %c0_i32_0, %c0_i32_1 : i32, i32, i32
  }
  func.func @transform_5(%arg0: i32) -> (i32, i32, i32) {
    %c0_i32 = arith.constant 0 : i32
    %c0_i32_0 = arith.constant 0 : i32
    %c0_i32_1 = arith.constant 0 : i32
    %c0_i32_2 = arith.constant 0 : i32
    return %c0_i32, %c0_i32_0, %c0_i32_1 : i32, i32, i32
  }
  func.func @transform_6(%arg0: i32) -> (i32, i32) {
    %c0_i32 = arith.constant 0 : i32
    %c0_i32_0 = arith.constant 0 : i32
    %c0_i32_1 = arith.constant 0 : i32
    return %c0_i32, %c0_i32_0 : i32, i32
  }
  func.func @transform_7(%arg0: i32) -> (i32, i32) {
    %c0_i32 = arith.constant 0 : i32
    %c0_i32_0 = arith.constant 0 : i32
    %c0_i32_1 = arith.constant 0 : i32
    return %c0_i32, %c0_i32_0 : i32, i32
  }
}

</mosaic_0001>

<llo_original>
// kernel: nlayer_discriminator.6
$region0: #{nlayer_discriminator.6}
  #allocation0 [shape = 'u32[]', space=smem, size = 0x4, offset = 0x4, fixed_abs, tag = 'smem constant byte address 0x4 - core index']
  #allocation1 [shape = 'u32[72,128]{1,0:T(1,128)}', space=vmem, size = 0x9000, scoped, tag = 'internal scratch']
  %s0 = inlined_call_operand.vmem [shape: f32[512,48], index: 0, kind: input, shape index: {}]
  %s1 = inlined_call_operand.vmem [shape: f32[48,8], index: 1, kind: input, shape index: {}]
  %s2 = inlined_call_operand.vmem [shape: f32[1,8], index: 2, kind: input, shape index: {}]
  %s3 = inlined_call_operand.vmem [shape: f32[512,8], index: 3, kind: output, shape index: {}]
  %s4 = sld [smem:[#allocation0]]
  $region22: #{nlayer_discriminator.6} parent=0
    _
  %s6 = ssub.s32 1, %s4
  %s7 = scalar_select 0, %s6, %s4
  // Predicated region
  $region2: #{nlayer_discriminator.6} parent=0 // pred_check
    _
  $region3: #{nlayer_discriminator.6} parent=0 // pred_check_branch
    %9 = sbr.rel (0) target = $region5
  $region4: #{nlayer_discriminator.6} parent=0 // pred_region
    _
  $region5: #{nlayer_discriminator.6} parent=0 // pred_fallthru
    _
  // Predicated region
  $region6: #{nlayer_discriminator.6} parent=0 // pred_check
    _
  $region7: #{nlayer_discriminator.6} parent=0 // pred_check_branch
    %11 = sbr.rel (0) target = $region9
  $region8: #{nlayer_discriminator.6} parent=0 // pred_region
    _
  $region9: #{nlayer_discriminator.6} parent=0 // pred_fallthru
    _
  // Predicated region
  $region10: #{nlayer_discriminator.6} parent=0 // pred_check
    _
  $region11: #{nlayer_discriminator.6} parent=0 // pred_check_branch
    %13 = sbr.rel (0) target = $region13
  $region12: #{nlayer_discriminator.6} parent=0 // pred_region
    _
  $region13: #{nlayer_discriminator.6} parent=0 // pred_fallthru
    _
  %v14 = vld [vmem:[%s0] sm:$0xff]
  %v15 = vld [vmem:[%s0 + $0x8] sm:$0xff]
  %v16 = vld [vmem:[%s0 + $0x10] sm:$0xff]
  %v17 = vld [vmem:[%s0 + $0x18] sm:$0xff]
  %v18 = vld [vmem:[%s0 + $0x20] sm:$0xff]
  %v19 = vld [vmem:[%s0 + $0x28] sm:$0xff]
  %v20 = vld [vmem:[%s0 + $0x30] sm:$0xff]
  %v21 = vld [vmem:[%s0 + $0x38] sm:$0xff]
  %v22 = vld [vmem:[%s0 + $0x40] sm:$0xff]
  %v23 = vld [vmem:[%s0 + $0x48] sm:$0xff]
  %v24 = vld [vmem:[%s0 + $0x50] sm:$0xff]
  %v25 = vld [vmem:[%s0 + $0x58] sm:$0xff]
  %v26 = vld [vmem:[%s0 + $0x60] sm:$0xff]
  %v27 = vld [vmem:[%s0 + $0x68] sm:$0xff]
  %v28 = vld [vmem:[%s0 + $0x70] sm:$0xff]
  %v29 = vld [vmem:[%s0 + $0x78] sm:$0xff]
  %v30 = vld [vmem:[%s0 + $0x80] sm:$0xff]
  %v31 = vld [vmem:[%s0 + $0x88] sm:$0xff]
  %v32 = vld [vmem:[%s0 + $0x90] sm:$0xff]
  %v33 = vld [vmem:[%s0 + $0x98] sm:$0xff]
  %v34 = vld [vmem:[%s0 + $0xa0] sm:$0xff]
  %v35 = vld [vmem:[%s0 + $0xa8] sm:$0xff]
  %v36 = vld [vmem:[%s0 + $0xb0] sm:$0xff]
  %v37 = vld [vmem:[%s0 + $0xb8] sm:$0xff]
  %v38 = vld [vmem:[%s0 + $0xc0] sm:$0xff]
  %v39 = vld [vmem:[%s0 + $0xc8] sm:$0xff]
  %v40 = vld [vmem:[%s0 + $0xd0] sm:$0xff]
  %v41 = vld [vmem:[%s0 + $0xd8] sm:$0xff]
  %v42 = vld [vmem:[%s0 + $0xe0] sm:$0xff]
  %v43 = vld [vmem:[%s0 + $0xe8] sm:$0xff]
  %v44 = vld [vmem:[%s0 + $0xf0] sm:$0xff]
  %v45 = vld [vmem:[%s0 + $0xf8] sm:$0xff]
  %v46 = vld [vmem:[%s0 + $0x100] sm:$0xff]
  %v47 = vld [vmem:[%s0 + $0x108] sm:$0xff]
  %v48 = vld [vmem:[%s0 + $0x110] sm:$0xff]
  %v49 = vld [vmem:[%s0 + $0x118] sm:$0xff]
  %v50 = vld [vmem:[%s0 + $0x120] sm:$0xff]
  %v51 = vld [vmem:[%s0 + $0x128] sm:$0xff]
  %v52 = vld [vmem:[%s0 + $0x130] sm:$0xff]
  %v53 = vld [vmem:[%s0 + $0x138] sm:$0xff]
  %v54 = vld [vmem:[%s0 + $0x140] sm:$0xff]
  %v55 = vld [vmem:[%s0 + $0x148] sm:$0xff]
  %v56 = vld [vmem:[%s0 + $0x150] sm:$0xff]
  %v57 = vld [vmem:[%s0 + $0x158] sm:$0xff]
  %v58 = vld [vmem:[%s0 + $0x160] sm:$0xff]
  %v59 = vld [vmem:[%s0 + $0x168] sm:$0xff]
  %v60 = vld [vmem:[%s0 + $0x170] sm:$0xff]
  %v61 = vld [vmem:[%s0 + $0x178] sm:$0xff]
  %v62 = vld [vmem:[%s0 + $0x180] sm:$0xff]
  %v63 = vld [vmem:[%s0 + $0x188] sm:$0xff]
  %v64 = vld [vmem:[%s0 + $0x190] sm:$0xff]
  %v65 = vld [vmem:[%s0 + $0x198] sm:$0xff]
  %v66 = vld [vmem:[%s0 + $0x1a0] sm:$0xff]
  %v67 = vld [vmem:[%s0 + $0x1a8] sm:$0xff]
  %v68 = vld [vmem:[%s0 + $0x1b0] sm:$0xff]
  %v69 = vld [vmem:[%s0 + $0x1b8] sm:$0xff]
  %v70 = vld [vmem:[%s0 + $0x1c0] sm:$0xff]
  %v71 = vld [vmem:[%s0 + $0x1c8] sm:$0xff]
  %v72 = vld [vmem:[%s0 + $0x1d0] sm:$0xff]
  %v73 = vld [vmem:[%s0 + $0x1d8] sm:$0xff]
  %v74 = vld [vmem:[%s0 + $0x1e0] sm:$0xff]
  %v75 = vld [vmem:[%s0 + $0x1e8] sm:$0xff]
  %v76 = vld [vmem:[%s0 + $0x1f0] sm:$0xff]
  %v77 = vld [vmem:[%s0 + $0x1f8] sm:$0xff]
  %v78 = vld [vmem:[%s1] sm:$0xff]
  %v79 = vld [vmem:[%s1 + $0x8] sm:$0xff]
  %v80 = vld [vmem:[%s1 + $0x10] sm:$0xff]
  %v81 = vld [vmem:[%s1 + $0x18] sm:$0xff]
  %v82 = vld [vmem:[%s1 + $0x20] sm:$0xff]
  %v83 = vld [vmem:[%s1 + $0x28] sm:$0xff]
  %v84 = vld [vmem:[%s2] sm:$0x1]
  %v86 = vperm.slane %v84, 0
  %vm88 = vcmask 392192
  %v90 = vsel %vm88, %v14, 0
  %v93 = vsel %vm88, %v15, 0
  %v96 = vsel %vm88, %v16, 0
  %v99 = vsel %vm88, %v17, 0
  %v102 = vsel %vm88, %v18, 0
  %v105 = vsel %vm88, %v19, 0
  %v108 = vsel %vm88, %v20, 0
  %v111 = vsel %vm88, %v21, 0
  %v114 = vsel %vm88, %v22, 0
  %v117 = vsel %vm88, %v23, 0
  %v120 = vsel %vm88, %v24, 0
  %v123 = vsel %vm88, %v25, 0
  %v126 = vsel %vm88, %v26, 0
  %v129 = vsel %vm88, %v27, 0
  %v132 = vsel %vm88, %v28, 0
  %v135 = vsel %vm88, %v29, 0
  %v138 = vsel %vm88, %v30, 0
  %v141 = vsel %vm88, %v31, 0
  %v144 = vsel %vm88, %v32, 0
  %v147 = vsel %vm88, %v33, 0
  %v150 = vsel %vm88, %v34, 0
  %v153 = vsel %vm88, %v35, 0
  %v156 = vsel %vm88, %v36, 0
  %v159 = vsel %vm88, %v37, 0
  %v162 = vsel %vm88, %v38, 0
  %v165 = vsel %vm88, %v39, 0
  %v168 = vsel %vm88, %v40, 0
  %v171 = vsel %vm88, %v41, 0
  %v174 = vsel %vm88, %v42, 0
  %v177 = vsel %vm88, %v43, 0
  %v180 = vsel %vm88, %v44, 0
  %v183 = vsel %vm88, %v45, 0
  %v186 = vsel %vm88, %v46, 0
  %v189 = vsel %vm88, %v47, 0
  %v192 = vsel %vm88, %v48, 0
  %v195 = vsel %vm88, %v49, 0
  %v198 = vsel %vm88, %v50, 0
  %v201 = vsel %vm88, %v51, 0
  %v204 = vsel %vm88, %v52, 0
  %v207 = vsel %vm88, %v53, 0
  %v210 = vsel %vm88, %v54, 0
  %v213 = vsel %vm88, %v55, 0
  %v216 = vsel %vm88, %v56, 0
  %v219 = vsel %vm88, %v57, 0
  %v222 = vsel %vm88, %v58, 0
  %v225 = vsel %vm88, %v59, 0
  %v228 = vsel %vm88, %v60, 0
  %v231 = vsel %vm88, %v61, 0
  %v234 = vsel %vm88, %v62, 0
  %v237 = vsel %vm88, %v63, 0
  %v240 = vsel %vm88, %v64, 0
  %v243 = vsel %vm88, %v65, 0
  %v246 = vsel %vm88, %v66, 0
  %v249 = vsel %vm88, %v67, 0
  %v252 = vsel %vm88, %v68, 0
  %v255 = vsel %vm88, %v69, 0
  %v258 = vsel %vm88, %v70, 0
  %v261 = vsel %vm88, %v71, 0
  %v264 = vsel %vm88, %v72, 0
  %v267 = vsel %vm88, %v73, 0
  %v270 = vsel %vm88, %v74, 0
  %v273 = vsel %vm88, %v75, 0
  %v276 = vsel %vm88, %v76, 0
  %v279 = vsel %vm88, %v77, 0
  %281 = vmatpush.msra.mxu0 0.0
  %282 = vmatpush.msra.mxu0 0.0
  %283 = vmatpush.msra.mxu0 0.0
  %284 = vmatpush.msra.mxu0 0.0
  %285 = vmatpush.msra.mxu0 0.0
  %286 = vmatpush.msra.mxu0 0.0
  %287 = vmatpush.msra.mxu0 0.0
  %288 = vmatpush.msra.mxu0 0.0
  %289 = vmatpush.msra.mxu0 0.0
  %290 = vmatpush.msra.mxu0 0.0
  %291 = vmatpush.msra.mxu0 %v83
  %292 = vmatpush.msra.mxu0 %v82
  %293 = vmatpush.msra.mxu0 %v81
  %294 = vmatpush.msra.mxu0 %v80
  %295 = vmatpush.msra.mxu0 %v79
  %296 = vmatpush.msra.mxu0 %v78
  %297 = vmatmul.f32.gmra.mxu0 %v90
  %v298 = vpop.f32.mrf.mxu0
  %v299 = vadd.f32 %v86, %v298
  %300 = vmatmul.f32.gmra.mxu0 %v93
  %v301 = vpop.f32.mrf.mxu0
  %v302 = vadd.f32 %v86, %v301
  %303 = vmatmul.f32.gmra.mxu0 %v96
  %v304 = vpop.f32.mrf.mxu0
  %v305 = vadd.f32 %v86, %v304
  %306 = vmatmul.f32.gmra.mxu0 %v99
  %v307 = vpop.f32.mrf.mxu0
  %v308 = vadd.f32 %v86, %v307
  %309 = vmatmul.f32.gmra.mxu0 %v102
  %v310 = vpop.f32.mrf.mxu0
  %v311 = vadd.f32 %v86, %v310
  %312 = vmatmul.f32.gmra.mxu0 %v105
  %v313 = vpop.f32.mrf.mxu0
  %v314 = vadd.f32 %v86, %v313
  %315 = vmatmul.f32.gmra.mxu0 %v108
  %v316 = vpop.f32.mrf.mxu0
  %v317 = vadd.f32 %v86, %v316
  %318 = vmatmul.f32.gmra.mxu0 %v111
  %v319 = vpop.f32.mrf.mxu0
  %v320 = vadd.f32 %v86, %v319
  %321 = vmatmul.f32.gmra.mxu0 %v114
  %v322 = vpop.f32.mrf.mxu0
  %v323 = vadd.f32 %v86, %v322
  %324 = vmatmul.f32.gmra.mxu0 %v117
  %v325 = vpop.f32.mrf.mxu0
  %v326 = vadd.f32 %v86, %v325
  %327 = vmatmul.f32.gmra.mxu0 %v120
  %v328 = vpop.f32.mrf.mxu0
  %v329 = vadd.f32 %v86, %v328
  %330 = vmatmul.f32.gmra.mxu0 %v123
  %v331 = vpop.f32.mrf.mxu0
  %v332 = vadd.f32 %v86, %v331
  %333 = vmatmul.f32.gmra.mxu0 %v126
  %v334 = vpop.f32.mrf.mxu0
  %v335 = vadd.f32 %v86, %v334
  %336 = vmatmul.f32.gmra.mxu0 %v129
  %v337 = vpop.f32.mrf.mxu0
  %v338 = vadd.f32 %v86, %v337
  %339 = vmatmul.f32.gmra.mxu0 %v132
  %v340 = vpop.f32.mrf.mxu0
  %v341 = vadd.f32 %v86, %v340
  %342 = vmatmul.f32.gmra.mxu0 %v135
  %v343 = vpop.f32.mrf.mxu0
  %v344 = vadd.f32 %v86, %v343
  %345 = vmatmul.f32.gmra.mxu0 %v138
  %v346 = vpop.f32.mrf.mxu0
  %v347 = vadd.f32 %v86, %v346
  %348 = vmatmul.f32.gmra.mxu0 %v141
  %v349 = vpop.f32.mrf.mxu0
  %v350 = vadd.f32 %v86, %v349
  %351 = vmatmul.f32.gmra.mxu0 %v144
  %v352 = vpop.f32.mrf.mxu0
  %v353 = vadd.f32 %v86, %v352
  %354 = vmatmul.f32.gmra.mxu0 %v147
  %v355 = vpop.f32.mrf.mxu0
  %v356 = vadd.f32 %v86, %v355
  %357 = vmatmul.f32.gmra.mxu0 %v150
  %v358 = vpop.f32.mrf.mxu0
  %v359 = vadd.f32 %v86, %v358
  %360 = vmatmul.f32.gmra.mxu0 %v153
  %v361 = vpop.f32.mrf.mxu0
  %v362 = vadd.f32 %v86, %v361
  %363 = vmatmul.f32.gmra.mxu0 %v156
  %v364 = vpop.f32.mrf.mxu0
  %v365 = vadd.f32 %v86, %v364
  %366 = vmatmul.f32.gmra.mxu0 %v159
  %v367 = vpop.f32.mrf.mxu0
  %v368 = vadd.f32 %v86, %v367
  %369 = vmatmul.f32.gmra.mxu0 %v162
  %v370 = vpop.f32.mrf.mxu0
  %v371 = vadd.f32 %v86, %v370
  %372 = vmatmul.f32.gmra.mxu0 %v165
  %v373 = vpop.f32.mrf.mxu0
  %v374 = vadd.f32 %v86, %v373
  %375 = vmatmul.f32.gmra.mxu0 %v168
  %v376 = vpop.f32.mrf.mxu0
  %v377 = vadd.f32 %v86, %v376
  %378 = vmatmul.f32.gmra.mxu0 %v171
  %v379 = vpop.f32.mrf.mxu0
  %v380 = vadd.f32 %v86, %v379
  %381 = vmatmul.f32.gmra.mxu0 %v174
  %v382 = vpop.f32.mrf.mxu0
  %v383 = vadd.f32 %v86, %v382
  %384 = vmatmul.f32.gmra.mxu0 %v177
  %v385 = vpop.f32.mrf.mxu0
  %v386 = vadd.f32 %v86, %v385
  %387 = vmatmul.f32.gmra.mxu0 %v180
  %v388 = vpop.f32.mrf.mxu0
  %v389 = vadd.f32 %v86, %v388
  %390 = vmatmul.f32.gmra.mxu0 %v183
  %v391 = vpop.f32.mrf.mxu0
  %v392 = vadd.f32 %v86, %v391
  %393 = vmatmul.f32.gmra.mxu0 %v186
  %v394 = vpop.f32.mrf.mxu0
  %v395 = vadd.f32 %v86, %v394
  %396 = vmatmul.f32.gmra.mxu0 %v189
  %v397 = vpop.f32.mrf.mxu0
  %v398 = vadd.f32 %v86, %v397
  %399 = vmatmul.f32.gmra.mxu0 %v192
  %v400 = vpop.f32.mrf.mxu0
  %v401 = vadd.f32 %v86, %v400
  %402 = vmatmul.f32.gmra.mxu0 %v195
  %v403 = vpop.f32.mrf.mxu0
  %v404 = vadd.f32 %v86, %v403
  %405 = vmatmul.f32.gmra.mxu0 %v198
  %v406 = vpop.f32.mrf.mxu0
  %v407 = vadd.f32 %v86, %v406
  %408 = vmatmul.f32.gmra.mxu0 %v201
  %v409 = vpop.f32.mrf.mxu0
  %v410 = vadd.f32 %v86, %v409
  %411 = vmatmul.f32.gmra.mxu0 %v204
  %v412 = vpop.f32.mrf.mxu0
  %v413 = vadd.f32 %v86, %v412
  %414 = vmatmul.f32.gmra.mxu0 %v207
  %v415 = vpop.f32.mrf.mxu0
  %v416 = vadd.f32 %v86, %v415
  %417 = vmatmul.f32.gmra.mxu0 %v210
  %v418 = vpop.f32.mrf.mxu0
  %v419 = vadd.f32 %v86, %v418
  %420 = vmatmul.f32.gmra.mxu0 %v213
  %v421 = vpop.f32.mrf.mxu0
  %v422 = vadd.f32 %v86, %v421
  %423 = vmatmul.f32.gmra.mxu0 %v216
  %v424 = vpop.f32.mrf.mxu0
  %v425 = vadd.f32 %v86, %v424
  %426 = vmatmul.f32.gmra.mxu0 %v219
  %v427 = vpop.f32.mrf.mxu0
  %v428 = vadd.f32 %v86, %v427
  %429 = vmatmul.f32.gmra.mxu0 %v222
  %v430 = vpop.f32.mrf.mxu0
  %v431 = vadd.f32 %v86, %v430
  %432 = vmatmul.f32.gmra.mxu0 %v225
  %v433 = vpop.f32.mrf.mxu0
  %v434 = vadd.f32 %v86, %v433
  %435 = vmatmul.f32.gmra.mxu0 %v228
  %v436 = vpop.f32.mrf.mxu0
  %v437 = vadd.f32 %v86, %v436
  %438 = vmatmul.f32.gmra.mxu0 %v231
  %v439 = vpop.f32.mrf.mxu0
  %v440 = vadd.f32 %v86, %v439
  %441 = vmatmul.f32.gmra.mxu0 %v234
  %v442 = vpop.f32.mrf.mxu0
  %v443 = vadd.f32 %v86, %v442
  %444 = vmatmul.f32.gmra.mxu0 %v237
  %v445 = vpop.f32.mrf.mxu0
  %v446 = vadd.f32 %v86, %v445
  %447 = vmatmul.f32.gmra.mxu0 %v240
  %v448 = vpop.f32.mrf.mxu0
  %v449 = vadd.f32 %v86, %v448
  %450 = vmatmul.f32.gmra.mxu0 %v243
  %v451 = vpop.f32.mrf.mxu0
  %v452 = vadd.f32 %v86, %v451
  %453 = vmatmul.f32.gmra.mxu0 %v246
  %v454 = vpop.f32.mrf.mxu0
  %v455 = vadd.f32 %v86, %v454
  %456 = vmatmul.f32.gmra.mxu0 %v249
  %v457 = vpop.f32.mrf.mxu0
  %v458 = vadd.f32 %v86, %v457
  %459 = vmatmul.f32.gmra.mxu0 %v252
  %v460 = vpop.f32.mrf.mxu0
  %v461 = vadd.f32 %v86, %v460
  %462 = vmatmul.f32.gmra.mxu0 %v255
  %v463 = vpop.f32.mrf.mxu0
  %v464 = vadd.f32 %v86, %v463
  %465 = vmatmul.f32.gmra.mxu0 %v258
  %v466 = vpop.f32.mrf.mxu0
  %v467 = vadd.f32 %v86, %v466
  %468 = vmatmul.f32.gmra.mxu0 %v261
  %v469 = vpop.f32.mrf.mxu0
  %v470 = vadd.f32 %v86, %v469
  %471 = vmatmul.f32.gmra.mxu0 %v264
  %v472 = vpop.f32.mrf.mxu0
  %v473 = vadd.f32 %v86, %v472
  %474 = vmatmul.f32.gmra.mxu0 %v267
  %v475 = vpop.f32.mrf.mxu0
  %v476 = vadd.f32 %v86, %v475
  %477 = vmatmul.f32.gmra.mxu0 %v270
  %v478 = vpop.f32.mrf.mxu0
  %v479 = vadd.f32 %v86, %v478
  %480 = vmatmul.f32.gmra.mxu0 %v273
  %v481 = vpop.f32.mrf.mxu0
  %v482 = vadd.f32 %v86, %v481
  %483 = vmatmul.f32.gmra.mxu0 %v276
  %v484 = vpop.f32.mrf.mxu0
  %v485 = vadd.f32 %v86, %v484
  %486 = vmatmul.f32.gmra.mxu0 %v279
  %v487 = vpop.f32.mrf.mxu0
  %v488 = vadd.f32 %v86, %v487
  %489 = vdwg.mxu0
  %vm490 = vcmp.ge.f32.partialorder %v299, 0.0
  %vm491 = vcmp.ge.f32.partialorder %v302, 0.0
  %vm492 = vcmp.ge.f32.partialorder %v305, 0.0
  %vm493 = vcmp.ge.f32.partialorder %v308, 0.0
  %vm494 = vcmp.ge.f32.partialorder %v311, 0.0
  %vm495 = vcmp.ge.f32.partialorder %v314, 0.0
  %vm496 = vcmp.ge.f32.partialorder %v317, 0.0
  %vm497 = vcmp.ge.f32.partialorder %v320, 0.0
  %vm498 = vcmp.ge.f32.partialorder %v323, 0.0
  %vm499 = vcmp.ge.f32.partialorder %v326, 0.0
  %vm500 = vcmp.ge.f32.partialorder %v329, 0.0
  %vm501 = vcmp.ge.f32.partialorder %v332, 0.0
  %vm502 = vcmp.ge.f32.partialorder %v335, 0.0
  %vm503 = vcmp.ge.f32.partialorder %v338, 0.0
  %vm504 = vcmp.ge.f32.partialorder %v341, 0.0
  %vm505 = vcmp.ge.f32.partialorder %v344, 0.0
  %vm506 = vcmp.ge.f32.partialorder %v347, 0.0
  %vm507 = vcmp.ge.f32.partialorder %v350, 0.0
  %vm508 = vcmp.ge.f32.partialorder %v353, 0.0
  %vm509 = vcmp.ge.f32.partialorder %v356, 0.0
  %vm510 = vcmp.ge.f32.partialorder %v359, 0.0
  %vm511 = vcmp.ge.f32.partialorder %v362, 0.0
  %vm512 = vcmp.ge.f32.partialorder %v365, 0.0
  %vm513 = vcmp.ge.f32.partialorder %v368, 0.0
  %vm514 = vcmp.ge.f32.partialorder %v371, 0.0
  %vm515 = vcmp.ge.f32.partialorder %v374, 0.0
  %vm516 = vcmp.ge.f32.partialorder %v377, 0.0
  %vm517 = vcmp.ge.f32.partialorder %v380, 0.0
  %vm518 = vcmp.ge.f32.partialorder %v383, 0.0
  %vm519 = vcmp.ge.f32.partialorder %v386, 0.0
  %vm520 = vcmp.ge.f32.partialorder %v389, 0.0
  %vm521 = vcmp.ge.f32.partialorder %v392, 0.0
  %vm522 = vcmp.ge.f32.partialorder %v395, 0.0
  %vm523 = vcmp.ge.f32.partialorder %v398, 0.0
  %vm524 = vcmp.ge.f32.partialorder %v401, 0.0
  %vm525 = vcmp.ge.f32.partialorder %v404, 0.0
  %vm526 = vcmp.ge.f32.partialorder %v407, 0.0
  %vm527 = vcmp.ge.f32.partialorder %v410, 0.0
  %vm528 = vcmp.ge.f32.partialorder %v413, 0.0
  %vm529 = vcmp.ge.f32.partialorder %v416, 0.0
  %vm530 = vcmp.ge.f32.partialorder %v419, 0.0
  %vm531 = vcmp.ge.f32.partialorder %v422, 0.0
  %vm532 = vcmp.ge.f32.partialorder %v425, 0.0
  %vm533 = vcmp.ge.f32.partialorder %v428, 0.0
  %vm534 = vcmp.ge.f32.partialorder %v431, 0.0
  %vm535 = vcmp.ge.f32.partialorder %v434, 0.0
  %vm536 = vcmp.ge.f32.partialorder %v437, 0.0
  %vm537 = vcmp.ge.f32.partialorder %v440, 0.0
  %vm538 = vcmp.ge.f32.partialorder %v443, 0.0
  %vm539 = vcmp.ge.f32.partialorder %v446, 0.0
  %vm540 = vcmp.ge.f32.partialorder %v449, 0.0
  %vm541 = vcmp.ge.f32.partialorder %v452, 0.0
  %vm542 = vcmp.ge.f32.partialorder %v455, 0.0
  %vm543 = vcmp.ge.f32.partialorder %v458, 0.0
  %vm544 = vcmp.ge.f32.partialorder %v461, 0.0
  %vm545 = vcmp.ge.f32.partialorder %v464, 0.0
  %vm546 = vcmp.ge.f32.partialorder %v467, 0.0
  %vm547 = vcmp.ge.f32.partialorder %v470, 0.0
  %vm548 = vcmp.ge.f32.partialorder %v473, 0.0
  %vm549 = vcmp.ge.f32.partialorder %v476, 0.0
  %vm550 = vcmp.ge.f32.partialorder %v479, 0.0
  %vm551 = vcmp.ge.f32.partialorder %v482, 0.0
  %vm552 = vcmp.ge.f32.partialorder %v485, 0.0
  %vm553 = vcmp.ge.f32.partialorder %v488, 0.0
  %v554 = vmul.f32 %v299, 0.2
  %v555 = vmul.f32 %v302, 0.2
  %v556 = vmul.f32 %v305, 0.2
  %v557 = vmul.f32 %v308, 0.2
  %v558 = vmul.f32 %v311, 0.2
  %v559 = vmul.f32 %v314, 0.2
  %v560 = vmul.f32 %v317, 0.2
  %v561 = vmul.f32 %v320, 0.2
  %v562 = vmul.f32 %v323, 0.2
  %v563 = vmul.f32 %v326, 0.2
  %v564 = vmul.f32 %v329, 0.2
  %v565 = vmul.f32 %v332, 0.2
  %v566 = vmul.f32 %v335, 0.2
  %v567 = vmul.f32 %v338, 0.2
  %v568 = vmul.f32 %v341, 0.2
  %v569 = vmul.f32 %v344, 0.2
  %v570 = vmul.f32 %v347, 0.2
  %v571 = vmul.f32 %v350, 0.2
  %v572 = vmul.f32 %v353, 0.2
  %v573 = vmul.f32 %v356, 0.2
  %v574 = vmul.f32 %v359, 0.2
  %v575 = vmul.f32 %v362, 0.2
  %v576 = vmul.f32 %v365, 0.2
  %v577 = vmul.f32 %v368, 0.2
  %v578 = vmul.f32 %v371, 0.2
  %v579 = vmul.f32 %v374, 0.2
  %v580 = vmul.f32 %v377, 0.2
  %v581 = vmul.f32 %v380, 0.2
  %v582 = vmul.f32 %v383, 0.2
  %v583 = vmul.f32 %v386, 0.2
  %v584 = vmul.f32 %v389, 0.2
  %v585 = vmul.f32 %v392, 0.2
  %v586 = vmul.f32 %v395, 0.2
  %v587 = vmul.f32 %v398, 0.2
  %v588 = vmul.f32 %v401, 0.2
  %v589 = vmul.f32 %v404, 0.2
  %v590 = vmul.f32 %v407, 0.2
  %v591 = vmul.f32 %v410, 0.2
  %v592 = vmul.f32 %v413, 0.2
  %v593 = vmul.f32 %v416, 0.2
  %v594 = vmul.f32 %v419, 0.2
  %v595 = vmul.f32 %v422, 0.2
  %v596 = vmul.f32 %v425, 0.2
  %v597 = vmul.f32 %v428, 0.2
  %v598 = vmul.f32 %v431, 0.2
  %v599 = vmul.f32 %v434, 0.2
  %v600 = vmul.f32 %v437, 0.2
  %v601 = vmul.f32 %v440, 0.2
  %v602 = vmul.f32 %v443, 0.2
  %v603 = vmul.f32 %v446, 0.2
  %v604 = vmul.f32 %v449, 0.2
  %v605 = vmul.f32 %v452, 0.2
  %v606 = vmul.f32 %v455, 0.2
  %v607 = vmul.f32 %v458, 0.2
  %v608 = vmul.f32 %v461, 0.2
  %v609 = vmul.f32 %v464, 0.2
  %v610 = vmul.f32 %v467, 0.2
  %v611 = vmul.f32 %v470, 0.2
  %v612 = vmul.f32 %v473, 0.2
  %v613 = vmul.f32 %v476, 0.2
  %v614 = vmul.f32 %v479, 0.2
  %v615 = vmul.f32 %v482, 0.2
  %v616 = vmul.f32 %v485, 0.2
  %v617 = vmul.f32 %v488, 0.2
  %v618 = vsel %vm490, %v299, %v554
  %v619 = vsel %vm491, %v302, %v555
  %v620 = vsel %vm492, %v305, %v556
  %v621 = vsel %vm493, %v308, %v557
  %v622 = vsel %vm494, %v311, %v558
  %v623 = vsel %vm495, %v314, %v559
  %v624 = vsel %vm496, %v317, %v560
  %v625 = vsel %vm497, %v320, %v561
  %v626 = vsel %vm498, %v323, %v562
  %v627 = vsel %vm499, %v326, %v563
  %v628 = vsel %vm500, %v329, %v564
  %v629 = vsel %vm501, %v332, %v565
  %v630 = vsel %vm502, %v335, %v566
  %v631 = vsel %vm503, %v338, %v567
  %v632 = vsel %vm504, %v341, %v568
  %v633 = vsel %vm505, %v344, %v569
  %v634 = vsel %vm506, %v347, %v570
  %v635 = vsel %vm507, %v350, %v571
  %v636 = vsel %vm508, %v353, %v572
  %v637 = vsel %vm509, %v356, %v573
  %v638 = vsel %vm510, %v359, %v574
  %v639 = vsel %vm511, %v362, %v575
  %v640 = vsel %vm512, %v365, %v576
  %v641 = vsel %vm513, %v368, %v577
  %v642 = vsel %vm514, %v371, %v578
  %v643 = vsel %vm515, %v374, %v579
  %v644 = vsel %vm516, %v377, %v580
  %v645 = vsel %vm517, %v380, %v581
  %v646 = vsel %vm518, %v383, %v582
  %v647 = vsel %vm519, %v386, %v583
  %v648 = vsel %vm520, %v389, %v584
  %v649 = vsel %vm521, %v392, %v585
  %v650 = vsel %vm522, %v395, %v586
  %v651 = vsel %vm523, %v398, %v587
  %v652 = vsel %vm524, %v401, %v588
  %v653 = vsel %vm525, %v404, %v589
  %v654 = vsel %vm526, %v407, %v590
  %v655 = vsel %vm527, %v410, %v591
  %v656 = vsel %vm528, %v413, %v592
  %v657 = vsel %vm529, %v416, %v593
  %v658 = vsel %vm530, %v419, %v594
  %v659 = vsel %vm531, %v422, %v595
  %v660 = vsel %vm532, %v425, %v596
  %v661 = vsel %vm533, %v428, %v597
  %v662 = vsel %vm534, %v431, %v598
  %v663 = vsel %vm535, %v434, %v599
  %v664 = vsel %vm536, %v437, %v600
  %v665 = vsel %vm537, %v440, %v601
  %v666 = vsel %vm538, %v443, %v602
  %v667 = vsel %vm539, %v446, %v603
  %v668 = vsel %vm540, %v449, %v604
  %v669 = vsel %vm541, %v452, %v605
  %v670 = vsel %vm542, %v455, %v606
  %v671 = vsel %vm543, %v458, %v607
  %v672 = vsel %vm544, %v461, %v608
  %v673 = vsel %vm545, %v464, %v609
  %v674 = vsel %vm546, %v467, %v610
  %v675 = vsel %vm547, %v470, %v611
  %v676 = vsel %vm548, %v473, %v612
  %v677 = vsel %vm549, %v476, %v613
  %v678 = vsel %vm550, %v479, %v614
  %v679 = vsel %vm551, %v482, %v615
  %v680 = vsel %vm552, %v485, %v616
  %v681 = vsel %vm553, %v488, %v617
  %vm682 = vcmask 64512
  %683 = vst.msk [vmem:[%s3] sm:$0xff] %vm682, %v618
  %684 = vst.msk [vmem:[%s3 + $0x8] sm:$0xff] %vm682, %v619
  %685 = vst.msk [vmem:[%s3 + $0x10] sm:$0xff] %vm682, %v620
  %686 = vst.msk [vmem:[%s3 + $0x18] sm:$0xff] %vm682, %v621
  %687 = vst.msk [vmem:[%s3 + $0x20] sm:$0xff] %vm682, %v622
  %688 = vst.msk [vmem:[%s3 + $0x28] sm:$0xff] %vm682, %v623
  %689 = vst.msk [vmem:[%s3 + $0x30] sm:$0xff] %vm682, %v624
  %690 = vst.msk [vmem:[%s3 + $0x38] sm:$0xff] %vm682, %v625
  %691 = vst.msk [vmem:[%s3 + $0x40] sm:$0xff] %vm682, %v626
  %692 = vst.msk [vmem:[%s3 + $0x48] sm:$0xff] %vm682, %v627
  %693 = vst.msk [vmem:[%s3 + $0x50] sm:$0xff] %vm682, %v628
  %694 = vst.msk [vmem:[%s3 + $0x58] sm:$0xff] %vm682, %v629
  %695 = vst.msk [vmem:[%s3 + $0x60] sm:$0xff] %vm682, %v630
  %696 = vst.msk [vmem:[%s3 + $0x68] sm:$0xff] %vm682, %v631
  %697 = vst.msk [vmem:[%s3 + $0x70] sm:$0xff] %vm682, %v632
  %698 = vst.msk [vmem:[%s3 + $0x78] sm:$0xff] %vm682, %v633
  %699 = vst.msk [vmem:[%s3 + $0x80] sm:$0xff] %vm682, %v634
  %700 = vst.msk [vmem:[%s3 + $0x88] sm:$0xff] %vm682, %v635
  %701 = vst.msk [vmem:[%s3 + $0x90] sm:$0xff] %vm682, %v636
  %702 = vst.msk [vmem:[%s3 + $0x98] sm:$0xff] %vm682, %v637
  %703 = vst.msk [vmem:[%s3 + $0xa0] sm:$0xff] %vm682, %v638
  %704 = vst.msk [vmem:[%s3 + $0xa8] sm:$0xff] %vm682, %v639
  %705 = vst.msk [vmem:[%s3 + $0xb0] sm:$0xff] %vm682, %v640
  %706 = vst.msk [vmem:[%s3 + $0xb8] sm:$0xff] %vm682, %v641
  %707 = vst.msk [vmem:[%s3 + $0xc0] sm:$0xff] %vm682, %v642
  %708 = vst.msk [vmem:[%s3 + $0xc8] sm:$0xff] %vm682, %v643
  %709 = vst.msk [vmem:[%s3 + $0xd0] sm:$0xff] %vm682, %v644
  %710 = vst.msk [vmem:[%s3 + $0xd8] sm:$0xff] %vm682, %v645
  %711 = vst.msk [vmem:[%s3 + $0xe0] sm:$0xff] %vm682, %v646
  %712 = vst.msk [vmem:[%s3 + $0xe8] sm:$0xff] %vm682, %v647
  %713 = vst.msk [vmem:[%s3 + $0xf0] sm:$0xff] %vm682, %v648
  %714 = vst.msk [vmem:[%s3 + $0xf8] sm:$0xff] %vm682, %v649
  %715 = vst.msk [vmem:[%s3 + $0x100] sm:$0xff] %vm682, %v650
  %716 = vst.msk [vmem:[%s3 + $0x108] sm:$0xff] %vm682, %v651
  %717 = vst.msk [vmem:[%s3 + $0x110] sm:$0xff] %vm682, %v652
  %718 = vst.msk [vmem:[%s3 + $0x118] sm:$0xff] %vm682, %v653
  %719 = vst.msk [vmem:[%s3 + $0x120] sm:$0xff] %vm682, %v654
  %720 = vst.msk [vmem:[%s3 + $0x128] sm:$0xff] %vm682, %v655
  %721 = vst.msk [vmem:[%s3 + $0x130] sm:$0xff] %vm682, %v656
  %722 = vst.msk [vmem:[%s3 + $0x138] sm:$0xff] %vm682, %v657
  %723 = vst.msk [vmem:[%s3 + $0x140] sm:$0xff] %vm682, %v658
  %724 = vst.msk [vmem:[%s3 + $0x148] sm:$0xff] %vm682, %v659
  %725 = vst.msk [vmem:[%s3 + $0x150] sm:$0xff] %vm682, %v660
  %726 = vst.msk [vmem:[%s3 + $0x158] sm:$0xff] %vm682, %v661
  %727 = vst.msk [vmem:[%s3 + $0x160] sm:$0xff] %vm682, %v662
  %728 = vst.msk [vmem:[%s3 + $0x168] sm:$0xff] %vm682, %v663
  %729 = vst.msk [vmem:[%s3 + $0x170] sm:$0xff] %vm682, %v664
  %730 = vst.msk [vmem:[%s3 + $0x178] sm:$0xff] %vm682, %v665
  %731 = vst.msk [vmem:[%s3 + $0x180] sm:$0xff] %vm682, %v666
  %732 = vst.msk [vmem:[%s3 + $0x188] sm:$0xff] %vm682, %v667
  %733 = vst.msk [vmem:[%s3 + $0x190] sm:$0xff] %vm682, %v668
  %734 = vst.msk [vmem:[%s3 + $0x198] sm:$0xff] %vm682, %v669
  %735 = vst.msk [vmem:[%s3 + $0x1a0] sm:$0xff] %vm682, %v670
  %736 = vst.msk [vmem:[%s3 + $0x1a8] sm:$0xff] %vm682, %v671
  %737 = vst.msk [vmem:[%s3 + $0x1b0] sm:$0xff] %vm682, %v672
  %738 = vst.msk [vmem:[%s3 + $0x1b8] sm:$0xff] %vm682, %v673
  %739 = vst.msk [vmem:[%s3 + $0x1c0] sm:$0xff] %vm682, %v674
  %740 = vst.msk [vmem:[%s3 + $0x1c8] sm:$0xff] %vm682, %v675
  %741 = vst.msk [vmem:[%s3 + $0x1d0] sm:$0xff] %vm682, %v676
  %742 = vst.msk [vmem:[%s3 + $0x1d8] sm:$0xff] %vm682, %v677
  %743 = vst.msk [vmem:[%s3 + $0x1e0] sm:$0xff] %vm682, %v678
  %744 = vst.msk [vmem:[%s3 + $0x1e8] sm:$0xff] %vm682, %v679
  %745 = vst.msk [vmem:[%s3 + $0x1f0] sm:$0xff] %vm682, %v680
  %746 = vst.msk [vmem:[%s3 + $0x1f8] sm:$0xff] %vm682, %v681
  // Predicated region
  $region14: #{nlayer_discriminator.6} parent=0 // pred_check
    _
  $region15: #{nlayer_discriminator.6} parent=0 // pred_check_branch
    %748 = sbr.rel (0) target = $region17
  $region16: #{nlayer_discriminator.6} parent=0 // pred_region
    _
  $region17: #{nlayer_discriminator.6} parent=0 // pred_fallthru
    _
  // Predicated region
  $region18: #{nlayer_discriminator.6} parent=0 // pred_check
    _
  $region19: #{nlayer_discriminator.6} parent=0 // pred_check_branch
    %750 = sbr.rel (0) target = $region21
  $region20: #{nlayer_discriminator.6} parent=0 // pred_region
    _
  $region21: #{nlayer_discriminator.6} parent=0 // pred_fallthru
    _

// kernel: nlayer_discriminator.7
$region0: #{nlayer_discriminator.7}
  #allocation0 [shape = 'u32[]', space=smem, size = 0x4, offset = 0x4, fixed_abs, tag = 'smem constant byte address 0x4 - core index']
  #allocation1 [shape = 'u32[72,128]{1,0:T(1,128)}', space=vmem, size = 0x9000, scoped, tag = 'internal scratch']
  %s0 = inlined_call_operand.vmem [shape: f32[128,128], index: 0, kind: input, shape index: {}]
  %s1 = inlined_call_operand.vmem [shape: f32[128,16], index: 1, kind: input, shape index: {}]
  %s2 = inlined_call_operand.vmem [shape: f32[1,16], index: 2, kind: input, shape index: {}]
  %s3 = inlined_call_operand.vmem [shape: f32[1,16], index: 3, kind: input, shape index: {}]
  %s4 = inlined_call_operand.vmem [shape: f32[16,4], index: 4, kind: input, shape index: {}]
  %s5 = inlined_call_operand.vmem [shape: f32[1,4], index: 5, kind: input, shape index: {}]
  %s6 = inlined_call_operand.vmem [shape: f32[16,4], index: 6, kind: input, shape index: {}]
  %s7 = inlined_call_operand.vmem [shape: f32[1,4], index: 7, kind: input, shape index: {}]
  %s8 = inlined_call_operand.vmem [shape: f32[16,16], index: 8, kind: input, shape index: {}]
  %s9 = inlined_call_operand.vmem [shape: f32[1,16], index: 9, kind: input, shape index: {}]
  %s10 = inlined_call_operand.vmem [shape: f32[4,32,128], index: 10, kind: input, shape index: {}]
  %s11 = inlined_call_operand.vmem [shape: f32[128,16], index: 11, kind: output, shape index: {0}]
  %s12 = inlined_call_operand.vmem [shape: f32[128,4], index: 12, kind: output, shape index: {1}]
  %s13 = inlined_call_operand.vmem [shape: f32[32,4], index: 13, kind: output, shape index: {2}]
  %s14 = inlined_call_operand.vmem [shape: f32[32,16], index: 14, kind: output, shape index: {3}]
  %15 = xla_tuple %s11, %s12, %s13, %s14
  %s16 = sld [smem:[#allocation0]]
  $region78: #{nlayer_discriminator.7} parent=0
    _
  %s18 = ssub.s32 1, %s16
  %s19 = scalar_select 0, %s18, %s16
  // Predicated region
  $region2: #{nlayer_discriminator.7} parent=0 // pred_check
    _
  $region3: #{nlayer_discriminator.7} parent=0 // pred_check_branch
    %21 = sbr.rel (0) target = $region5
  $region4: #{nlayer_discriminator.7} parent=0 // pred_region
    _
  $region5: #{nlayer_discriminator.7} parent=0 // pred_fallthru
    _
  // Predicated region
  $region6: #{nlayer_discriminator.7} parent=0 // pred_check
    _
  $region7: #{nlayer_discriminator.7} parent=0 // pred_check_branch
    %23 = sbr.rel (0) target = $region9
  $region8: #{nlayer_discriminator.7} parent=0 // pred_region
    _
  $region9: #{nlayer_discriminator.7} parent=0 // pred_fallthru
    _
  // Predicated region
  $region10: #{nlayer_discriminator.7} parent=0 // pred_check
    _
  $region11: #{nlayer_discriminator.7} parent=0 // pred_check_branch
    %25 = sbr.rel (0) target = $region13
  $region12: #{nlayer_discriminator.7} parent=0 // pred_region
    _
  $region13: #{nlayer_discriminator.7} parent=0 // pred_fallthru
    _
  // Predicated region
  $region14: #{nlayer_discriminator.7} parent=0 // pred_check
    _
  $region15: #{nlayer_discriminator.7} parent=0 // pred_check_branch
    %27 = sbr.rel (0) target = $region17
  $region16: #{nlayer_discriminator.7} parent=0 // pred_region
    _
  $region17: #{nlayer_discriminator.7} parent=0 // pred_fallthru
    _
  // Predicated region
  $region18: #{nlayer_discriminator.7} parent=0 // pred_check
    _
  $region19: #{nlayer_discriminator.7} parent=0 // pred_check_branch
    %29 = sbr.rel (0) target = $region21
  $region20: #{nlayer_discriminator.7} parent=0 // pred_region
    _
  $region21: #{nlayer_discriminator.7} parent=0 // pred_fallthru
    _
  // Predicated region
  $region22: #{nlayer_discriminator.7} parent=0 // pred_check
    _
  $region23: #{nlayer_discriminator.7} parent=0 // pred_check_branch
    %31 = sbr.rel (0) target = $region25
  $region24: #{nlayer_discriminator.7} parent=0 // pred_region
    _
  $region25: #{nlayer_discriminator.7} parent=0 // pred_fallthru
    _
  // Predicated region
  $region26: #{nlayer_discriminator.7} parent=0 // pred_check
    _
  $region27: #{nlayer_discriminator.7} parent=0 // pred_check_branch
    %33 = sbr.rel (0) target = $region29
  $region28: #{nlayer_discriminator.7} parent=0 // pred_region
    _
  $region29: #{nlayer_discriminator.7} parent=0 // pred_fallthru
    _
  // Predicated region
  $region30: #{nlayer_discriminator.7} parent=0 // pred_check
    _
  $region31: #{nlayer_discriminator.7} parent=0 // pred_check_branch
    %35 = sbr.rel (0) target = $region33
  $region32: #{nlayer_discriminator.7} parent=0 // pred_region
    _
  $region33: #{nlayer_discriminator.7} parent=0 // pred_fallthru
    _
  // Predicated region
  $region34: #{nlayer_discriminator.7} parent=0 // pred_check
    _
  $region35: #{nlayer_discriminator.7} parent=0 // pred_check_branch
    %37 = sbr.rel (0) target = $region37
  $region36: #{nlayer_discriminator.7} parent=0 // pred_region
    _
  $region37: #{nlayer_discriminator.7} parent=0 // pred_fallthru
    _
  // Predicated region
  $region38: #{nlayer_discriminator.7} parent=0 // pred_check
    _
  $region39: #{nlayer_discriminator.7} parent=0 // pred_check_branch
    %39 = sbr.rel (0) target = $region41
  $region40: #{nlayer_discriminator.7} parent=0 // pred_region
    _
  $region41: #{nlayer_discriminator.7} parent=0 // pred_fallthru
    _
  // Predicated region
  $region42: #{nlayer_discriminator.7} parent=0 // pred_check
    _
  $region43: #{nlayer_discriminator.7} parent=0 // pred_check_branch
    %41 = sbr.rel (0) target = $region45
  $region44: #{nlayer_discriminator.7} parent=0 // pred_region
    _
  $region45: #{nlayer_discriminator.7} parent=0 // pred_fallthru
    _
  %v42 = vld [vmem:[%s0] sm:$0xff]
  %v43 = vld [vmem:[%s0 + $0x8] sm:$0xff]
  %v44 = vld [vmem:[%s0 + $0x10] sm:$0xff]
  %v45 = vld [vmem:[%s0 + $0x18] sm:$0xff]
  %v46 = vld [vmem:[%s0 + $0x20] sm:$0xff]
  %v47 = vld [vmem:[%s0 + $0x28] sm:$0xff]
  %v48 = vld [vmem:[%s0 + $0x30] sm:$0xff]
  %v49 = vld [vmem:[%s0 + $0x38] sm:$0xff]
  %v50 = vld [vmem:[%s0 + $0x40] sm:$0xff]
  %v51 = vld [vmem:[%s0 + $0x48] sm:$0xff]
  %v52 = vld [vmem:[%s0 + $0x50] sm:$0xff]
  %v53 = vld [vmem:[%s0 + $0x58] sm:$0xff]
  %v54 = vld [vmem:[%s0 + $0x60] sm:$0xff]
  %v55 = vld [vmem:[%s0 + $0x68] sm:$0xff]
  %v56 = vld [vmem:[%s0 + $0x70] sm:$0xff]
  %v57 = vld [vmem:[%s0 + $0x78] sm:$0xff]
  %v58 = vld [vmem:[%s1] sm:$0xff]
  %v59 = vld [vmem:[%s1 + $0x8] sm:$0xff]
  %v60 = vld [vmem:[%s1 + $0x10] sm:$0xff]
  %v61 = vld [vmem:[%s1 + $0x18] sm:$0xff]
  %v62 = vld [vmem:[%s1 + $0x20] sm:$0xff]
  %v63 = vld [vmem:[%s1 + $0x28] sm:$0xff]
  %v64 = vld [vmem:[%s1 + $0x30] sm:$0xff]
  %v65 = vld [vmem:[%s1 + $0x38] sm:$0xff]
  %v66 = vld [vmem:[%s1 + $0x40] sm:$0xff]
  %v67 = vld [vmem:[%s1 + $0x48] sm:$0xff]
  %v68 = vld [vmem:[%s1 + $0x50] sm:$0xff]
  %v69 = vld [vmem:[%s1 + $0x58] sm:$0xff]
  %v70 = vld [vmem:[%s1 + $0x60] sm:$0xff]
  %v71 = vld [vmem:[%s1 + $0x68] sm:$0xff]
  %v72 = vld [vmem:[%s1 + $0x70] sm:$0xff]
  %v73 = vld [vmem:[%s1 + $0x78] sm:$0xff]
  %74 = vmatpush.msra.mxu0 %v73
  %75 = vmatpush.msra.mxu0 %v72
  %76 = vmatpush.msra.mxu0 %v71
  %77 = vmatpush.msra.mxu0 %v70
  %78 = vmatpush.msra.mxu0 %v69
  %79 = vmatpush.msra.mxu0 %v68
  %80 = vmatpush.msra.mxu0 %v67
  %81 = vmatpush.msra.mxu0 %v66
  %82 = vmatpush.msra.mxu0 %v65
  %83 = vmatpush.msra.mxu0 %v64
  %84 = vmatpush.msra.mxu0 %v63
  %85 = vmatpush.msra.mxu0 %v62
  %86 = vmatpush.msra.mxu0 %v61
  %87 = vmatpush.msra.mxu0 %v60
  %88 = vmatpush.msra.mxu0 %v59
  %89 = vmatpush.msra.mxu0 %v58
  %90 = vmatmul.f32.gmra.mxu0 %v42
  %v91 = vpop.f32.mrf.mxu0
  %v92 = vadd.f32 0.0, %v91
  %93 = vmatmul.f32.gmra.mxu0 %v43
  %v94 = vpop.f32.mrf.mxu0
  %v95 = vadd.f32 0.0, %v94
  %96 = vmatmul.f32.gmra.mxu0 %v44
  %v97 = vpop.f32.mrf.mxu0
  %v98 = vadd.f32 0.0, %v97
  %99 = vmatmul.f32.gmra.mxu0 %v45
  %v100 = vpop.f32.mrf.mxu0
  %v101 = vadd.f32 0.0, %v100
  %102 = vmatmul.f32.gmra.mxu0 %v46
  %v103 = vpop.f32.mrf.mxu0
  %v104 = vadd.f32 0.0, %v103
  %105 = vmatmul.f32.gmra.mxu0 %v47
  %v106 = vpop.f32.mrf.mxu0
  %v107 = vadd.f32 0.0, %v106
  %108 = vmatmul.f32.gmra.mxu0 %v48
  %v109 = vpop.f32.mrf.mxu0
  %v110 = vadd.f32 0.0, %v109
  %111 = vmatmul.f32.gmra.mxu0 %v49
  %v112 = vpop.f32.mrf.mxu0
  %v113 = vadd.f32 0.0, %v112
  %114 = vmatmul.f32.gmra.mxu0 %v50
  %v115 = vpop.f32.mrf.mxu0
  %v116 = vadd.f32 0.0, %v115
  %117 = vmatmul.f32.gmra.mxu0 %v51
  %v118 = vpop.f32.mrf.mxu0
  %v119 = vadd.f32 0.0, %v118
  %120 = vmatmul.f32.gmra.mxu0 %v52
  %v121 = vpop.f32.mrf.mxu0
  %v122 = vadd.f32 0.0, %v121
  %123 = vmatmul.f32.gmra.mxu0 %v53
  %v124 = vpop.f32.mrf.mxu0
  %v125 = vadd.f32 0.0, %v124
  %126 = vmatmul.f32.gmra.mxu0 %v54
  %v127 = vpop.f32.mrf.mxu0
  %v128 = vadd.f32 0.0, %v127
  %129 = vmatmul.f32.gmra.mxu0 %v55
  %v130 = vpop.f32.mrf.mxu0
  %v131 = vadd.f32 0.0, %v130
  %132 = vmatmul.f32.gmra.mxu0 %v56
  %v133 = vpop.f32.mrf.mxu0
  %v134 = vadd.f32 0.0, %v133
  %135 = vmatmul.f32.gmra.mxu0 %v57
  %v136 = vpop.f32.mrf.mxu0
  %v137 = vadd.f32 0.0, %v136
  %138 = vdwg.mxu0
  %v139 = vld [vmem:[%s2] sm:$0x1]
  %v140 = vld [vmem:[%s3] sm:$0x1]
  %vm141 = vcmask 130048
  %v142 = vsel %vm141, %v92, 0.0
  %v143 = vsel %vm141, %v95, 0.0
  %v144 = vadd.f32 %v142, %v143
  %v145 = vsel %vm141, %v98, 0.0
  %v146 = vadd.f32 %v144, %v145
  %v147 = vsel %vm141, %v101, 0.0
  %v148 = vadd.f32 %v146, %v147
  %v149 = vsel %vm141, %v104, 0.0
  %v150 = vadd.f32 %v148, %v149
  %v151 = vsel %vm141, %v107, 0.0
  %v152 = vadd.f32 %v150, %v151
  %v153 = vsel %vm141, %v110, 0.0
  %v154 = vadd.f32 %v152, %v153
  %v155 = vsel %vm141, %v113, 0.0
  %v156 = vadd.f32 %v154, %v155
  %v157 = vsel %vm141, %v116, 0.0
  %v158 = vadd.f32 %v156, %v157
  %v159 = vsel %vm141, %v119, 0.0
  %v160 = vadd.f32 %v158, %v159
  %v161 = vsel %vm141, %v122, 0.0
  %v162 = vadd.f32 %v160, %v161
  %v163 = vsel %vm141, %v125, 0.0
  %v164 = vadd.f32 %v162, %v163
  %v165 = vsel %vm141, %v128, 0.0
  %v166 = vadd.f32 %v164, %v165
  %v167 = vsel %vm141, %v131, 0.0
  %v168 = vadd.f32 %v166, %v167
  %v169 = vsel %vm141, %v134, 0.0
  %v170 = vadd.f32 %v168, %v169
  %v171 = vsel %vm141, %v137, 0.0
  %v172 = vadd.f32 %v170, %v171
  %v173 = vrot.slane %v172, 4
  %v174 = vadd.f32 %v172, %v173
  %v175 = vrot.slane %v174, 2
  %v176 = vadd.f32 %v174, %v175
  %v177 = vrot.slane %v176, 1
  %v178 = vadd.f32 %v176, %v177
  %v179 = vrcp.pop 128.0
  %v180 = vmul.f32 128.0, %v179
  %v181 = vsub.f32 1.0, %v180
  %v182 = vmul.f32 %v179, %v181
  %v183 = vadd.f32 %v179, %v182
  %vm184 = vweird.f32 %v179
  %v185 = vsel %vm184, %v179, %v183
  %v186 = vmul.f32 %v178, %v185
  %v187 = vsub.f32 %v92, %v186
  %v188 = vsub.f32 %v95, %v186
  %v189 = vsub.f32 %v98, %v186
  %v190 = vsub.f32 %v101, %v186
  %v191 = vsub.f32 %v104, %v186
  %v192 = vsub.f32 %v107, %v186
  %v193 = vsub.f32 %v110, %v186
  %v194 = vsub.f32 %v113, %v186
  %v195 = vsub.f32 %v116, %v186
  %v196 = vsub.f32 %v119, %v186
  %v197 = vsub.f32 %v122, %v186
  %v198 = vsub.f32 %v125, %v186
  %v199 = vsub.f32 %v128, %v186
  %v200 = vsub.f32 %v131, %v186
  %v201 = vsub.f32 %v134, %v186
  %v202 = vsub.f32 %v137, %v186
  %v203 = vmul.f32 %v187, %v187
  %v204 = vmul.f32 %v188, %v188
  %v205 = vmul.f32 %v189, %v189
  %v206 = vmul.f32 %v190, %v190
  %v207 = vmul.f32 %v191, %v191
  %v208 = vmul.f32 %v192, %v192
  %v209 = vmul.f32 %v193, %v193
  %v210 = vmul.f32 %v194, %v194
  %v211 = vmul.f32 %v195, %v195
  %v212 = vmul.f32 %v196, %v196
  %v213 = vmul.f32 %v197, %v197
  %v214 = vmul.f32 %v198, %v198
  %v215 = vmul.f32 %v199, %v199
  %v216 = vmul.f32 %v200, %v200
  %v217 = vmul.f32 %v201, %v201
  %v218 = vmul.f32 %v202, %v202
  %v219 = vsel %vm141, %v203, 0.0
  %v220 = vsel %vm141, %v204, 0.0
  %v221 = vadd.f32 %v219, %v220
  %v222 = vsel %vm141, %v205, 0.0
  %v223 = vadd.f32 %v221, %v222
  %v224 = vsel %vm141, %v206, 0.0
  %v225 = vadd.f32 %v223, %v224
  %v226 = vsel %vm141, %v207, 0.0
  %v227 = vadd.f32 %v225, %v226
  %v228 = vsel %vm141, %v208, 0.0
  %v229 = vadd.f32 %v227, %v228
  %v230 = vsel %vm141, %v209, 0.0
  %v231 = vadd.f32 %v229, %v230
  %v232 = vsel %vm141, %v210, 0.0
  %v233 = vadd.f32 %v231, %v232
  %v234 = vsel %vm141, %v211, 0.0
  %v235 = vadd.f32 %v233, %v234
  %v236 = vsel %vm141, %v212, 0.0
  %v237 = vadd.f32 %v235, %v236
  %v238 = vsel %vm141, %v213, 0.0
  %v239 = vadd.f32 %v237, %v238
  %v240 = vsel %vm141, %v214, 0.0
  %v241 = vadd.f32 %v239, %v240
  %v242 = vsel %vm141, %v215, 0.0
  %v243 = vadd.f32 %v241, %v242
  %v244 = vsel %vm141, %v216, 0.0
  %v245 = vadd.f32 %v243, %v244
  %v246 = vsel %vm141, %v217, 0.0
  %v247 = vadd.f32 %v245, %v246
  %v248 = vsel %vm141, %v218, 0.0
  %v249 = vadd.f32 %v247, %v248
  %v250 = vrot.slane %v249, 4
  %v251 = vadd.f32 %v249, %v250
  %v252 = vrot.slane %v251, 2
  %v253 = vadd.f32 %v251, %v252
  %v254 = vrot.slane %v253, 1
  %v255 = vadd.f32 %v253, %v254
  %v256 = vmul.f32 %v255, %v185
  %v257 = vadd.f32 %v256, 1e-05
  %v258 = vrsqrt.pop %v257
  %v259 = vmul.f32 %v258, %v257
  %v260 = vmul.f32 %v259, %v258
  %v261 = vmul.f32 0.5, %v260
  %v262 = vsub.f32 1.5, %v261
  %v263 = vmul.f32 %v258, %v262
  %vm264 = vweird.f32 %v257
  %vm265 = vweird.f32 %v258
  %vm266 = vmor %vm264, %vm265
  %v267 = vsel %vm266, %v258, %v263
  %v268 = vmul.f32 %v267, %v139
  %v269 = vperm.slane %v268, 0
  %v270 = vmul.f32 %v187, %v269
  %v271 = vmul.f32 %v188, %v269
  %v272 = vmul.f32 %v189, %v269
  %v273 = vmul.f32 %v190, %v269
  %v274 = vmul.f32 %v191, %v269
  %v275 = vmul.f32 %v192, %v269
  %v276 = vmul.f32 %v193, %v269
  %v277 = vmul.f32 %v194, %v269
  %v278 = vmul.f32 %v195, %v269
  %v279 = vmul.f32 %v196, %v269
  %v280 = vmul.f32 %v197, %v269
  %v281 = vmul.f32 %v198, %v269
  %v282 = vmul.f32 %v199, %v269
  %v283 = vmul.f32 %v200, %v269
  %v284 = vmul.f32 %v201, %v269
  %v285 = vmul.f32 %v202, %v269
  %v287 = vperm.slane %v140, 0
  %v289 = vadd.f32 %v270, %v287
  %v290 = vadd.f32 %v271, %v287
  %v291 = vadd.f32 %v272, %v287
  %v292 = vadd.f32 %v273, %v287
  %v293 = vadd.f32 %v274, %v287
  %v294 = vadd.f32 %v275, %v287
  %v295 = vadd.f32 %v276, %v287
  %v296 = vadd.f32 %v277, %v287
  %v297 = vadd.f32 %v278, %v287
  %v298 = vadd.f32 %v279, %v287
  %v299 = vadd.f32 %v280, %v287
  %v300 = vadd.f32 %v281, %v287
  %v301 = vadd.f32 %v282, %v287
  %v302 = vadd.f32 %v283, %v287
  %v303 = vadd.f32 %v284, %v287
  %v304 = vadd.f32 %v285, %v287
  %305 = vst.msk [vmem:[%s11] sm:$0xff] %vm141, %v289
  %306 = vst.msk [vmem:[%s11 + $0x8] sm:$0xff] %vm141, %v290
  %307 = vst.msk [vmem:[%s11 + $0x10] sm:$0xff] %vm141, %v291
  %308 = vst.msk [vmem:[%s11 + $0x18] sm:$0xff] %vm141, %v292
  %309 = vst.msk [vmem:[%s11 + $0x20] sm:$0xff] %vm141, %v293
  %310 = vst.msk [vmem:[%s11 + $0x28] sm:$0xff] %vm141, %v294
  %311 = vst.msk [vmem:[%s11 + $0x30] sm:$0xff] %vm141, %v295
  %312 = vst.msk [vmem:[%s11 + $0x38] sm:$0xff] %vm141, %v296
  %313 = vst.msk [vmem:[%s11 + $0x40] sm:$0xff] %vm141, %v297
  %314 = vst.msk [vmem:[%s11 + $0x48] sm:$0xff] %vm141, %v298
  %315 = vst.msk [vmem:[%s11 + $0x50] sm:$0xff] %vm141, %v299
  %316 = vst.msk [vmem:[%s11 + $0x58] sm:$0xff] %vm141, %v300
  %317 = vst.msk [vmem:[%s11 + $0x60] sm:$0xff] %vm141, %v301
  %318 = vst.msk [vmem:[%s11 + $0x68] sm:$0xff] %vm141, %v302
  %319 = vst.msk [vmem:[%s11 + $0x70] sm:$0xff] %vm141, %v303
  %320 = vst.msk [vmem:[%s11 + $0x78] sm:$0xff] %vm141, %v304
  %v321 = vld [vmem:[%s4] sm:$0xff]
  %v322 = vld [vmem:[%s4 + $0x8] sm:$0xff]
  %v323 = vld [vmem:[%s5] sm:$0x1]
  %v325 = vperm.slane %v323, 0
  %v328 = vsel %vm141, %v289, 0
  %v331 = vsel %vm141, %v290, 0
  %v334 = vsel %vm141, %v291, 0
  %v337 = vsel %vm141, %v292, 0
  %v340 = vsel %vm141, %v293, 0
  %v343 = vsel %vm141, %v294, 0
  %v346 = vsel %vm141, %v295, 0
  %v349 = vsel %vm141, %v296, 0
  %v352 = vsel %vm141, %v297, 0
  %v355 = vsel %vm141, %v298, 0
  %v358 = vsel %vm141, %v299, 0
  %v361 = vsel %vm141, %v300, 0
  %v364 = vsel %vm141, %v301, 0
  %v367 = vsel %vm141, %v302, 0
  %v370 = vsel %vm141, %v303, 0
  %v373 = vsel %vm141, %v304, 0
  %375 = vmatpush.msra.mxu0 0.0
  %376 = vmatpush.msra.mxu0 0.0
  %377 = vmatpush.msra.mxu0 0.0
  %378 = vmatpush.msra.mxu0 0.0
  %379 = vmatpush.msra.mxu0 0.0
  %380 = vmatpush.msra.mxu0 0.0
  %381 = vmatpush.msra.mxu0 0.0
  %382 = vmatpush.msra.mxu0 0.0
  %383 = vmatpush.msra.mxu0 0.0
  %384 = vmatpush.msra.mxu0 0.0
  %385 = vmatpush.msra.mxu0 0.0
  %386 = vmatpush.msra.mxu0 0.0
  %387 = vmatpush.msra.mxu0 0.0
  %388 = vmatpush.msra.mxu0 0.0
  %389 = vmatpush.msra.mxu0 %v322
  %390 = vmatpush.msra.mxu0 %v321
  %391 = vmatmul.f32.gmra.mxu0 %v328
  %v392 = vpop.f32.mrf.mxu0
  %v393 = vadd.f32 %v325, %v392
  %394 = vmatmul.f32.gmra.mxu0 %v331
  %v395 = vpop.f32.mrf.mxu0
  %v396 = vadd.f32 %v325, %v395
  %397 = vmatmul.f32.gmra.mxu0 %v334
  %v398 = vpop.f32.mrf.mxu0
  %v399 = vadd.f32 %v325, %v398
  %400 = vmatmul.f32.gmra.mxu0 %v337
  %v401 = vpop.f32.mrf.mxu0
  %v402 = vadd.f32 %v325, %v401
  %403 = vmatmul.f32.gmra.mxu0 %v340
  %v404 = vpop.f32.mrf.mxu0
  %v405 = vadd.f32 %v325, %v404
  %406 = vmatmul.f32.gmra.mxu0 %v343
  %v407 = vpop.f32.mrf.mxu0
  %v408 = vadd.f32 %v325, %v407
  %409 = vmatmul.f32.gmra.mxu0 %v346
  %v410 = vpop.f32.mrf.mxu0
  %v411 = vadd.f32 %v325, %v410
  %412 = vmatmul.f32.gmra.mxu0 %v349
  %v413 = vpop.f32.mrf.mxu0
  %v414 = vadd.f32 %v325, %v413
  %415 = vmatmul.f32.gmra.mxu0 %v352
  %v416 = vpop.f32.mrf.mxu0
  %v417 = vadd.f32 %v325, %v416
  %418 = vmatmul.f32.gmra.mxu0 %v355
  %v419 = vpop.f32.mrf.mxu0
  %v420 = vadd.f32 %v325, %v419
  %421 = vmatmul.f32.gmra.mxu0 %v358
  %v422 = vpop.f32.mrf.mxu0
  %v423 = vadd.f32 %v325, %v422
  %424 = vmatmul.f32.gmra.mxu0 %v361
  %v425 = vpop.f32.mrf.mxu0
  %v426 = vadd.f32 %v325, %v425
  %427 = vmatmul.f32.gmra.mxu0 %v364
  %v428 = vpop.f32.mrf.mxu0
  %v429 = vadd.f32 %v325, %v428
  %430 = vmatmul.f32.gmra.mxu0 %v367
  %v431 = vpop.f32.mrf.mxu0
  %v432 = vadd.f32 %v325, %v431
  %433 = vmatmul.f32.gmra.mxu0 %v370
  %v434 = vpop.f32.mrf.mxu0
  %v435 = vadd.f32 %v325, %v434
  %436 = vmatmul.f32.gmra.mxu0 %v373
  %v437 = vpop.f32.mrf.mxu0
  %v438 = vadd.f32 %v325, %v437
  %439 = vdwg.mxu0
  %v440 = vld [vmem:[%s6] sm:$0xff]
  %v441 = vld [vmem:[%s6 + $0x8] sm:$0xff]
  %v442 = vld [vmem:[%s7] sm:$0x1]
  %v444 = vperm.slane %v442, 0
  %446 = vmatpush.msra.mxu0 0.0
  %447 = vmatpush.msra.mxu0 0.0
  %448 = vmatpush.msra.mxu0 0.0
  %449 = vmatpush.msra.mxu0 0.0
  %450 = vmatpush.msra.mxu0 0.0
  %451 = vmatpush.msra.mxu0 0.0
  %452 = vmatpush.msra.mxu0 0.0
  %453 = vmatpush.msra.mxu0 0.0
  %454 = vmatpush.msra.mxu0 0.0
  %455 = vmatpush.msra.mxu0 0.0
  %456 = vmatpush.msra.mxu0 0.0
  %457 = vmatpush.msra.mxu0 0.0
  %458 = vmatpush.msra.mxu0 0.0
  %459 = vmatpush.msra.mxu0 0.0
  %460 = vmatpush.msra.mxu0 %v441
  %461 = vmatpush.msra.mxu0 %v440
  %462 = vmatmul.f32.gmra.mxu0 %v328
  %v463 = vpop.f32.mrf.mxu0
  %v464 = vadd.f32 %v444, %v463
  %465 = vmatmul.f32.gmra.mxu0 %v331
  %v466 = vpop.f32.mrf.mxu0
  %v467 = vadd.f32 %v444, %v466
  %468 = vmatmul.f32.gmra.mxu0 %v334
  %v469 = vpop.f32.mrf.mxu0
  %v470 = vadd.f32 %v444, %v469
  %471 = vmatmul.f32.gmra.mxu0 %v337
  %v472 = vpop.f32.mrf.mxu0
  %v473 = vadd.f32 %v444, %v472
  %474 = vmatmul.f32.gmra.mxu0 %v340
  %v475 = vpop.f32.mrf.mxu0
  %v476 = vadd.f32 %v444, %v475
  %477 = vmatmul.f32.gmra.mxu0 %v343
  %v478 = vpop.f32.mrf.mxu0
  %v479 = vadd.f32 %v444, %v478
  %480 = vmatmul.f32.gmra.mxu0 %v346
  %v481 = vpop.f32.mrf.mxu0
  %v482 = vadd.f32 %v444, %v481
  %483 = vmatmul.f32.gmra.mxu0 %v349
  %v484 = vpop.f32.mrf.mxu0
  %v485 = vadd.f32 %v444, %v484
  %486 = vmatmul.f32.gmra.mxu0 %v352
  %v487 = vpop.f32.mrf.mxu0
  %v488 = vadd.f32 %v444, %v487
  %489 = vmatmul.f32.gmra.mxu0 %v355
  %v490 = vpop.f32.mrf.mxu0
  %v491 = vadd.f32 %v444, %v490
  %492 = vmatmul.f32.gmra.mxu0 %v358
  %v493 = vpop.f32.mrf.mxu0
  %v494 = vadd.f32 %v444, %v493
  %495 = vmatmul.f32.gmra.mxu0 %v361
  %v496 = vpop.f32.mrf.mxu0
  %v497 = vadd.f32 %v444, %v496
  %498 = vmatmul.f32.gmra.mxu0 %v364
  %v499 = vpop.f32.mrf.mxu0
  %v500 = vadd.f32 %v444, %v499
  %501 = vmatmul.f32.gmra.mxu0 %v367
  %v502 = vpop.f32.mrf.mxu0
  %v503 = vadd.f32 %v444, %v502
  %504 = vmatmul.f32.gmra.mxu0 %v370
  %v505 = vpop.f32.mrf.mxu0
  %v506 = vadd.f32 %v444, %v505
  %507 = vmatmul.f32.gmra.mxu0 %v373
  %v508 = vpop.f32.mrf.mxu0
  %v509 = vadd.f32 %v444, %v508
  %510 = vdwg.mxu0
  %v511 = vld [vmem:[%s8] sm:$0xff]
  %v512 = vld [vmem:[%s8 + $0x8] sm:$0xff]
  %v513 = vld [vmem:[%s9] sm:$0x1]
  %v515 = vperm.slane %v513, 0
  %517 = vmatpush.msra.mxu0 0.0
  %518 = vmatpush.msra.mxu0 0.0
  %519 = vmatpush.msra.mxu0 0.0
  %520 = vmatpush.msra.mxu0 0.0
  %521 = vmatpush.msra.mxu0 0.0
  %522 = vmatpush.msra.mxu0 0.0
  %523 = vmatpush.msra.mxu0 0.0
  %524 = vmatpush.msra.mxu0 0.0
  %525 = vmatpush.msra.mxu0 0.0
  %526 = vmatpush.msra.mxu0 0.0
  %527 = vmatpush.msra.mxu0 0.0
  %528 = vmatpush.msra.mxu0 0.0
  %529 = vmatpush.msra.mxu0 0.0
  %530 = vmatpush.msra.mxu0 0.0
  %531 = vmatpush.msra.mxu0 %v512
  %532 = vmatpush.msra.mxu0 %v511
  %533 = vmatmul.f32.gmra.mxu0 %v328
  %v534 = vpop.f32.mrf.mxu0
  %v535 = vadd.f32 %v515, %v534
  %536 = vmatmul.f32.gmra.mxu0 %v331
  %v537 = vpop.f32.mrf.mxu0
  %v538 = vadd.f32 %v515, %v537
  %539 = vmatmul.f32.gmra.mxu0 %v334
  %v540 = vpop.f32.mrf.mxu0
  %v541 = vadd.f32 %v515, %v540
  %542 = vmatmul.f32.gmra.mxu0 %v337
  %v543 = vpop.f32.mrf.mxu0
  %v544 = vadd.f32 %v515, %v543
  %545 = vmatmul.f32.gmra.mxu0 %v340
  %v546 = vpop.f32.mrf.mxu0
  %v547 = vadd.f32 %v515, %v546
  %548 = vmatmul.f32.gmra.mxu0 %v343
  %v549 = vpop.f32.mrf.mxu0
  %v550 = vadd.f32 %v515, %v549
  %551 = vmatmul.f32.gmra.mxu0 %v346
  %v552 = vpop.f32.mrf.mxu0
  %v553 = vadd.f32 %v515, %v552
  %554 = vmatmul.f32.gmra.mxu0 %v349
  %v555 = vpop.f32.mrf.mxu0
  %v556 = vadd.f32 %v515, %v555
  %557 = vmatmul.f32.gmra.mxu0 %v352
  %v558 = vpop.f32.mrf.mxu0
  %v559 = vadd.f32 %v515, %v558
  %560 = vmatmul.f32.gmra.mxu0 %v355
  %v561 = vpop.f32.mrf.mxu0
  %v562 = vadd.f32 %v515, %v561
  %563 = vmatmul.f32.gmra.mxu0 %v358
  %v564 = vpop.f32.mrf.mxu0
  %v565 = vadd.f32 %v515, %v564
  %566 = vmatmul.f32.gmra.mxu0 %v361
  %v567 = vpop.f32.mrf.mxu0
  %v568 = vadd.f32 %v515, %v567
  %569 = vmatmul.f32.gmra.mxu0 %v364
  %v570 = vpop.f32.mrf.mxu0
  %v571 = vadd.f32 %v515, %v570
  %572 = vmatmul.f32.gmra.mxu0 %v367
  %v573 = vpop.f32.mrf.mxu0
  %v574 = vadd.f32 %v515, %v573
  %575 = vmatmul.f32.gmra.mxu0 %v370
  %v576 = vpop.f32.mrf.mxu0
  %v577 = vadd.f32 %v515, %v576
  %578 = vmatmul.f32.gmra.mxu0 %v373
  %v579 = vpop.f32.mrf.mxu0
  %v580 = vadd.f32 %v515, %v579
  %581 = vdwg.mxu0
  %vm582 = vcmask 31744
  %583 = vst.msk [vmem:[%s12] sm:$0xff] %vm582, %v393
  %584 = vst.msk [vmem:[%s12 + $0x8] sm:$0xff] %vm582, %v396
  %585 = vst.msk [vmem:[%s12 + $0x10] sm:$0xff] %vm582, %v399
  %586 = vst.msk [vmem:[%s12 + $0x18] sm:$0xff] %vm582, %v402
  %587 = vst.msk [vmem:[%s12 + $0x20] sm:$0xff] %vm582, %v405
  %588 = vst.msk [vmem:[%s12 + $0x28] sm:$0xff] %vm582, %v408
  %589 = vst.msk [vmem:[%s12 + $0x30] sm:$0xff] %vm582, %v411
  %590 = vst.msk [vmem:[%s12 + $0x38] sm:$0xff] %vm582, %v414
  %591 = vst.msk [vmem:[%s12 + $0x40] sm:$0xff] %vm582, %v417
  %592 = vst.msk [vmem:[%s12 + $0x48] sm:$0xff] %vm582, %v420
  %593 = vst.msk [vmem:[%s12 + $0x50] sm:$0xff] %vm582, %v423
  %594 = vst.msk [vmem:[%s12 + $0x58] sm:$0xff] %vm582, %v426
  %595 = vst.msk [vmem:[%s12 + $0x60] sm:$0xff] %vm582, %v429
  %596 = vst.msk [vmem:[%s12 + $0x68] sm:$0xff] %vm582, %v432
  %597 = vst.msk [vmem:[%s12 + $0x70] sm:$0xff] %vm582, %v435
  %598 = vst.msk [vmem:[%s12 + $0x78] sm:$0xff] %vm582, %v438
  %v599 = vld [vmem:[%s10] sm:$0xff]
  %v600 = vld [vmem:[%s10 + $0x8] sm:$0xff]
  %v601 = vld [vmem:[%s10 + $0x10] sm:$0xff]
  %v602 = vld [vmem:[%s10 + $0x18] sm:$0xff]
  %603 = vmatpush.msra.mxu0 %v509
  %604 = vmatpush.msra.mxu0 %v506
  %605 = vmatpush.msra.mxu0 %v503
  %606 = vmatpush.msra.mxu0 %v500
  %607 = vmatpush.msra.mxu0 %v497
  %608 = vmatpush.msra.mxu0 %v494
  %609 = vmatpush.msra.mxu0 %v491
  %610 = vmatpush.msra.mxu0 %v488
  %611 = vmatpush.msra.mxu0 %v485
  %612 = vmatpush.msra.mxu0 %v482
  %613 = vmatpush.msra.mxu0 %v479
  %614 = vmatpush.msra.mxu0 %v476
  %615 = vmatpush.msra.mxu0 %v473
  %616 = vmatpush.msra.mxu0 %v470
  %617 = vmatpush.msra.mxu0 %v467
  %618 = vmatpush.msra.mxu0 %v464
  %619 = vmatmul.f32.gmra.mxu0 %v599
  %v620 = vpop.f32.mrf.mxu0
  %v621 = vadd.f32 0.0, %v620
  %622 = vmatmul.f32.gmra.mxu0 %v600
  %v623 = vpop.f32.mrf.mxu0
  %v624 = vadd.f32 0.0, %v623
  %625 = vmatmul.f32.gmra.mxu0 %v601
  %v626 = vpop.f32.mrf.mxu0
  %v627 = vadd.f32 0.0, %v626
  %628 = vmatmul.f32.gmra.mxu0 %v602
  %v629 = vpop.f32.mrf.mxu0
  %v630 = vadd.f32 0.0, %v629
  %631 = vdwg.mxu0
  %s632 = scalar_lea.vmem %s10, 32
  %v633 = vld [vmem:[%s632] sm:$0xff]
  %v634 = vld [vmem:[%s632 + $0x8] sm:$0xff]
  %v635 = vld [vmem:[%s632 + $0x10] sm:$0xff]
  %v636 = vld [vmem:[%s632 + $0x18] sm:$0xff]
  %637 = vmatpush.msra.mxu0 %v509
  %638 = vmatpush.msra.mxu0 %v506
  %639 = vmatpush.msra.mxu0 %v503
  %640 = vmatpush.msra.mxu0 %v500
  %641 = vmatpush.msra.mxu0 %v497
  %642 = vmatpush.msra.mxu0 %v494
  %643 = vmatpush.msra.mxu0 %v491
  %644 = vmatpush.msra.mxu0 %v488
  %645 = vmatpush.msra.mxu0 %v485
  %646 = vmatpush.msra.mxu0 %v482
  %647 = vmatpush.msra.mxu0 %v479
  %648 = vmatpush.msra.mxu0 %v476
  %649 = vmatpush.msra.mxu0 %v473
  %650 = vmatpush.msra.mxu0 %v470
  %651 = vmatpush.msra.mxu0 %v467
  %652 = vmatpush.msra.mxu0 %v464
  %653 = vmatmul.f32.gmra.mxu0 %v633
  %v654 = vpop.f32.mrf.mxu0
  %v655 = vadd.f32 0.0, %v654
  %656 = vmatmul.f32.gmra.mxu0 %v634
  %v657 = vpop.f32.mrf.mxu0
  %v658 = vadd.f32 0.0, %v657
  %659 = vmatmul.f32.gmra.mxu0 %v635
  %v660 = vpop.f32.mrf.mxu0
  %v661 = vadd.f32 0.0, %v660
  %662 = vmatmul.f32.gmra.mxu0 %v636
  %v663 = vpop.f32.mrf.mxu0
  %v664 = vadd.f32 0.0, %v663
  %665 = vdwg.mxu0
  %v666 = vmax.f32 %v621, %v655
  %v667 = vmax.f32 %v624, %v658
  %v668 = vmax.f32 %v627, %v661
  %v669 = vmax.f32 %v630, %v664
  %s670 = scalar_lea.vmem %s10, 64
  %v671 = vld [vmem:[%s670] sm:$0xff]
  %v672 = vld [vmem:[%s670 + $0x8] sm:$0xff]
  %v673 = vld [vmem:[%s670 + $0x10] sm:$0xff]
  %v674 = vld [vmem:[%s670 + $0x18] sm:$0xff]
  %675 = vmatpush.msra.mxu0 %v509
  %676 = vmatpush.msra.mxu0 %v506
  %677 = vmatpush.msra.mxu0 %v503
  %678 = vmatpush.msra.mxu0 %v500
  %679 = vmatpush.msra.mxu0 %v497
  %680 = vmatpush.msra.mxu0 %v494
  %681 = vmatpush.msra.mxu0 %v491
  %682 = vmatpush.msra.mxu0 %v488
  %683 = vmatpush.msra.mxu0 %v485
  %684 = vmatpush.msra.mxu0 %v482
  %685 = vmatpush.msra.mxu0 %v479
  %686 = vmatpush.msra.mxu0 %v476
  %687 = vmatpush.msra.mxu0 %v473
  %688 = vmatpush.msra.mxu0 %v470
  %689 = vmatpush.msra.mxu0 %v467
  %690 = vmatpush.msra.mxu0 %v464
  %691 = vmatmul.f32.gmra.mxu0 %v671
  %v692 = vpop.f32.mrf.mxu0
  %v693 = vadd.f32 0.0, %v692
  %694 = vmatmul.f32.gmra.mxu0 %v672
  %v695 = vpop.f32.mrf.mxu0
  %v696 = vadd.f32 0.0, %v695
  %697 = vmatmul.f32.gmra.mxu0 %v673
  %v698 = vpop.f32.mrf.mxu0
  %v699 = vadd.f32 0.0, %v698
  %700 = vmatmul.f32.gmra.mxu0 %v674
  %v701 = vpop.f32.mrf.mxu0
  %v702 = vadd.f32 0.0, %v701
  %703 = vdwg.mxu0
  %v704 = vmax.f32 %v666, %v693
  %v705 = vmax.f32 %v667, %v696
  %v706 = vmax.f32 %v668, %v699
  %v707 = vmax.f32 %v669, %v702
  %s708 = scalar_lea.vmem %s10, 96
  %v709 = vld [vmem:[%s708] sm:$0xff]
  %v710 = vld [vmem:[%s708 + $0x8] sm:$0xff]
  %v711 = vld [vmem:[%s708 + $0x10] sm:$0xff]
  %v712 = vld [vmem:[%s708 + $0x18] sm:$0xff]
  %713 = vmatpush.msra.mxu0 %v509
  %714 = vmatpush.msra.mxu0 %v506
  %715 = vmatpush.msra.mxu0 %v503
  %716 = vmatpush.msra.mxu0 %v500
  %717 = vmatpush.msra.mxu0 %v497
  %718 = vmatpush.msra.mxu0 %v494
  %719 = vmatpush.msra.mxu0 %v491
  %720 = vmatpush.msra.mxu0 %v488
  %721 = vmatpush.msra.mxu0 %v485
  %722 = vmatpush.msra.mxu0 %v482
  %723 = vmatpush.msra.mxu0 %v479
  %724 = vmatpush.msra.mxu0 %v476
  %725 = vmatpush.msra.mxu0 %v473
  %726 = vmatpush.msra.mxu0 %v470
  %727 = vmatpush.msra.mxu0 %v467
  %728 = vmatpush.msra.mxu0 %v464
  %729 = vmatmul.f32.gmra.mxu0 %v709
  %v730 = vpop.f32.mrf.mxu0
  %v731 = vadd.f32 0.0, %v730
  %732 = vmatmul.f32.gmra.mxu0 %v710
  %v733 = vpop.f32.mrf.mxu0
  %v734 = vadd.f32 0.0, %v733
  %735 = vmatmul.f32.gmra.mxu0 %v711
  %v736 = vpop.f32.mrf.mxu0
  %v737 = vadd.f32 0.0, %v736
  %738 = vmatmul.f32.gmra.mxu0 %v712
  %v739 = vpop.f32.mrf.mxu0
  %v740 = vadd.f32 0.0, %v739
  %741 = vdwg.mxu0
  %v742 = vmax.f32 %v704, %v731
  %v743 = vmax.f32 %v705, %v734
  %v744 = vmax.f32 %v706, %v737
  %v745 = vmax.f32 %v707, %v740
  %746 = vst.msk [vmem:[%s13] sm:$0xff] %vm582, %v742
  %747 = vst.msk [vmem:[%s13 + $0x8] sm:$0xff] %vm582, %v743
  %748 = vst.msk [vmem:[%s13 + $0x10] sm:$0xff] %vm582, %v744
  %749 = vst.msk [vmem:[%s13 + $0x18] sm:$0xff] %vm582, %v745
  %v750 = vld [vmem:[%s10] sm:$0xff]
  %v751 = vld [vmem:[%s10 + $0x8] sm:$0xff]
  %v752 = vld [vmem:[%s10 + $0x10] sm:$0xff]
  %v753 = vld [vmem:[%s10 + $0x18] sm:$0xff]
  %754 = vmatpush.msra.mxu0 %v580
  %755 = vmatpush.msra.mxu0 %v577
  %756 = vmatpush.msra.mxu0 %v574
  %757 = vmatpush.msra.mxu0 %v571
  %758 = vmatpush.msra.mxu0 %v568
  %759 = vmatpush.msra.mxu0 %v565
  %760 = vmatpush.msra.mxu0 %v562
  %761 = vmatpush.msra.mxu0 %v559
  %762 = vmatpush.msra.mxu0 %v556
  %763 = vmatpush.msra.mxu0 %v553
  %764 = vmatpush.msra.mxu0 %v550
  %765 = vmatpush.msra.mxu0 %v547
  %766 = vmatpush.msra.mxu0 %v544
  %767 = vmatpush.msra.mxu0 %v541
  %768 = vmatpush.msra.mxu0 %v538
  %769 = vmatpush.msra.mxu0 %v535
  %770 = vmatmul.f32.gmra.mxu0 %v750
  %v771 = vpop.f32.mrf.mxu0
  %v772 = vadd.f32 0.0, %v771
  %773 = vmatmul.f32.gmra.mxu0 %v751
  %v774 = vpop.f32.mrf.mxu0
  %v775 = vadd.f32 0.0, %v774
  %776 = vmatmul.f32.gmra.mxu0 %v752
  %v777 = vpop.f32.mrf.mxu0
  %v778 = vadd.f32 0.0, %v777
  %779 = vmatmul.f32.gmra.mxu0 %v753
  %v780 = vpop.f32.mrf.mxu0
  %v781 = vadd.f32 0.0, %v780
  %782 = vdwg.mxu0
  %v783 = vld [vmem:[%s632] sm:$0xff]
  %v784 = vld [vmem:[%s632 + $0x8] sm:$0xff]
  %v785 = vld [vmem:[%s632 + $0x10] sm:$0xff]
  %v786 = vld [vmem:[%s632 + $0x18] sm:$0xff]
  %787 = vmatpush.msra.mxu0 %v580
  %788 = vmatpush.msra.mxu0 %v577
  %789 = vmatpush.msra.mxu0 %v574
  %790 = vmatpush.msra.mxu0 %v571
  %791 = vmatpush.msra.mxu0 %v568
  %792 = vmatpush.msra.mxu0 %v565
  %793 = vmatpush.msra.mxu0 %v562
  %794 = vmatpush.msra.mxu0 %v559
  %795 = vmatpush.msra.mxu0 %v556
  %796 = vmatpush.msra.mxu0 %v553
  %797 = vmatpush.msra.mxu0 %v550
  %798 = vmatpush.msra.mxu0 %v547
  %799 = vmatpush.msra.mxu0 %v544
  %800 = vmatpush.msra.mxu0 %v541
  %801 = vmatpush.msra.mxu0 %v538
  %802 = vmatpush.msra.mxu0 %v535
  %803 = vmatmul.f32.gmra.mxu0 %v783
  %v804 = vpop.f32.mrf.mxu0
  %v805 = vadd.f32 0.0, %v804
  %806 = vmatmul.f32.gmra.mxu0 %v784
  %v807 = vpop.f32.mrf.mxu0
  %v808 = vadd.f32 0.0, %v807
  %809 = vmatmul.f32.gmra.mxu0 %v785
  %v810 = vpop.f32.mrf.mxu0
  %v811 = vadd.f32 0.0, %v810
  %812 = vmatmul.f32.gmra.mxu0 %v786
  %v813 = vpop.f32.mrf.mxu0
  %v814 = vadd.f32 0.0, %v813
  %815 = vdwg.mxu0
  %v816 = vmax.f32 %v772, %v805
  %v817 = vmax.f32 %v775, %v808
  %v818 = vmax.f32 %v778, %v811
  %v819 = vmax.f32 %v781, %v814
  %v820 = vld [vmem:[%s670] sm:$0xff]
  %v821 = vld [vmem:[%s670 + $0x8] sm:$0xff]
  %v822 = vld [vmem:[%s670 + $0x10] sm:$0xff]
  %v823 = vld [vmem:[%s670 + $0x18] sm:$0xff]
  %824 = vmatpush.msra.mxu0 %v580
  %825 = vmatpush.msra.mxu0 %v577
  %826 = vmatpush.msra.mxu0 %v574
  %827 = vmatpush.msra.mxu0 %v571
  %828 = vmatpush.msra.mxu0 %v568
  %829 = vmatpush.msra.mxu0 %v565
  %830 = vmatpush.msra.mxu0 %v562
  %831 = vmatpush.msra.mxu0 %v559
  %832 = vmatpush.msra.mxu0 %v556
  %833 = vmatpush.msra.mxu0 %v553
  %834 = vmatpush.msra.mxu0 %v550
  %835 = vmatpush.msra.mxu0 %v547
  %836 = vmatpush.msra.mxu0 %v544
  %837 = vmatpush.msra.mxu0 %v541
  %838 = vmatpush.msra.mxu0 %v538
  %839 = vmatpush.msra.mxu0 %v535
  %840 = vmatmul.f32.gmra.mxu0 %v820
  %v841 = vpop.f32.mrf.mxu0
  %v842 = vadd.f32 0.0, %v841
  %843 = vmatmul.f32.gmra.mxu0 %v821
  %v844 = vpop.f32.mrf.mxu0
  %v845 = vadd.f32 0.0, %v844
  %846 = vmatmul.f32.gmra.mxu0 %v822
  %v847 = vpop.f32.mrf.mxu0
  %v848 = vadd.f32 0.0, %v847
  %849 = vmatmul.f32.gmra.mxu0 %v823
  %v850 = vpop.f32.mrf.mxu0
  %v851 = vadd.f32 0.0, %v850
  %852 = vdwg.mxu0
  %v853 = vmax.f32 %v816, %v842
  %v854 = vmax.f32 %v817, %v845
  %v855 = vmax.f32 %v818, %v848
  %v856 = vmax.f32 %v819, %v851
  %v857 = vld [vmem:[%s708] sm:$0xff]
  %v858 = vld [vmem:[%s708 + $0x8] sm:$0xff]
  %v859 = vld [vmem:[%s708 + $0x10] sm:$0xff]
  %v860 = vld [vmem:[%s708 + $0x18] sm:$0xff]
  %861 = vmatpush.msra.mxu0 %v580
  %862 = vmatpush.msra.mxu0 %v577
  %863 = vmatpush.msra.mxu0 %v574
  %864 = vmatpush.msra.mxu0 %v571
  %865 = vmatpush.msra.mxu0 %v568
  %866 = vmatpush.msra.mxu0 %v565
  %867 = vmatpush.msra.mxu0 %v562
  %868 = vmatpush.msra.mxu0 %v559
  %869 = vmatpush.msra.mxu0 %v556
  %870 = vmatpush.msra.mxu0 %v553
  %871 = vmatpush.msra.mxu0 %v550
  %872 = vmatpush.msra.mxu0 %v547
  %873 = vmatpush.msra.mxu0 %v544
  %874 = vmatpush.msra.mxu0 %v541
  %875 = vmatpush.msra.mxu0 %v538
  %876 = vmatpush.msra.mxu0 %v535
  %877 = vmatmul.f32.gmra.mxu0 %v857
  %v878 = vpop.f32.mrf.mxu0
  %v879 = vadd.f32 0.0, %v878
  %880 = vmatmul.f32.gmra.mxu0 %v858
  %v881 = vpop.f32.mrf.mxu0
  %v882 = vadd.f32 0.0, %v881
  %883 = vmatmul.f32.gmra.mxu0 %v859
  %v884 = vpop.f32.mrf.mxu0
  %v885 = vadd.f32 0.0, %v884
  %886 = vmatmul.f32.gmra.mxu0 %v860
  %v887 = vpop.f32.mrf.mxu0
  %v888 = vadd.f32 0.0, %v887
  %889 = vdwg.mxu0
  %v890 = vmax.f32 %v853, %v879
  %v891 = vmax.f32 %v854, %v882
  %v892 = vmax.f32 %v855, %v885
  %v893 = vmax.f32 %v856, %v888
  %894 = vst.msk [vmem:[%s14] sm:$0xff] %vm141, %v890
  %895 = vst.msk [vmem:[%s14 + $0x8] sm:$0xff] %vm141, %v891
  %896 = vst.msk [vmem:[%s14 + $0x10] sm:$0xff] %vm141, %v892
  %897 = vst.msk [vmem:[%s14 + $0x18] sm:$0xff] %vm141, %v893
  // Predicated region
  $region46: #{nlayer_discriminator.7} parent=0 // pred_check
    _
  $region47: #{nlayer_discriminator.7} parent=0 // pred_check_branch
    %899 = sbr.rel (0) target = $region49
  $region48: #{nlayer_discriminator.7} parent=0 // pred_region
    _
  $region49: #{nlayer_discriminator.7} parent=0 // pred_fallthru
    _
  // Predicated region
  $region50: #{nlayer_discriminator.7} parent=0 // pred_check
    _
  $region51: #{nlayer_discriminator.7} parent=0 // pred_check_branch
    %901 = sbr.rel (0) target = $region53
  $region52: #{nlayer_discriminator.7} parent=0 // pred_region
    _
  $region53: #{nlayer_discriminator.7} parent=0 // pred_fallthru
    _
  // Predicated region
  $region54: #{nlayer_discriminator.7} parent=0 // pred_check
    _
  $region55: #{nlayer_discriminator.7} parent=0 // pred_check_branch
    %903 = sbr.rel (0) target = $region57
  $region56: #{nlayer_discriminator.7} parent=0 // pred_region
    _
  $region57: #{nlayer_discriminator.7} parent=0 // pred_fallthru
    _
  // Predicated region
  $region58: #{nlayer_discriminator.7} parent=0 // pred_check
    _
  $region59: #{nlayer_discriminator.7} parent=0 // pred_check_branch
    %905 = sbr.rel (0) target = $region61
  $region60: #{nlayer_discriminator.7} parent=0 // pred_region
    _
  $region61: #{nlayer_discriminator.7} parent=0 // pred_fallthru
    _
  // Predicated region
  $region62: #{nlayer_discriminator.7} parent=0 // pred_check
    _
  $region63: #{nlayer_discriminator.7} parent=0 // pred_check_branch
    %907 = sbr.rel (0) target = $region65
  $region64: #{nlayer_discriminator.7} parent=0 // pred_region
    _
  $region65: #{nlayer_discriminator.7} parent=0 // pred_fallthru
    _
  // Predicated region
  $region66: #{nlayer_discriminator.7} parent=0 // pred_check
    _
  $region67: #{nlayer_discriminator.7} parent=0 // pred_check_branch
    %909 = sbr.rel (0) target = $region69
  $region68: #{nlayer_discriminator.7} parent=0 // pred_region
    _
  $region69: #{nlayer_discriminator.7} parent=0 // pred_fallthru
    _
  // Predicated region
  $region70: #{nlayer_discriminator.7} parent=0 // pred_check
    _
  $region71: #{nlayer_discriminator.7} parent=0 // pred_check_branch
    %911 = sbr.rel (0) target = $region73
  $region72: #{nlayer_discriminator.7} parent=0 // pred_region
    _
  $region73: #{nlayer_discriminator.7} parent=0 // pred_fallthru
    _
  // Predicated region
  $region74: #{nlayer_discriminator.7} parent=0 // pred_check
    _
  $region75: #{nlayer_discriminator.7} parent=0 // pred_check_branch
    %913 = sbr.rel (0) target = $region77
  $region76: #{nlayer_discriminator.7} parent=0 // pred_region
    _
  $region77: #{nlayer_discriminator.7} parent=0 // pred_fallthru
    _

// kernel: nlayer_discriminator.8
$region0: #{nlayer_discriminator.8}
  #allocation0 [shape = 'u32[]', space=smem, size = 0x4, offset = 0x4, fixed_abs, tag = 'smem constant byte address 0x4 - core index']
  #allocation1 [shape = 'u32[72,128]{1,0:T(1,128)}', space=vmem, size = 0x9000, scoped, tag = 'internal scratch']
  %s0 = inlined_call_operand.vmem [shape: f32[2,64,4], index: 0, kind: input, shape index: {}]
  %s1 = inlined_call_operand.vmem [shape: f32[2,16,4], index: 1, kind: input, shape index: {}]
  %s2 = inlined_call_operand.vmem [shape: f32[2,16,16], index: 2, kind: input, shape index: {}]
  %s3 = inlined_call_operand.vmem [shape: f32[2,64,16], index: 3, kind: input, shape index: {}]
  %s4 = inlined_call_operand.vmem [shape: f32[2,64,16], index: 4, kind: output, shape index: {}]
  %s5 = sld [smem:[#allocation0]]
  $region26: #{nlayer_discriminator.8} parent=0
    _
  %s7 = ssub.s32 1, %s5
  %s8 = scalar_select 0, %s7, %s5
  // Predicated region
  $region2: #{nlayer_discriminator.8} parent=0 // pred_check
    _
  $region3: #{nlayer_discriminator.8} parent=0 // pred_check_branch
    %10 = sbr.rel (0) target = $region5
  $region4: #{nlayer_discriminator.8} parent=0 // pred_region
    _
  $region5: #{nlayer_discriminator.8} parent=0 // pred_fallthru
    _
  // Predicated region
  $region6: #{nlayer_discriminator.8} parent=0 // pred_check
    _
  $region7: #{nlayer_discriminator.8} parent=0 // pred_check_branch
    %12 = sbr.rel (0) target = $region9
  $region8: #{nlayer_discriminator.8} parent=0 // pred_region
    _
  $region9: #{nlayer_discriminator.8} parent=0 // pred_fallthru
    _
  // Predicated region
  $region10: #{nlayer_discriminator.8} parent=0 // pred_check
    _
  $region11: #{nlayer_discriminator.8} parent=0 // pred_check_branch
    %14 = sbr.rel (0) target = $region13
  $region12: #{nlayer_discriminator.8} parent=0 // pred_region
    _
  $region13: #{nlayer_discriminator.8} parent=0 // pred_fallthru
    _
  // Predicated region
  $region14: #{nlayer_discriminator.8} parent=0 // pred_check
    _
  $region15: #{nlayer_discriminator.8} parent=0 // pred_check_branch
    %16 = sbr.rel (0) target = $region17
  $region16: #{nlayer_discriminator.8} parent=0 // pred_region
    _
  $region17: #{nlayer_discriminator.8} parent=0 // pred_fallthru
    _
  %v17 = vld [vmem:[%s0] sm:$0xff]
  %v18 = vld [vmem:[%s0 + $0x8] sm:$0xff]
  %v19 = vld [vmem:[%s0 + $0x10] sm:$0xff]
  %v20 = vld [vmem:[%s0 + $0x18] sm:$0xff]
  %v21 = vld [vmem:[%s0 + $0x20] sm:$0xff]
  %v22 = vld [vmem:[%s0 + $0x28] sm:$0xff]
  %v23 = vld [vmem:[%s0 + $0x30] sm:$0xff]
  %v24 = vld [vmem:[%s0 + $0x38] sm:$0xff]
  %v25 = vld [vmem:[%s0 + $0x40] sm:$0xff]
  %v26 = vld [vmem:[%s0 + $0x48] sm:$0xff]
  %v27 = vld [vmem:[%s0 + $0x50] sm:$0xff]
  %v28 = vld [vmem:[%s0 + $0x58] sm:$0xff]
  %v29 = vld [vmem:[%s0 + $0x60] sm:$0xff]
  %v30 = vld [vmem:[%s0 + $0x68] sm:$0xff]
  %v31 = vld [vmem:[%s0 + $0x70] sm:$0xff]
  %v32 = vld [vmem:[%s0 + $0x78] sm:$0xff]
  %v33 = vld [vmem:[%s1] sm:$0xff]
  %v34 = vld [vmem:[%s1 + $0x8] sm:$0xff]
  %v35 = vld [vmem:[%s1 + $0x10] sm:$0xff]
  %v36 = vld [vmem:[%s1 + $0x18] sm:$0xff]
  %v37 = vld [vmem:[%s2] sm:$0xff]
  %v38 = vld [vmem:[%s2 + $0x8] sm:$0xff]
  %v39 = vld [vmem:[%s2 + $0x10] sm:$0xff]
  %v40 = vld [vmem:[%s2 + $0x18] sm:$0xff]
  %vm41 = vcmask 31744
  %v43 = vsel %vm41, %v17, 0
  %v46 = vsel %vm41, %v18, 0
  %v49 = vsel %vm41, %v19, 0
  %v52 = vsel %vm41, %v20, 0
  %v55 = vsel %vm41, %v21, 0
  %v58 = vsel %vm41, %v22, 0
  %v61 = vsel %vm41, %v23, 0
  %v64 = vsel %vm41, %v24, 0
  %v67 = vsel %vm41, %v33, 0
  %v70 = vsel %vm41, %v34, 0
  %72 = vmatpush.xpose.msra.mxu0 0.0
  %73 = vmatpush.xpose.msra.mxu0 0.0
  %74 = vmatpush.xpose.msra.mxu0 0.0
  %75 = vmatpush.xpose.msra.mxu0 0.0
  %76 = vmatpush.xpose.msra.mxu0 0.0
  %77 = vmatpush.xpose.msra.mxu0 0.0
  %78 = vmatpush.xpose.msra.mxu0 0.0
  %79 = vmatpush.xpose.msra.mxu0 0.0
  %80 = vmatpush.xpose.msra.mxu0 0.0
  %81 = vmatpush.xpose.msra.mxu0 0.0
  %82 = vmatpush.xpose.msra.mxu0 0.0
  %83 = vmatpush.xpose.msra.mxu0 0.0
  %84 = vmatpush.xpose.msra.mxu0 0.0
  %85 = vmatpush.xpose.msra.mxu0 0.0
  %86 = vmatpush.xpose.msra.mxu0 %v70
  %87 = vmatpush.xpose.msra.mxu0 %v67
  %88 = vmatmul.f32.gmra.mxu0 %v43
  %v89 = vpop.f32.mrf.mxu0
  %v90 = vadd.f32 0.0, %v89
  %91 = vmatmul.f32.gmra.mxu0 %v46
  %v92 = vpop.f32.mrf.mxu0
  %v93 = vadd.f32 0.0, %v92
  %94 = vmatmul.f32.gmra.mxu0 %v49
  %v95 = vpop.f32.mrf.mxu0
  %v96 = vadd.f32 0.0, %v95
  %97 = vmatmul.f32.gmra.mxu0 %v52
  %v98 = vpop.f32.mrf.mxu0
  %v99 = vadd.f32 0.0, %v98
  %100 = vmatmul.f32.gmra.mxu0 %v55
  %v101 = vpop.f32.mrf.mxu0
  %v102 = vadd.f32 0.0, %v101
  %103 = vmatmul.f32.gmra.mxu0 %v58
  %v104 = vpop.f32.mrf.mxu0
  %v105 = vadd.f32 0.0, %v104
  %106 = vmatmul.f32.gmra.mxu0 %v61
  %v107 = vpop.f32.mrf.mxu0
  %v108 = vadd.f32 0.0, %v107
  %109 = vmatmul.f32.gmra.mxu0 %v64
  %v110 = vpop.f32.mrf.mxu0
  %v111 = vadd.f32 0.0, %v110
  %112 = vdwg.mxu0
  %v114 = vsel %vm41, %v25, 0
  %v117 = vsel %vm41, %v26, 0
  %v120 = vsel %vm41, %v27, 0
  %v123 = vsel %vm41, %v28, 0
  %v126 = vsel %vm41, %v29, 0
  %v129 = vsel %vm41, %v30, 0
  %v132 = vsel %vm41, %v31, 0
  %v135 = vsel %vm41, %v32, 0
  %v138 = vsel %vm41, %v35, 0
  %v141 = vsel %vm41, %v36, 0
  %143 = vmatpush.xpose.msra.mxu0 0.0
  %144 = vmatpush.xpose.msra.mxu0 0.0
  %145 = vmatpush.xpose.msra.mxu0 0.0
  %146 = vmatpush.xpose.msra.mxu0 0.0
  %147 = vmatpush.xpose.msra.mxu0 0.0
  %148 = vmatpush.xpose.msra.mxu0 0.0
  %149 = vmatpush.xpose.msra.mxu0 0.0
  %150 = vmatpush.xpose.msra.mxu0 0.0
  %151 = vmatpush.xpose.msra.mxu0 0.0
  %152 = vmatpush.xpose.msra.mxu0 0.0
  %153 = vmatpush.xpose.msra.mxu0 0.0
  %154 = vmatpush.xpose.msra.mxu0 0.0
  %155 = vmatpush.xpose.msra.mxu0 0.0
  %156 = vmatpush.xpose.msra.mxu0 0.0
  %157 = vmatpush.xpose.msra.mxu0 %v141
  %158 = vmatpush.xpose.msra.mxu0 %v138
  %159 = vmatmul.f32.gmra.mxu0 %v114
  %v160 = vpop.f32.mrf.mxu0
  %v161 = vadd.f32 0.0, %v160
  %162 = vmatmul.f32.gmra.mxu0 %v117
  %v163 = vpop.f32.mrf.mxu0
  %v164 = vadd.f32 0.0, %v163
  %165 = vmatmul.f32.gmra.mxu0 %v120
  %v166 = vpop.f32.mrf.mxu0
  %v167 = vadd.f32 0.0, %v166
  %168 = vmatmul.f32.gmra.mxu0 %v123
  %v169 = vpop.f32.mrf.mxu0
  %v170 = vadd.f32 0.0, %v169
  %171 = vmatmul.f32.gmra.mxu0 %v126
  %v172 = vpop.f32.mrf.mxu0
  %v173 = vadd.f32 0.0, %v172
  %174 = vmatmul.f32.gmra.mxu0 %v129
  %v175 = vpop.f32.mrf.mxu0
  %v176 = vadd.f32 0.0, %v175
  %177 = vmatmul.f32.gmra.mxu0 %v132
  %v178 = vpop.f32.mrf.mxu0
  %v179 = vadd.f32 0.0, %v178
  %180 = vmatmul.f32.gmra.mxu0 %v135
  %v181 = vpop.f32.mrf.mxu0
  %v182 = vadd.f32 0.0, %v181
  %183 = vdwg.mxu0
  %vm184 = vcmask 130048
  %v185 = vsel %vm184, %v90, -inf
  %186 = vmax.xlane.f32.xlu0 %v185
  %v187 = vpop.xlane.xlu0 %186
  %v188 = vsel %vm184, %v93, -inf
  %189 = vmax.xlane.f32.xlu0 %v188
  %v190 = vpop.xlane.xlu0 %189
  %v191 = vsel %vm184, %v96, -inf
  %192 = vmax.xlane.f32.xlu0 %v191
  %v193 = vpop.xlane.xlu0 %192
  %v194 = vsel %vm184, %v99, -inf
  %195 = vmax.xlane.f32.xlu0 %v194
  %v196 = vpop.xlane.xlu0 %195
  %v197 = vsel %vm184, %v102, -inf
  %198 = vmax.xlane.f32.xlu0 %v197
  %v199 = vpop.xlane.xlu0 %198
  %v200 = vsel %vm184, %v105, -inf
  %201 = vmax.xlane.f32.xlu0 %v200
  %v202 = vpop.xlane.xlu0 %201
  %v203 = vsel %vm184, %v108, -inf
  %204 = vmax.xlane.f32.xlu0 %v203
  %v205 = vpop.xlane.xlu0 %204
  %v206 = vsel %vm184, %v111, -inf
  %207 = vmax.xlane.f32.xlu0 %v206
  %v208 = vpop.xlane.xlu0 %207
  %v209 = vsel %vm184, %v161, -inf
  %210 = vmax.xlane.f32.xlu0 %v209
  %v211 = vpop.xlane.xlu0 %210
  %v212 = vsel %vm184, %v164, -inf
  %213 = vmax.xlane.f32.xlu0 %v212
  %v214 = vpop.xlane.xlu0 %213
  %v215 = vsel %vm184, %v167, -inf
  %216 = vmax.xlane.f32.xlu0 %v215
  %v217 = vpop.xlane.xlu0 %216
  %v218 = vsel %vm184, %v170, -inf
  %219 = vmax.xlane.f32.xlu0 %v218
  %v220 = vpop.xlane.xlu0 %219
  %v221 = vsel %vm184, %v173, -inf
  %222 = vmax.xlane.f32.xlu0 %v221
  %v223 = vpop.xlane.xlu0 %222
  %v224 = vsel %vm184, %v176, -inf
  %225 = vmax.xlane.f32.xlu0 %v224
  %v226 = vpop.xlane.xlu0 %225
  %v227 = vsel %vm184, %v179, -inf
  %228 = vmax.xlane.f32.xlu0 %v227
  %v229 = vpop.xlane.xlu0 %228
  %v230 = vsel %vm184, %v182, -inf
  %231 = vmax.xlane.f32.xlu0 %v230
  %v232 = vpop.xlane.xlu0 %231
  %v233 = vsub.f32 %v90, %v187
  %v234 = vsub.f32 %v93, %v190
  %v235 = vsub.f32 %v96, %v193
  %v236 = vsub.f32 %v99, %v196
  %v237 = vsub.f32 %v102, %v199
  %v238 = vsub.f32 %v105, %v202
  %v239 = vsub.f32 %v108, %v205
  %v240 = vsub.f32 %v111, %v208
  %v241 = vsub.f32 %v161, %v211
  %v242 = vsub.f32 %v164, %v214
  %v243 = vsub.f32 %v167, %v217
  %v244 = vsub.f32 %v170, %v220
  %v245 = vsub.f32 %v173, %v223
  %v246 = vsub.f32 %v176, %v226
  %v247 = vsub.f32 %v179, %v229
  %v248 = vsub.f32 %v182, %v232
  %v249 = vmul.f32 %v233, 1.442695
  %v250 = vpow.pop %v249
  %v251 = vmul.f32 %v234, 1.442695
  %v252 = vpow.pop %v251
  %v253 = vmul.f32 %v235, 1.442695
  %v254 = vpow.pop %v253
  %v255 = vmul.f32 %v236, 1.442695
  %v256 = vpow.pop %v255
  %v257 = vmul.f32 %v237, 1.442695
  %v258 = vpow.pop %v257
  %v259 = vmul.f32 %v238, 1.442695
  %v260 = vpow.pop %v259
  %v261 = vmul.f32 %v239, 1.442695
  %v262 = vpow.pop %v261
  %v263 = vmul.f32 %v240, 1.442695
  %v264 = vpow.pop %v263
  %v265 = vmul.f32 %v241, 1.442695
  %v266 = vpow.pop %v265
  %v267 = vmul.f32 %v242, 1.442695
  %v268 = vpow.pop %v267
  %v269 = vmul.f32 %v243, 1.442695
  %v270 = vpow.pop %v269
  %v271 = vmul.f32 %v244, 1.442695
  %v272 = vpow.pop %v271
  %v273 = vmul.f32 %v245, 1.442695
  %v274 = vpow.pop %v273
  %v275 = vmul.f32 %v246, 1.442695
  %v276 = vpow.pop %v275
  %v277 = vmul.f32 %v247, 1.442695
  %v278 = vpow.pop %v277
  %v279 = vmul.f32 %v248, 1.442695
  %v280 = vpow.pop %v279
  %v281 = vsel %vm184, %v250, 0.0
  %282 = vadd.xlane.f32.xlu0 %v281
  %v283 = vpop.xlane.xlu0 %282
  %v284 = vsel %vm184, %v252, 0.0
  %285 = vadd.xlane.f32.xlu0 %v284
  %v286 = vpop.xlane.xlu0 %285
  %v287 = vsel %vm184, %v254, 0.0
  %288 = vadd.xlane.f32.xlu0 %v287
  %v289 = vpop.xlane.xlu0 %288
  %v290 = vsel %vm184, %v256, 0.0
  %291 = vadd.xlane.f32.xlu0 %v290
  %v292 = vpop.xlane.xlu0 %291
  %v293 = vsel %vm184, %v258, 0.0
  %294 = vadd.xlane.f32.xlu0 %v293
  %v295 = vpop.xlane.xlu0 %294
  %v296 = vsel %vm184, %v260, 0.0
  %297 = vadd.xlane.f32.xlu0 %v296
  %v298 = vpop.xlane.xlu0 %297
  %v299 = vsel %vm184, %v262, 0.0
  %300 = vadd.xlane.f32.xlu0 %v299
  %v301 = vpop.xlane.xlu0 %300
  %v302 = vsel %vm184, %v264, 0.0
  %303 = vadd.xlane.f32.xlu0 %v302
  %v304 = vpop.xlane.xlu0 %303
  %v305 = vsel %vm184, %v266, 0.0
  %306 = vadd.xlane.f32.xlu0 %v305
  %v307 = vpop.xlane.xlu0 %306
  %v308 = vsel %vm184, %v268, 0.0
  %309 = vadd.xlane.f32.xlu0 %v308
  %v310 = vpop.xlane.xlu0 %309
  %v311 = vsel %vm184, %v270, 0.0
  %312 = vadd.xlane.f32.xlu0 %v311
  %v313 = vpop.xlane.xlu0 %312
  %v314 = vsel %vm184, %v272, 0.0
  %315 = vadd.xlane.f32.xlu0 %v314
  %v316 = vpop.xlane.xlu0 %315
  %v317 = vsel %vm184, %v274, 0.0
  %318 = vadd.xlane.f32.xlu0 %v317
  %v319 = vpop.xlane.xlu0 %318
  %v320 = vsel %vm184, %v276, 0.0
  %321 = vadd.xlane.f32.xlu0 %v320
  %v322 = vpop.xlane.xlu0 %321
  %v323 = vsel %vm184, %v278, 0.0
  %324 = vadd.xlane.f32.xlu0 %v323
  %v325 = vpop.xlane.xlu0 %324
  %v326 = vsel %vm184, %v280, 0.0
  %327 = vadd.xlane.f32.xlu0 %v326
  %v328 = vpop.xlane.xlu0 %327
  %v329 = vrcp.pop %v283
  %v330 = vrcp.pop %v286
  %v331 = vrcp.pop %v289
  %v332 = vrcp.pop %v292
  %v333 = vrcp.pop %v295
  %v334 = vrcp.pop %v298
  %v335 = vrcp.pop %v301
  %v336 = vrcp.pop %v304
  %v337 = vrcp.pop %v307
  %v338 = vrcp.pop %v310
  %v339 = vrcp.pop %v313
  %v340 = vrcp.pop %v316
  %v341 = vrcp.pop %v319
  %v342 = vrcp.pop %v322
  %v343 = vrcp.pop %v325
  %v344 = vrcp.pop %v328
  %v345 = vmul.f32 %v250, %v329
  %v346 = vmul.f32 %v252, %v330
  %v347 = vmul.f32 %v254, %v331
  %v348 = vmul.f32 %v256, %v332
  %v349 = vmul.f32 %v258, %v333
  %v350 = vmul.f32 %v260, %v334
  %v351 = vmul.f32 %v262, %v335
  %v352 = vmul.f32 %v264, %v336
  %v353 = vmul.f32 %v266, %v337
  %v354 = vmul.f32 %v268, %v338
  %v355 = vmul.f32 %v270, %v339
  %v356 = vmul.f32 %v272, %v340
  %v357 = vmul.f32 %v274, %v341
  %v358 = vmul.f32 %v276, %v342
  %v359 = vmul.f32 %v278, %v343
  %v360 = vmul.f32 %v280, %v344
  %v361 = vld [vmem:[%s3] sm:$0xff]
  %v362 = vld [vmem:[%s3 + $0x8] sm:$0xff]
  %v363 = vld [vmem:[%s3 + $0x10] sm:$0xff]
  %v364 = vld [vmem:[%s3 + $0x18] sm:$0xff]
  %v365 = vld [vmem:[%s3 + $0x20] sm:$0xff]
  %v366 = vld [vmem:[%s3 + $0x28] sm:$0xff]
  %v367 = vld [vmem:[%s3 + $0x30] sm:$0xff]
  %v368 = vld [vmem:[%s3 + $0x38] sm:$0xff]
  %v369 = vld [vmem:[%s3 + $0x40] sm:$0xff]
  %v370 = vld [vmem:[%s3 + $0x48] sm:$0xff]
  %v371 = vld [vmem:[%s3 + $0x50] sm:$0xff]
  %v372 = vld [vmem:[%s3 + $0x58] sm:$0xff]
  %v373 = vld [vmem:[%s3 + $0x60] sm:$0xff]
  %v374 = vld [vmem:[%s3 + $0x68] sm:$0xff]
  %v375 = vld [vmem:[%s3 + $0x70] sm:$0xff]
  %v376 = vld [vmem:[%s3 + $0x78] sm:$0xff]
  %v378 = vsel %vm184, %v345, 0
  %v381 = vsel %vm184, %v346, 0
  %v384 = vsel %vm184, %v347, 0
  %v387 = vsel %vm184, %v348, 0
  %v390 = vsel %vm184, %v349, 0
  %v393 = vsel %vm184, %v350, 0
  %v396 = vsel %vm184, %v351, 0
  %v399 = vsel %vm184, %v352, 0
  %401 = vmatpush.msra.mxu0 0.0
  %402 = vmatpush.msra.mxu0 0.0
  %403 = vmatpush.msra.mxu0 0.0
  %404 = vmatpush.msra.mxu0 0.0
  %405 = vmatpush.msra.mxu0 0.0
  %406 = vmatpush.msra.mxu0 0.0
  %407 = vmatpush.msra.mxu0 0.0
  %408 = vmatpush.msra.mxu0 0.0
  %409 = vmatpush.msra.mxu0 0.0
  %410 = vmatpush.msra.mxu0 0.0
  %411 = vmatpush.msra.mxu0 0.0
  %412 = vmatpush.msra.mxu0 0.0
  %413 = vmatpush.msra.mxu0 0.0
  %414 = vmatpush.msra.mxu0 0.0
  %415 = vmatpush.msra.mxu0 %v38
  %416 = vmatpush.msra.mxu0 %v37
  %417 = vmatmul.f32.gmra.mxu0 %v378
  %v418 = vpop.f32.mrf.mxu0
  %v419 = vadd.f32 %v361, %v418
  %420 = vmatmul.f32.gmra.mxu0 %v381
  %v421 = vpop.f32.mrf.mxu0
  %v422 = vadd.f32 %v362, %v421
  %423 = vmatmul.f32.gmra.mxu0 %v384
  %v424 = vpop.f32.mrf.mxu0
  %v425 = vadd.f32 %v363, %v424
  %426 = vmatmul.f32.gmra.mxu0 %v387
  %v427 = vpop.f32.mrf.mxu0
  %v428 = vadd.f32 %v364, %v427
  %429 = vmatmul.f32.gmra.mxu0 %v390
  %v430 = vpop.f32.mrf.mxu0
  %v431 = vadd.f32 %v365, %v430
  %432 = vmatmul.f32.gmra.mxu0 %v393
  %v433 = vpop.f32.mrf.mxu0
  %v434 = vadd.f32 %v366, %v433
  %435 = vmatmul.f32.gmra.mxu0 %v396
  %v436 = vpop.f32.mrf.mxu0
  %v437 = vadd.f32 %v367, %v436
  %438 = vmatmul.f32.gmra.mxu0 %v399
  %v439 = vpop.f32.mrf.mxu0
  %v440 = vadd.f32 %v368, %v439
  %441 = vdwg.mxu0
  %v443 = vsel %vm184, %v353, 0
  %v446 = vsel %vm184, %v354, 0
  %v449 = vsel %vm184, %v355, 0
  %v452 = vsel %vm184, %v356, 0
  %v455 = vsel %vm184, %v357, 0
  %v458 = vsel %vm184, %v358, 0
  %v461 = vsel %vm184, %v359, 0
  %v464 = vsel %vm184, %v360, 0
  %466 = vmatpush.msra.mxu0 0.0
  %467 = vmatpush.msra.mxu0 0.0
  %468 = vmatpush.msra.mxu0 0.0
  %469 = vmatpush.msra.mxu0 0.0
  %470 = vmatpush.msra.mxu0 0.0
  %471 = vmatpush.msra.mxu0 0.0
  %472 = vmatpush.msra.mxu0 0.0
  %473 = vmatpush.msra.mxu0 0.0
  %474 = vmatpush.msra.mxu0 0.0
  %475 = vmatpush.msra.mxu0 0.0
  %476 = vmatpush.msra.mxu0 0.0
  %477 = vmatpush.msra.mxu0 0.0
  %478 = vmatpush.msra.mxu0 0.0
  %479 = vmatpush.msra.mxu0 0.0
  %480 = vmatpush.msra.mxu0 %v40
  %481 = vmatpush.msra.mxu0 %v39
  %482 = vmatmul.f32.gmra.mxu0 %v443
  %v483 = vpop.f32.mrf.mxu0
  %v484 = vadd.f32 %v369, %v483
  %485 = vmatmul.f32.gmra.mxu0 %v446
  %v486 = vpop.f32.mrf.mxu0
  %v487 = vadd.f32 %v370, %v486
  %488 = vmatmul.f32.gmra.mxu0 %v449
  %v489 = vpop.f32.mrf.mxu0
  %v490 = vadd.f32 %v371, %v489
  %491 = vmatmul.f32.gmra.mxu0 %v452
  %v492 = vpop.f32.mrf.mxu0
  %v493 = vadd.f32 %v372, %v492
  %494 = vmatmul.f32.gmra.mxu0 %v455
  %v495 = vpop.f32.mrf.mxu0
  %v496 = vadd.f32 %v373, %v495
  %497 = vmatmul.f32.gmra.mxu0 %v458
  %v498 = vpop.f32.mrf.mxu0
  %v499 = vadd.f32 %v374, %v498
  %500 = vmatmul.f32.gmra.mxu0 %v461
  %v501 = vpop.f32.mrf.mxu0
  %v502 = vadd.f32 %v375, %v501
  %503 = vmatmul.f32.gmra.mxu0 %v464
  %v504 = vpop.f32.mrf.mxu0
  %v505 = vadd.f32 %v376, %v504
  %506 = vdwg.mxu0
  %vm507 = vcmp.ge.f32.partialorder %v419, 0.0
  %vm508 = vcmp.ge.f32.partialorder %v422, 0.0
  %vm509 = vcmp.ge.f32.partialorder %v425, 0.0
  %vm510 = vcmp.ge.f32.partialorder %v428, 0.0
  %vm511 = vcmp.ge.f32.partialorder %v431, 0.0
  %vm512 = vcmp.ge.f32.partialorder %v434, 0.0
  %vm513 = vcmp.ge.f32.partialorder %v437, 0.0
  %vm514 = vcmp.ge.f32.partialorder %v440, 0.0
  %vm515 = vcmp.ge.f32.partialorder %v484, 0.0
  %vm516 = vcmp.ge.f32.partialorder %v487, 0.0
  %vm517 = vcmp.ge.f32.partialorder %v490, 0.0
  %vm518 = vcmp.ge.f32.partialorder %v493, 0.0
  %vm519 = vcmp.ge.f32.partialorder %v496, 0.0
  %vm520 = vcmp.ge.f32.partialorder %v499, 0.0
  %vm521 = vcmp.ge.f32.partialorder %v502, 0.0
  %vm522 = vcmp.ge.f32.partialorder %v505, 0.0
  %v523 = vmul.f32 %v419, 0.2
  %v524 = vmul.f32 %v422, 0.2
  %v525 = vmul.f32 %v425, 0.2
  %v526 = vmul.f32 %v428, 0.2
  %v527 = vmul.f32 %v431, 0.2
  %v528 = vmul.f32 %v434, 0.2
  %v529 = vmul.f32 %v437, 0.2
  %v530 = vmul.f32 %v440, 0.2
  %v531 = vmul.f32 %v484, 0.2
  %v532 = vmul.f32 %v487, 0.2
  %v533 = vmul.f32 %v490, 0.2
  %v534 = vmul.f32 %v493, 0.2
  %v535 = vmul.f32 %v496, 0.2
  %v536 = vmul.f32 %v499, 0.2
  %v537 = vmul.f32 %v502, 0.2
  %v538 = vmul.f32 %v505, 0.2
  %v539 = vsel %vm507, %v419, %v523
  %v540 = vsel %vm508, %v422, %v524
  %v541 = vsel %vm509, %v425, %v525
  %v542 = vsel %vm510, %v428, %v526
  %v543 = vsel %vm511, %v431, %v527
  %v544 = vsel %vm512, %v434, %v528
  %v545 = vsel %vm513, %v437, %v529
  %v546 = vsel %vm514, %v440, %v530
  %v547 = vsel %vm515, %v484, %v531
  %v548 = vsel %vm516, %v487, %v532
  %v549 = vsel %vm517, %v490, %v533
  %v550 = vsel %vm518, %v493, %v534
  %v551 = vsel %vm519, %v496, %v535
  %v552 = vsel %vm520, %v499, %v536
  %v553 = vsel %vm521, %v502, %v537
  %v554 = vsel %vm522, %v505, %v538
  %555 = vst.msk [vmem:[%s4] sm:$0xff] %vm184, %v539
  %556 = vst.msk [vmem:[%s4 + $0x8] sm:$0xff] %vm184, %v540
  %557 = vst.msk [vmem:[%s4 + $0x10] sm:$0xff] %vm184, %v541
  %558 = vst.msk [vmem:[%s4 + $0x18] sm:$0xff] %vm184, %v542
  %559 = vst.msk [vmem:[%s4 + $0x20] sm:$0xff] %vm184, %v543
  %560 = vst.msk [vmem:[%s4 + $0x28] sm:$0xff] %vm184, %v544
  %561 = vst.msk [vmem:[%s4 + $0x30] sm:$0xff] %vm184, %v545
  %562 = vst.msk [vmem:[%s4 + $0x38] sm:$0xff] %vm184, %v546
  %563 = vst.msk [vmem:[%s4 + $0x40] sm:$0xff] %vm184, %v547
  %564 = vst.msk [vmem:[%s4 + $0x48] sm:$0xff] %vm184, %v548
  %565 = vst.msk [vmem:[%s4 + $0x50] sm:$0xff] %vm184, %v549
  %566 = vst.msk [vmem:[%s4 + $0x58] sm:$0xff] %vm184, %v550
  %567 = vst.msk [vmem:[%s4 + $0x60] sm:$0xff] %vm184, %v551
  %568 = vst.msk [vmem:[%s4 + $0x68] sm:$0xff] %vm184, %v552
  %569 = vst.msk [vmem:[%s4 + $0x70] sm:$0xff] %vm184, %v553
  %570 = vst.msk [vmem:[%s4 + $0x78] sm:$0xff] %vm184, %v554
  // Predicated region
  $region18: #{nlayer_discriminator.8} parent=0 // pred_check
    _
  $region19: #{nlayer_discriminator.8} parent=0 // pred_check_branch
    %572 = sbr.rel (0) target = $region21
  $region20: #{nlayer_discriminator.8} parent=0 // pred_region
    _
  $region21: #{nlayer_discriminator.8} parent=0 // pred_fallthru
    _
  // Predicated region
  $region22: #{nlayer_discriminator.8} parent=0 // pred_check
    _
  $region23: #{nlayer_discriminator.8} parent=0 // pred_check_branch
    %574 = sbr.rel (0) target = $region25
  $region24: #{nlayer_discriminator.8} parent=0 // pred_region
    _
  $region25: #{nlayer_discriminator.8} parent=0 // pred_fallthru
    _

// kernel: nlayer_discriminator.9
$region0: #{nlayer_discriminator.9}
  #allocation0 [shape = 'u32[]', space=smem, size = 0x4, offset = 0x4, fixed_abs, tag = 'smem constant byte address 0x4 - core index']
  #allocation1 [shape = 'u32[72,128]{1,0:T(1,128)}', space=vmem, size = 0x9000, scoped, tag = 'internal scratch']
  %s0 = inlined_call_operand.vmem [shape: f32[32,256], index: 0, kind: input, shape index: {}]
  %s1 = inlined_call_operand.vmem [shape: f32[256,32], index: 1, kind: input, shape index: {}]
  %s2 = inlined_call_operand.vmem [shape: f32[1,32], index: 2, kind: input, shape index: {}]
  %s3 = inlined_call_operand.vmem [shape: f32[1,32], index: 3, kind: input, shape index: {}]
  %s4 = inlined_call_operand.vmem [shape: f32[32,8], index: 4, kind: input, shape index: {}]
  %s5 = inlined_call_operand.vmem [shape: f32[1,8], index: 5, kind: input, shape index: {}]
  %s6 = inlined_call_operand.vmem [shape: f32[32,8], index: 6, kind: input, shape index: {}]
  %s7 = inlined_call_operand.vmem [shape: f32[1,8], index: 7, kind: input, shape index: {}]
  %s8 = inlined_call_operand.vmem [shape: f32[32,32], index: 8, kind: input, shape index: {}]
  %s9 = inlined_call_operand.vmem [shape: f32[1,32], index: 9, kind: input, shape index: {}]
  %s10 = inlined_call_operand.vmem [shape: f32[4,8,32], index: 10, kind: input, shape index: {}]
  %s11 = inlined_call_operand.vmem [shape: f32[32,32], index: 11, kind: output, shape index: {0}]
  %s12 = inlined_call_operand.vmem [shape: f32[32,8], index: 12, kind: output, shape index: {1}]
  %s13 = inlined_call_operand.vmem [shape: f32[8,8], index: 13, kind: output, shape index: {2}]
  %s14 = inlined_call_operand.vmem [shape: f32[8,32], index: 14, kind: output, shape index: {3}]
  %15 = xla_tuple %s11, %s12, %s13, %s14
  %s16 = sld [smem:[#allocation0]]
  $region78: #{nlayer_discriminator.9} parent=0
    _
  %s18 = ssub.s32 1, %s16
  %s19 = scalar_select 0, %s18, %s16
  // Predicated region
  $region2: #{nlayer_discriminator.9} parent=0 // pred_check
    _
  $region3: #{nlayer_discriminator.9} parent=0 // pred_check_branch
    %21 = sbr.rel (0) target = $region5
  $region4: #{nlayer_discriminator.9} parent=0 // pred_region
    _
  $region5: #{nlayer_discriminator.9} parent=0 // pred_fallthru
    _
  // Predicated region
  $region6: #{nlayer_discriminator.9} parent=0 // pred_check
    _
  $region7: #{nlayer_discriminator.9} parent=0 // pred_check_branch
    %23 = sbr.rel (0) target = $region9
  $region8: #{nlayer_discriminator.9} parent=0 // pred_region
    _
  $region9: #{nlayer_discriminator.9} parent=0 // pred_fallthru
    _
  // Predicated region
  $region10: #{nlayer_discriminator.9} parent=0 // pred_check
    _
  $region11: #{nlayer_discriminator.9} parent=0 // pred_check_branch
    %25 = sbr.rel (0) target = $region13
  $region12: #{nlayer_discriminator.9} parent=0 // pred_region
    _
  $region13: #{nlayer_discriminator.9} parent=0 // pred_fallthru
    _
  // Predicated region
  $region14: #{nlayer_discriminator.9} parent=0 // pred_check
    _
  $region15: #{nlayer_discriminator.9} parent=0 // pred_check_branch
    %27 = sbr.rel (0) target = $region17
  $region16: #{nlayer_discriminator.9} parent=0 // pred_region
    _
  $region17: #{nlayer_discriminator.9} parent=0 // pred_fallthru
    _
  // Predicated region
  $region18: #{nlayer_discriminator.9} parent=0 // pred_check
    _
  $region19: #{nlayer_discriminator.9} parent=0 // pred_check_branch
    %29 = sbr.rel (0) target = $region21
  $region20: #{nlayer_discriminator.9} parent=0 // pred_region
    _
  $region21: #{nlayer_discriminator.9} parent=0 // pred_fallthru
    _
  // Predicated region
  $region22: #{nlayer_discriminator.9} parent=0 // pred_check
    _
  $region23: #{nlayer_discriminator.9} parent=0 // pred_check_branch
    %31 = sbr.rel (0) target = $region25
  $region24: #{nlayer_discriminator.9} parent=0 // pred_region
    _
  $region25: #{nlayer_discriminator.9} parent=0 // pred_fallthru
    _
  // Predicated region
  $region26: #{nlayer_discriminator.9} parent=0 // pred_check
    _
  $region27: #{nlayer_discriminator.9} parent=0 // pred_check_branch
    %33 = sbr.rel (0) target = $region29
  $region28: #{nlayer_discriminator.9} parent=0 // pred_region
    _
  $region29: #{nlayer_discriminator.9} parent=0 // pred_fallthru
    _
  // Predicated region
  $region30: #{nlayer_discriminator.9} parent=0 // pred_check
    _
  $region31: #{nlayer_discriminator.9} parent=0 // pred_check_branch
    %35 = sbr.rel (0) target = $region33
  $region32: #{nlayer_discriminator.9} parent=0 // pred_region
    _
  $region33: #{nlayer_discriminator.9} parent=0 // pred_fallthru
    _
  // Predicated region
  $region34: #{nlayer_discriminator.9} parent=0 // pred_check
    _
  $region35: #{nlayer_discriminator.9} parent=0 // pred_check_branch
    %37 = sbr.rel (0) target = $region37
  $region36: #{nlayer_discriminator.9} parent=0 // pred_region
    _
  $region37: #{nlayer_discriminator.9} parent=0 // pred_fallthru
    _
  // Predicated region
  $region38: #{nlayer_discriminator.9} parent=0 // pred_check
    _
  $region39: #{nlayer_discriminator.9} parent=0 // pred_check_branch
    %39 = sbr.rel (0) target = $region41
  $region40: #{nlayer_discriminator.9} parent=0 // pred_region
    _
  $region41: #{nlayer_discriminator.9} parent=0 // pred_fallthru
    _
  // Predicated region
  $region42: #{nlayer_discriminator.9} parent=0 // pred_check
    _
  $region43: #{nlayer_discriminator.9} parent=0 // pred_check_branch
    %41 = sbr.rel (0) target = $region45
  $region44: #{nlayer_discriminator.9} parent=0 // pred_region
    _
  $region45: #{nlayer_discriminator.9} parent=0 // pred_fallthru
    _
  %v42 = vld [vmem:[%s0] sm:$0xff]
  %v43 = vld [vmem:[%s0 + $0x8] sm:$0xff]
  %v44 = vld [vmem:[%s0 + $0x10] sm:$0xff]
  %v45 = vld [vmem:[%s0 + $0x18] sm:$0xff]
  %v46 = vld [vmem:[%s0 + $0x20] sm:$0xff]
  %v47 = vld [vmem:[%s0 + $0x28] sm:$0xff]
  %v48 = vld [vmem:[%s0 + $0x30] sm:$0xff]
  %v49 = vld [vmem:[%s0 + $0x38] sm:$0xff]
  %v50 = vld [vmem:[%s1] sm:$0xff]
  %v51 = vld [vmem:[%s1 + $0x8] sm:$0xff]
  %v52 = vld [vmem:[%s1 + $0x10] sm:$0xff]
  %v53 = vld [vmem:[%s1 + $0x18] sm:$0xff]
  %v54 = vld [vmem:[%s1 + $0x20] sm:$0xff]
  %v55 = vld [vmem:[%s1 + $0x28] sm:$0xff]
  %v56 = vld [vmem:[%s1 + $0x30] sm:$0xff]
  %v57 = vld [vmem:[%s1 + $0x38] sm:$0xff]
  %v58 = vld [vmem:[%s1 + $0x40] sm:$0xff]
  %v59 = vld [vmem:[%s1 + $0x48] sm:$0xff]
  %v60 = vld [vmem:[%s1 + $0x50] sm:$0xff]
  %v61 = vld [vmem:[%s1 + $0x58] sm:$0xff]
  %v62 = vld [vmem:[%s1 + $0x60] sm:$0xff]
  %v63 = vld [vmem:[%s1 + $0x68] sm:$0xff]
  %v64 = vld [vmem:[%s1 + $0x70] sm:$0xff]
  %v65 = vld [vmem:[%s1 + $0x78] sm:$0xff]
  %v66 = vld [vmem:[%s1 + $0x80] sm:$0xff]
  %v67 = vld [vmem:[%s1 + $0x88] sm:$0xff]
  %v68 = vld [vmem:[%s1 + $0x90] sm:$0xff]
  %v69 = vld [vmem:[%s1 + $0x98] sm:$0xff]
  %v70 = vld [vmem:[%s1 + $0xa0] sm:$0xff]
  %v71 = vld [vmem:[%s1 + $0xa8] sm:$0xff]
  %v72 = vld [vmem:[%s1 + $0xb0] sm:$0xff]
  %v73 = vld [vmem:[%s1 + $0xb8] sm:$0xff]
  %v74 = vld [vmem:[%s1 + $0xc0] sm:$0xff]
  %v75 = vld [vmem:[%s1 + $0xc8] sm:$0xff]
  %v76 = vld [vmem:[%s1 + $0xd0] sm:$0xff]
  %v77 = vld [vmem:[%s1 + $0xd8] sm:$0xff]
  %v78 = vld [vmem:[%s1 + $0xe0] sm:$0xff]
  %v79 = vld [vmem:[%s1 + $0xe8] sm:$0xff]
  %v80 = vld [vmem:[%s1 + $0xf0] sm:$0xff]
  %v81 = vld [vmem:[%s1 + $0xf8] sm:$0xff]
  %82 = vmatpush.msra.mxu0 %v65
  %83 = vmatpush.msra.mxu0 %v64
  %84 = vmatpush.msra.mxu0 %v63
  %85 = vmatpush.msra.mxu0 %v62
  %86 = vmatpush.msra.mxu0 %v61
  %87 = vmatpush.msra.mxu0 %v60
  %88 = vmatpush.msra.mxu0 %v59
  %89 = vmatpush.msra.mxu0 %v58
  %90 = vmatpush.msra.mxu0 %v57
  %91 = vmatpush.msra.mxu0 %v56
  %92 = vmatpush.msra.mxu0 %v55
  %93 = vmatpush.msra.mxu0 %v54
  %94 = vmatpush.msra.mxu0 %v53
  %95 = vmatpush.msra.mxu0 %v52
  %96 = vmatpush.msra.mxu0 %v51
  %97 = vmatpush.msra.mxu0 %v50
  %98 = vmatmul.f32.gmra.mxu0 %v42
  %v99 = vpop.f32.mrf.mxu0
  %v100 = vadd.f32 0.0, %v99
  %101 = vmatmul.f32.gmra.mxu0 %v44
  %v102 = vpop.f32.mrf.mxu0
  %v103 = vadd.f32 0.0, %v102
  %104 = vmatmul.f32.gmra.mxu0 %v46
  %v105 = vpop.f32.mrf.mxu0
  %v106 = vadd.f32 0.0, %v105
  %107 = vmatmul.f32.gmra.mxu0 %v48
  %v108 = vpop.f32.mrf.mxu0
  %v109 = vadd.f32 0.0, %v108
  %110 = vdwg.mxu0
  %111 = vmatpush.msra.mxu0 %v81
  %112 = vmatpush.msra.mxu0 %v80
  %113 = vmatpush.msra.mxu0 %v79
  %114 = vmatpush.msra.mxu0 %v78
  %115 = vmatpush.msra.mxu0 %v77
  %116 = vmatpush.msra.mxu0 %v76
  %117 = vmatpush.msra.mxu0 %v75
  %118 = vmatpush.msra.mxu0 %v74
  %119 = vmatpush.msra.mxu0 %v73
  %120 = vmatpush.msra.mxu0 %v72
  %121 = vmatpush.msra.mxu0 %v71
  %122 = vmatpush.msra.mxu0 %v70
  %123 = vmatpush.msra.mxu0 %v69
  %124 = vmatpush.msra.mxu0 %v68
  %125 = vmatpush.msra.mxu0 %v67
  %126 = vmatpush.msra.mxu0 %v66
  %127 = vmatmul.f32.gmra.mxu0 %v43
  %v128 = vpop.f32.mrf.mxu0
  %v129 = vadd.f32 %v100, %v128
  %130 = vmatmul.f32.gmra.mxu0 %v45
  %v131 = vpop.f32.mrf.mxu0
  %v132 = vadd.f32 %v103, %v131
  %133 = vmatmul.f32.gmra.mxu0 %v47
  %v134 = vpop.f32.mrf.mxu0
  %v135 = vadd.f32 %v106, %v134
  %136 = vmatmul.f32.gmra.mxu0 %v49
  %v137 = vpop.f32.mrf.mxu0
  %v138 = vadd.f32 %v109, %v137
  %139 = vdwg.mxu0
  %v140 = vld [vmem:[%s2] sm:$0x1]
  %v141 = vld [vmem:[%s3] sm:$0x1]
  %vm142 = vcmask 261120
  %v143 = vsel %vm142, %v129, 0.0
  %v144 = vsel %vm142, %v132, 0.0
  %v145 = vadd.f32 %v143, %v144
  %v146 = vsel %vm142, %v135, 0.0
  %v147 = vadd.f32 %v145, %v146
  %v148 = vsel %vm142, %v138, 0.0
  %v149 = vadd.f32 %v147, %v148
  %v150 = vrot.slane %v149, 4
  %v151 = vadd.f32 %v149, %v150
  %v152 = vrot.slane %v151, 2
  %v153 = vadd.f32 %v151, %v152
  %v154 = vrot.slane %v153, 1
  %v155 = vadd.f32 %v153, %v154
  %v156 = vrcp.pop 32.0
  %v157 = vmul.f32 32.0, %v156
  %v158 = vsub.f32 1.0, %v157
  %v159 = vmul.f32 %v156, %v158
  %v160 = vadd.f32 %v156, %v159
  %vm161 = vweird.f32 %v156
  %v162 = vsel %vm161, %v156, %v160
  %v163 = vmul.f32 %v155, %v162
  %v164 = vsub.f32 %v129, %v163
  %v165 = vsub.f32 %v132, %v163
  %v166 = vsub.f32 %v135, %v163
  %v167 = vsub.f32 %v138, %v163
  %v168 = vmul.f32 %v164, %v164
  %v169 = vmul.f32 %v165, %v165
  %v170 = vmul.f32 %v166, %v166
  %v171 = vmul.f32 %v167, %v167
  %v172 = vsel %vm142, %v168, 0.0
  %v173 = vsel %vm142, %v169, 0.0
  %v174 = vadd.f32 %v172, %v173
  %v175 = vsel %vm142, %v170, 0.0
  %v176 = vadd.f32 %v174, %v175
  %v177 = vsel %vm142, %v171, 0.0
  %v178 = vadd.f32 %v176, %v177
  %v179 = vrot.slane %v178, 4
  %v180 = vadd.f32 %v178, %v179
  %v181 = vrot.slane %v180, 2
  %v182 = vadd.f32 %v180, %v181
  %v183 = vrot.slane %v182, 1
  %v184 = vadd.f32 %v182, %v183
  %v185 = vmul.f32 %v184, %v162
  %v186 = vadd.f32 %v185, 1e-05
  %v187 = vrsqrt.pop %v186
  %v188 = vmul.f32 %v187, %v186
  %v189 = vmul.f32 %v188, %v187
  %v190 = vmul.f32 0.5, %v189
  %v191 = vsub.f32 1.5, %v190
  %v192 = vmul.f32 %v187, %v191
  %vm193 = vweird.f32 %v186
  %vm194 = vweird.f32 %v187
  %vm195 = vmor %vm193, %vm194
  %v196 = vsel %vm195, %v187, %v192
  %v197 = vmul.f32 %v196, %v140
  %v198 = vperm.slane %v197, 0
  %v199 = vmul.f32 %v164, %v198
  %v200 = vmul.f32 %v165, %v198
  %v201 = vmul.f32 %v166, %v198
  %v202 = vmul.f32 %v167, %v198
  %v204 = vperm.slane %v141, 0
  %v206 = vadd.f32 %v199, %v204
  %v207 = vadd.f32 %v200, %v204
  %v208 = vadd.f32 %v201, %v204
  %v209 = vadd.f32 %v202, %v204
  %210 = vst.msk [vmem:[%s11] sm:$0xff] %vm142, %v206
  %211 = vst.msk [vmem:[%s11 + $0x8] sm:$0xff] %vm142, %v207
  %212 = vst.msk [vmem:[%s11 + $0x10] sm:$0xff] %vm142, %v208
  %213 = vst.msk [vmem:[%s11 + $0x18] sm:$0xff] %vm142, %v209
  %v214 = vld [vmem:[%s4] sm:$0xff]
  %v215 = vld [vmem:[%s4 + $0x8] sm:$0xff]
  %v216 = vld [vmem:[%s4 + $0x10] sm:$0xff]
  %v217 = vld [vmem:[%s4 + $0x18] sm:$0xff]
  %v218 = vld [vmem:[%s5] sm:$0x1]
  %v220 = vperm.slane %v218, 0
  %v223 = vsel %vm142, %v206, 0
  %v226 = vsel %vm142, %v207, 0
  %v229 = vsel %vm142, %v208, 0
  %v232 = vsel %vm142, %v209, 0
  %234 = vmatpush.msra.mxu0 0.0
  %235 = vmatpush.msra.mxu0 0.0
  %236 = vmatpush.msra.mxu0 0.0
  %237 = vmatpush.msra.mxu0 0.0
  %238 = vmatpush.msra.mxu0 0.0
  %239 = vmatpush.msra.mxu0 0.0
  %240 = vmatpush.msra.mxu0 0.0
  %241 = vmatpush.msra.mxu0 0.0
  %242 = vmatpush.msra.mxu0 0.0
  %243 = vmatpush.msra.mxu0 0.0
  %244 = vmatpush.msra.mxu0 0.0
  %245 = vmatpush.msra.mxu0 0.0
  %246 = vmatpush.msra.mxu0 %v217
  %247 = vmatpush.msra.mxu0 %v216
  %248 = vmatpush.msra.mxu0 %v215
  %249 = vmatpush.msra.mxu0 %v214
  %250 = vmatmul.f32.gmra.mxu0 %v223
  %v251 = vpop.f32.mrf.mxu0
  %v252 = vadd.f32 %v220, %v251
  %253 = vmatmul.f32.gmra.mxu0 %v226
  %v254 = vpop.f32.mrf.mxu0
  %v255 = vadd.f32 %v220, %v254
  %256 = vmatmul.f32.gmra.mxu0 %v229
  %v257 = vpop.f32.mrf.mxu0
  %v258 = vadd.f32 %v220, %v257
  %259 = vmatmul.f32.gmra.mxu0 %v232
  %v260 = vpop.f32.mrf.mxu0
  %v261 = vadd.f32 %v220, %v260
  %262 = vdwg.mxu0
  %v263 = vld [vmem:[%s6] sm:$0xff]
  %v264 = vld [vmem:[%s6 + $0x8] sm:$0xff]
  %v265 = vld [vmem:[%s6 + $0x10] sm:$0xff]
  %v266 = vld [vmem:[%s6 + $0x18] sm:$0xff]
  %v267 = vld [vmem:[%s7] sm:$0x1]
  %v269 = vperm.slane %v267, 0
  %271 = vmatpush.msra.mxu0 0.0
  %272 = vmatpush.msra.mxu0 0.0
  %273 = vmatpush.msra.mxu0 0.0
  %274 = vmatpush.msra.mxu0 0.0
  %275 = vmatpush.msra.mxu0 0.0
  %276 = vmatpush.msra.mxu0 0.0
  %277 = vmatpush.msra.mxu0 0.0
  %278 = vmatpush.msra.mxu0 0.0
  %279 = vmatpush.msra.mxu0 0.0
  %280 = vmatpush.msra.mxu0 0.0
  %281 = vmatpush.msra.mxu0 0.0
  %282 = vmatpush.msra.mxu0 0.0
  %283 = vmatpush.msra.mxu0 %v266
  %284 = vmatpush.msra.mxu0 %v265
  %285 = vmatpush.msra.mxu0 %v264
  %286 = vmatpush.msra.mxu0 %v263
  %287 = vmatmul.f32.gmra.mxu0 %v223
  %v288 = vpop.f32.mrf.mxu0
  %v289 = vadd.f32 %v269, %v288
  %290 = vmatmul.f32.gmra.mxu0 %v226
  %v291 = vpop.f32.mrf.mxu0
  %v292 = vadd.f32 %v269, %v291
  %293 = vmatmul.f32.gmra.mxu0 %v229
  %v294 = vpop.f32.mrf.mxu0
  %v295 = vadd.f32 %v269, %v294
  %296 = vmatmul.f32.gmra.mxu0 %v232
  %v297 = vpop.f32.mrf.mxu0
  %v298 = vadd.f32 %v269, %v297
  %299 = vdwg.mxu0
  %v300 = vld [vmem:[%s8] sm:$0xff]
  %v301 = vld [vmem:[%s8 + $0x8] sm:$0xff]
  %v302 = vld [vmem:[%s8 + $0x10] sm:$0xff]
  %v303 = vld [vmem:[%s8 + $0x18] sm:$0xff]
  %v304 = vld [vmem:[%s9] sm:$0x1]
  %v306 = vperm.slane %v304, 0
  %308 = vmatpush.msra.mxu0 0.0
  %309 = vmatpush.msra.mxu0 0.0
  %310 = vmatpush.msra.mxu0 0.0
  %311 = vmatpush.msra.mxu0 0.0
  %312 = vmatpush.msra.mxu0 0.0
  %313 = vmatpush.msra.mxu0 0.0
  %314 = vmatpush.msra.mxu0 0.0
  %315 = vmatpush.msra.mxu0 0.0
  %316 = vmatpush.msra.mxu0 0.0
  %317 = vmatpush.msra.mxu0 0.0
  %318 = vmatpush.msra.mxu0 0.0
  %319 = vmatpush.msra.mxu0 0.0
  %320 = vmatpush.msra.mxu0 %v303
  %321 = vmatpush.msra.mxu0 %v302
  %322 = vmatpush.msra.mxu0 %v301
  %323 = vmatpush.msra.mxu0 %v300
  %324 = vmatmul.f32.gmra.mxu0 %v223
  %v325 = vpop.f32.mrf.mxu0
  %v326 = vadd.f32 %v306, %v325
  %327 = vmatmul.f32.gmra.mxu0 %v226
  %v328 = vpop.f32.mrf.mxu0
  %v329 = vadd.f32 %v306, %v328
  %330 = vmatmul.f32.gmra.mxu0 %v229
  %v331 = vpop.f32.mrf.mxu0
  %v332 = vadd.f32 %v306, %v331
  %333 = vmatmul.f32.gmra.mxu0 %v232
  %v334 = vpop.f32.mrf.mxu0
  %v335 = vadd.f32 %v306, %v334
  %336 = vdwg.mxu0
  %vm337 = vcmask 64512
  %338 = vst.msk [vmem:[%s12] sm:$0xff] %vm337, %v252
  %339 = vst.msk [vmem:[%s12 + $0x8] sm:$0xff] %vm337, %v255
  %340 = vst.msk [vmem:[%s12 + $0x10] sm:$0xff] %vm337, %v258
  %341 = vst.msk [vmem:[%s12 + $0x18] sm:$0xff] %vm337, %v261
  %v342 = vld [vmem:[%s10] sm:$0xff]
  %v344 = vsel %vm142, %v342, 0
  %346 = vmatpush.msra.mxu0 0.0
  %347 = vmatpush.msra.mxu0 0.0
  %348 = vmatpush.msra.mxu0 0.0
  %349 = vmatpush.msra.mxu0 0.0
  %350 = vmatpush.msra.mxu0 0.0
  %351 = vmatpush.msra.mxu0 0.0
  %352 = vmatpush.msra.mxu0 0.0
  %353 = vmatpush.msra.mxu0 0.0
  %354 = vmatpush.msra.mxu0 0.0
  %355 = vmatpush.msra.mxu0 0.0
  %356 = vmatpush.msra.mxu0 0.0
  %357 = vmatpush.msra.mxu0 0.0
  %358 = vmatpush.msra.mxu0 %v298
  %359 = vmatpush.msra.mxu0 %v295
  %360 = vmatpush.msra.mxu0 %v292
  %361 = vmatpush.msra.mxu0 %v289
  %362 = vmatmul.f32.gmra.mxu0 %v344
  %v363 = vpop.f32.mrf.mxu0
  %v364 = vadd.f32 0.0, %v363
  %365 = vdwg.mxu0
  %s366 = scalar_lea.vmem %s10, 8
  %v367 = vld [vmem:[%s366] sm:$0xff]
  %v369 = vsel %vm142, %v367, 0
  %371 = vmatpush.msra.mxu0 0.0
  %372 = vmatpush.msra.mxu0 0.0
  %373 = vmatpush.msra.mxu0 0.0
  %374 = vmatpush.msra.mxu0 0.0
  %375 = vmatpush.msra.mxu0 0.0
  %376 = vmatpush.msra.mxu0 0.0
  %377 = vmatpush.msra.mxu0 0.0
  %378 = vmatpush.msra.mxu0 0.0
  %379 = vmatpush.msra.mxu0 0.0
  %380 = vmatpush.msra.mxu0 0.0
  %381 = vmatpush.msra.mxu0 0.0
  %382 = vmatpush.msra.mxu0 0.0
  %383 = vmatpush.msra.mxu0 %v298
  %384 = vmatpush.msra.mxu0 %v295
  %385 = vmatpush.msra.mxu0 %v292
  %386 = vmatpush.msra.mxu0 %v289
  %387 = vmatmul.f32.gmra.mxu0 %v369
  %v388 = vpop.f32.mrf.mxu0
  %v389 = vadd.f32 0.0, %v388
  %390 = vdwg.mxu0
  %v391 = vmax.f32 %v364, %v389
  %s392 = scalar_lea.vmem %s10, 16
  %v393 = vld [vmem:[%s392] sm:$0xff]
  %v395 = vsel %vm142, %v393, 0
  %397 = vmatpush.msra.mxu0 0.0
  %398 = vmatpush.msra.mxu0 0.0
  %399 = vmatpush.msra.mxu0 0.0
  %400 = vmatpush.msra.mxu0 0.0
  %401 = vmatpush.msra.mxu0 0.0
  %402 = vmatpush.msra.mxu0 0.0
  %403 = vmatpush.msra.mxu0 0.0
  %404 = vmatpush.msra.mxu0 0.0
  %405 = vmatpush.msra.mxu0 0.0
  %406 = vmatpush.msra.mxu0 0.0
  %407 = vmatpush.msra.mxu0 0.0
  %408 = vmatpush.msra.mxu0 0.0
  %409 = vmatpush.msra.mxu0 %v298
  %410 = vmatpush.msra.mxu0 %v295
  %411 = vmatpush.msra.mxu0 %v292
  %412 = vmatpush.msra.mxu0 %v289
  %413 = vmatmul.f32.gmra.mxu0 %v395
  %v414 = vpop.f32.mrf.mxu0
  %v415 = vadd.f32 0.0, %v414
  %416 = vdwg.mxu0
  %v417 = vmax.f32 %v391, %v415
  %s418 = scalar_lea.vmem %s10, 24
  %v419 = vld [vmem:[%s418] sm:$0xff]
  %v421 = vsel %vm142, %v419, 0
  %423 = vmatpush.msra.mxu0 0.0
  %424 = vmatpush.msra.mxu0 0.0
  %425 = vmatpush.msra.mxu0 0.0
  %426 = vmatpush.msra.mxu0 0.0
  %427 = vmatpush.msra.mxu0 0.0
  %428 = vmatpush.msra.mxu0 0.0
  %429 = vmatpush.msra.mxu0 0.0
  %430 = vmatpush.msra.mxu0 0.0
  %431 = vmatpush.msra.mxu0 0.0
  %432 = vmatpush.msra.mxu0 0.0
  %433 = vmatpush.msra.mxu0 0.0
  %434 = vmatpush.msra.mxu0 0.0
  %435 = vmatpush.msra.mxu0 %v298
  %436 = vmatpush.msra.mxu0 %v295
  %437 = vmatpush.msra.mxu0 %v292
  %438 = vmatpush.msra.mxu0 %v289
  %439 = vmatmul.f32.gmra.mxu0 %v421
  %v440 = vpop.f32.mrf.mxu0
  %v441 = vadd.f32 0.0, %v440
  %442 = vdwg.mxu0
  %v443 = vmax.f32 %v417, %v441
  %444 = vst.msk [vmem:[%s13] sm:$0xff] %vm337, %v443
  %v445 = vld [vmem:[%s10] sm:$0xff]
  %v447 = vsel %vm142, %v445, 0
  %449 = vmatpush.msra.mxu0 0.0
  %450 = vmatpush.msra.mxu0 0.0
  %451 = vmatpush.msra.mxu0 0.0
  %452 = vmatpush.msra.mxu0 0.0
  %453 = vmatpush.msra.mxu0 0.0
  %454 = vmatpush.msra.mxu0 0.0
  %455 = vmatpush.msra.mxu0 0.0
  %456 = vmatpush.msra.mxu0 0.0
  %457 = vmatpush.msra.mxu0 0.0
  %458 = vmatpush.msra.mxu0 0.0
  %459 = vmatpush.msra.mxu0 0.0
  %460 = vmatpush.msra.mxu0 0.0
  %461 = vmatpush.msra.mxu0 %v335
  %462 = vmatpush.msra.mxu0 %v332
  %463 = vmatpush.msra.mxu0 %v329
  %464 = vmatpush.msra.mxu0 %v326
  %465 = vmatmul.f32.gmra.mxu0 %v447
  %v466 = vpop.f32.mrf.mxu0
  %v467 = vadd.f32 0.0, %v466
  %468 = vdwg.mxu0
  %v469 = vld [vmem:[%s366] sm:$0xff]
  %v471 = vsel %vm142, %v469, 0
  %473 = vmatpush.msra.mxu0 0.0
  %474 = vmatpush.msra.mxu0 0.0
  %475 = vmatpush.msra.mxu0 0.0
  %476 = vmatpush.msra.mxu0 0.0
  %477 = vmatpush.msra.mxu0 0.0
  %478 = vmatpush.msra.mxu0 0.0
  %479 = vmatpush.msra.mxu0 0.0
  %480 = vmatpush.msra.mxu0 0.0
  %481 = vmatpush.msra.mxu0 0.0
  %482 = vmatpush.msra.mxu0 0.0
  %483 = vmatpush.msra.mxu0 0.0
  %484 = vmatpush.msra.mxu0 0.0
  %485 = vmatpush.msra.mxu0 %v335
  %486 = vmatpush.msra.mxu0 %v332
  %487 = vmatpush.msra.mxu0 %v329
  %488 = vmatpush.msra.mxu0 %v326
  %489 = vmatmul.f32.gmra.mxu0 %v471
  %v490 = vpop.f32.mrf.mxu0
  %v491 = vadd.f32 0.0, %v490
  %492 = vdwg.mxu0
  %v493 = vmax.f32 %v467, %v491
  %v494 = vld [vmem:[%s392] sm:$0xff]
  %v496 = vsel %vm142, %v494, 0
  %498 = vmatpush.msra.mxu0 0.0
  %499 = vmatpush.msra.mxu0 0.0
  %500 = vmatpush.msra.mxu0 0.0
  %501 = vmatpush.msra.mxu0 0.0
  %502 = vmatpush.msra.mxu0 0.0
  %503 = vmatpush.msra.mxu0 0.0
  %504 = vmatpush.msra.mxu0 0.0
  %505 = vmatpush.msra.mxu0 0.0
  %506 = vmatpush.msra.mxu0 0.0
  %507 = vmatpush.msra.mxu0 0.0
  %508 = vmatpush.msra.mxu0 0.0
  %509 = vmatpush.msra.mxu0 0.0
  %510 = vmatpush.msra.mxu0 %v335
  %511 = vmatpush.msra.mxu0 %v332
  %512 = vmatpush.msra.mxu0 %v329
  %513 = vmatpush.msra.mxu0 %v326
  %514 = vmatmul.f32.gmra.mxu0 %v496
  %v515 = vpop.f32.mrf.mxu0
  %v516 = vadd.f32 0.0, %v515
  %517 = vdwg.mxu0
  %v518 = vmax.f32 %v493, %v516
  %v519 = vld [vmem:[%s418] sm:$0xff]
  %v521 = vsel %vm142, %v519, 0
  %523 = vmatpush.msra.mxu0 0.0
  %524 = vmatpush.msra.mxu0 0.0
  %525 = vmatpush.msra.mxu0 0.0
  %526 = vmatpush.msra.mxu0 0.0
  %527 = vmatpush.msra.mxu0 0.0
  %528 = vmatpush.msra.mxu0 0.0
  %529 = vmatpush.msra.mxu0 0.0
  %530 = vmatpush.msra.mxu0 0.0
  %531 = vmatpush.msra.mxu0 0.0
  %532 = vmatpush.msra.mxu0 0.0
  %533 = vmatpush.msra.mxu0 0.0
  %534 = vmatpush.msra.mxu0 0.0
  %535 = vmatpush.msra.mxu0 %v335
  %536 = vmatpush.msra.mxu0 %v332
  %537 = vmatpush.msra.mxu0 %v329
  %538 = vmatpush.msra.mxu0 %v326
  %539 = vmatmul.f32.gmra.mxu0 %v521
  %v540 = vpop.f32.mrf.mxu0
  %v541 = vadd.f32 0.0, %v540
  %542 = vdwg.mxu0
  %v543 = vmax.f32 %v518, %v541
  %544 = vst.msk [vmem:[%s14] sm:$0xff] %vm142, %v543
  // Predicated region
  $region46: #{nlayer_discriminator.9} parent=0 // pred_check
    _
  $region47: #{nlayer_discriminator.9} parent=0 // pred_check_branch
    %546 = sbr.rel (0) target = $region49
  $region48: #{nlayer_discriminator.9} parent=0 // pred_region
    _
  $region49: #{nlayer_discriminator.9} parent=0 // pred_fallthru
    _
  // Predicated region
  $region50: #{nlayer_discriminator.9} parent=0 // pred_check
    _
  $region51: #{nlayer_discriminator.9} parent=0 // pred_check_branch
    %548 = sbr.rel (0) target = $region53
  $region52: #{nlayer_discriminator.9} parent=0 // pred_region
    _
  $region53: #{nlayer_discriminator.9} parent=0 // pred_fallthru
    _
  // Predicated region
  $region54: #{nlayer_discriminator.9} parent=0 // pred_check
    _
  $region55: #{nlayer_discriminator.9} parent=0 // pred_check_branch
    %550 = sbr.rel (0) target = $region57
  $region56: #{nlayer_discriminator.9} parent=0 // pred_region
    _
  $region57: #{nlayer_discriminator.9} parent=0 // pred_fallthru
    _
  // Predicated region
  $region58: #{nlayer_discriminator.9} parent=0 // pred_check
    _
  $region59: #{nlayer_discriminator.9} parent=0 // pred_check_branch
    %552 = sbr.rel (0) target = $region61
  $region60: #{nlayer_discriminator.9} parent=0 // pred_region
    _
  $region61: #{nlayer_discriminator.9} parent=0 // pred_fallthru
    _
  // Predicated region
  $region62: #{nlayer_discriminator.9} parent=0 // pred_check
    _
  $region63: #{nlayer_discriminator.9} parent=0 // pred_check_branch
    %554 = sbr.rel (0) target = $region65
  $region64: #{nlayer_discriminator.9} parent=0 // pred_region
    _
  $region65: #{nlayer_discriminator.9} parent=0 // pred_fallthru
    _
  // Predicated region
  $region66: #{nlayer_discriminator.9} parent=0 // pred_check
    _
  $region67: #{nlayer_discriminator.9} parent=0 // pred_check_branch
    %556 = sbr.rel (0) target = $region69
  $region68: #{nlayer_discriminator.9} parent=0 // pred_region
    _
  $region69: #{nlayer_discriminator.9} parent=0 // pred_fallthru
    _
  // Predicated region
  $region70: #{nlayer_discriminator.9} parent=0 // pred_check
    _
  $region71: #{nlayer_discriminator.9} parent=0 // pred_check_branch
    %558 = sbr.rel (0) target = $region73
  $region72: #{nlayer_discriminator.9} parent=0 // pred_region
    _
  $region73: #{nlayer_discriminator.9} parent=0 // pred_fallthru
    _
  // Predicated region
  $region74: #{nlayer_discriminator.9} parent=0 // pred_check
    _
  $region75: #{nlayer_discriminator.9} parent=0 // pred_check_branch
    %560 = sbr.rel (0) target = $region77
  $region76: #{nlayer_discriminator.9} parent=0 // pred_region
    _
  $region77: #{nlayer_discriminator.9} parent=0 // pred_fallthru
    _

// kernel: nlayer_discriminator.10
$region0: #{nlayer_discriminator.10}
  #allocation0 [shape = 'u32[]', space=smem, size = 0x4, offset = 0x4, fixed_abs, tag = 'smem constant byte address 0x4 - core index']
  #allocation1 [shape = 'u32[72,128]{1,0:T(1,128)}', space=vmem, size = 0x9000, scoped, tag = 'internal scratch']
  %s0 = inlined_call_operand.vmem [shape: f32[2,16,8], index: 0, kind: input, shape index: {}]
  %s1 = inlined_call_operand.vmem [shape: f32[2,4,8], index: 1, kind: input, shape index: {}]
  %s2 = inlined_call_operand.vmem [shape: f32[2,4,32], index: 2, kind: input, shape index: {}]
  %s3 = inlined_call_operand.vmem [shape: f32[2,16,32], index: 3, kind: input, shape index: {}]
  %s4 = inlined_call_operand.vmem [shape: f32[2,16,32], index: 4, kind: output, shape index: {}]
  %s5 = sld [smem:[#allocation0]]
  $region26: #{nlayer_discriminator.10} parent=0
    _
  %s7 = ssub.s32 1, %s5
  %s8 = scalar_select 0, %s7, %s5
  // Predicated region
  $region2: #{nlayer_discriminator.10} parent=0 // pred_check
    _
  $region3: #{nlayer_discriminator.10} parent=0 // pred_check_branch
    %10 = sbr.rel (0) target = $region5
  $region4: #{nlayer_discriminator.10} parent=0 // pred_region
    _
  $region5: #{nlayer_discriminator.10} parent=0 // pred_fallthru
    _
  // Predicated region
  $region6: #{nlayer_discriminator.10} parent=0 // pred_check
    _
  $region7: #{nlayer_discriminator.10} parent=0 // pred_check_branch
    %12 = sbr.rel (0) target = $region9
  $region8: #{nlayer_discriminator.10} parent=0 // pred_region
    _
  $region9: #{nlayer_discriminator.10} parent=0 // pred_fallthru
    _
  // Predicated region
  $region10: #{nlayer_discriminator.10} parent=0 // pred_check
    _
  $region11: #{nlayer_discriminator.10} parent=0 // pred_check_branch
    %14 = sbr.rel (0) target = $region13
  $region12: #{nlayer_discriminator.10} parent=0 // pred_region
    _
  $region13: #{nlayer_discriminator.10} parent=0 // pred_fallthru
    _
  // Predicated region
  $region14: #{nlayer_discriminator.10} parent=0 // pred_check
    _
  $region15: #{nlayer_discriminator.10} parent=0 // pred_check_branch
    %16 = sbr.rel (0) target = $region17
  $region16: #{nlayer_discriminator.10} parent=0 // pred_region
    _
  $region17: #{nlayer_discriminator.10} parent=0 // pred_fallthru
    _
  %v17 = vld [vmem:[%s0] sm:$0xff]
  %v18 = vld [vmem:[%s0 + $0x8] sm:$0xff]
  %v19 = vld [vmem:[%s0 + $0x10] sm:$0xff]
  %v20 = vld [vmem:[%s0 + $0x18] sm:$0xff]
  %v21 = vld [vmem:[%s1] sm:$0xf]
  %v22 = vld [vmem:[%s1 + $0x4] sm:$0xf]
  %v23 = vld [vmem:[%s2] sm:$0xf]
  %v24 = vld [vmem:[%s2 + $0x4] sm:$0xf]
  %vm25 = vcmask 64512
  %v27 = vsel %vm25, %v17, 0
  %v30 = vsel %vm25, %v18, 0
  %v33 = vsel %vm25, %v21, 0
  %35 = vmatpush.xpose.msra.mxu0 0.0
  %36 = vmatpush.xpose.msra.mxu0 0.0
  %37 = vmatpush.xpose.msra.mxu0 0.0
  %38 = vmatpush.xpose.msra.mxu0 0.0
  %39 = vmatpush.xpose.msra.mxu0 0.0
  %40 = vmatpush.xpose.msra.mxu0 0.0
  %41 = vmatpush.xpose.msra.mxu0 0.0
  %42 = vmatpush.xpose.msra.mxu0 0.0
  %43 = vmatpush.xpose.msra.mxu0 0.0
  %44 = vmatpush.xpose.msra.mxu0 0.0
  %45 = vmatpush.xpose.msra.mxu0 0.0
  %46 = vmatpush.xpose.msra.mxu0 0.0
  %47 = vmatpush.xpose.msra.mxu0 0.0
  %48 = vmatpush.xpose.msra.mxu0 0.0
  %49 = vmatpush.xpose.msra.mxu0 0.0
  %50 = vmatpush.xpose.msra.mxu0 %v33
  %51 = vmatmul.f32.gmra.mxu0 %v27
  %v52 = vpop.f32.mrf.mxu0
  %v53 = vadd.f32 0.0, %v52
  %54 = vmatmul.f32.gmra.mxu0 %v30
  %v55 = vpop.f32.mrf.mxu0
  %v56 = vadd.f32 0.0, %v55
  %57 = vdwg.mxu0
  %v59 = vsel %vm25, %v19, 0
  %v62 = vsel %vm25, %v20, 0
  %v65 = vsel %vm25, %v22, 0
  %67 = vmatpush.xpose.msra.mxu0 0.0
  %68 = vmatpush.xpose.msra.mxu0 0.0
  %69 = vmatpush.xpose.msra.mxu0 0.0
  %70 = vmatpush.xpose.msra.mxu0 0.0
  %71 = vmatpush.xpose.msra.mxu0 0.0
  %72 = vmatpush.xpose.msra.mxu0 0.0
  %73 = vmatpush.xpose.msra.mxu0 0.0
  %74 = vmatpush.xpose.msra.mxu0 0.0
  %75 = vmatpush.xpose.msra.mxu0 0.0
  %76 = vmatpush.xpose.msra.mxu0 0.0
  %77 = vmatpush.xpose.msra.mxu0 0.0
  %78 = vmatpush.xpose.msra.mxu0 0.0
  %79 = vmatpush.xpose.msra.mxu0 0.0
  %80 = vmatpush.xpose.msra.mxu0 0.0
  %81 = vmatpush.xpose.msra.mxu0 0.0
  %82 = vmatpush.xpose.msra.mxu0 %v65
  %83 = vmatmul.f32.gmra.mxu0 %v59
  %v84 = vpop.f32.mrf.mxu0
  %v85 = vadd.f32 0.0, %v84
  %86 = vmatmul.f32.gmra.mxu0 %v62
  %v87 = vpop.f32.mrf.mxu0
  %v88 = vadd.f32 0.0, %v87
  %89 = vdwg.mxu0
  %vm90 = vcmask 31744
  %v91 = vsel %vm90, %v53, -inf
  %92 = vmax.xlane.f32.xlu0 %v91
  %v93 = vpop.xlane.xlu0 %92
  %v94 = vsel %vm90, %v56, -inf
  %95 = vmax.xlane.f32.xlu0 %v94
  %v96 = vpop.xlane.xlu0 %95
  %v97 = vsel %vm90, %v85, -inf
  %98 = vmax.xlane.f32.xlu0 %v97
  %v99 = vpop.xlane.xlu0 %98
  %v100 = vsel %vm90, %v88, -inf
  %101 = vmax.xlane.f32.xlu0 %v100
  %v102 = vpop.xlane.xlu0 %101
  %v103 = vsub.f32 %v53, %v93
  %v104 = vsub.f32 %v56, %v96
  %v105 = vsub.f32 %v85, %v99
  %v106 = vsub.f32 %v88, %v102
  %v107 = vmul.f32 %v103, 1.442695
  %v108 = vpow.pop %v107
  %v109 = vmul.f32 %v104, 1.442695
  %v110 = vpow.pop %v109
  %v111 = vmul.f32 %v105, 1.442695
  %v112 = vpow.pop %v111
  %v113 = vmul.f32 %v106, 1.442695
  %v114 = vpow.pop %v113
  %v115 = vsel %vm90, %v108, 0.0
  %116 = vadd.xlane.f32.xlu0 %v115
  %v117 = vpop.xlane.xlu0 %116
  %v118 = vsel %vm90, %v110, 0.0
  %119 = vadd.xlane.f32.xlu0 %v118
  %v120 = vpop.xlane.xlu0 %119
  %v121 = vsel %vm90, %v112, 0.0
  %122 = vadd.xlane.f32.xlu0 %v121
  %v123 = vpop.xlane.xlu0 %122
  %v124 = vsel %vm90, %v114, 0.0
  %125 = vadd.xlane.f32.xlu0 %v124
  %v126 = vpop.xlane.xlu0 %125
  %v127 = vrcp.pop %v117
  %v128 = vrcp.pop %v120
  %v129 = vrcp.pop %v123
  %v130 = vrcp.pop %v126
  %v131 = vmul.f32 %v108, %v127
  %v132 = vmul.f32 %v110, %v128
  %v133 = vmul.f32 %v112, %v129
  %v134 = vmul.f32 %v114, %v130
  %v135 = vld [vmem:[%s3] sm:$0xff]
  %v136 = vld [vmem:[%s3 + $0x8] sm:$0xff]
  %v137 = vld [vmem:[%s3 + $0x10] sm:$0xff]
  %v138 = vld [vmem:[%s3 + $0x18] sm:$0xff]
  %v140 = vsel %vm90, %v131, 0
  %v143 = vsel %vm90, %v132, 0
  %vm145 = vcmask 1043456
  %v147 = vsel %vm145, %v23, 0
  %149 = vmatpush.msra.mxu0 0.0
  %150 = vmatpush.msra.mxu0 0.0
  %151 = vmatpush.msra.mxu0 0.0
  %152 = vmatpush.msra.mxu0 0.0
  %153 = vmatpush.msra.mxu0 0.0
  %154 = vmatpush.msra.mxu0 0.0
  %155 = vmatpush.msra.mxu0 0.0
  %156 = vmatpush.msra.mxu0 0.0
  %157 = vmatpush.msra.mxu0 0.0
  %158 = vmatpush.msra.mxu0 0.0
  %159 = vmatpush.msra.mxu0 0.0
  %160 = vmatpush.msra.mxu0 0.0
  %161 = vmatpush.msra.mxu0 0.0
  %162 = vmatpush.msra.mxu0 0.0
  %163 = vmatpush.msra.mxu0 0.0
  %164 = vmatpush.msra.mxu0 %v147
  %165 = vmatmul.f32.gmra.mxu0 %v140
  %v166 = vpop.f32.mrf.mxu0
  %v167 = vadd.f32 %v135, %v166
  %168 = vmatmul.f32.gmra.mxu0 %v143
  %v169 = vpop.f32.mrf.mxu0
  %v170 = vadd.f32 %v136, %v169
  %171 = vdwg.mxu0
  %v173 = vsel %vm90, %v133, 0
  %v176 = vsel %vm90, %v134, 0
  %v179 = vsel %vm145, %v24, 0
  %181 = vmatpush.msra.mxu0 0.0
  %182 = vmatpush.msra.mxu0 0.0
  %183 = vmatpush.msra.mxu0 0.0
  %184 = vmatpush.msra.mxu0 0.0
  %185 = vmatpush.msra.mxu0 0.0
  %186 = vmatpush.msra.mxu0 0.0
  %187 = vmatpush.msra.mxu0 0.0
  %188 = vmatpush.msra.mxu0 0.0
  %189 = vmatpush.msra.mxu0 0.0
  %190 = vmatpush.msra.mxu0 0.0
  %191 = vmatpush.msra.mxu0 0.0
  %192 = vmatpush.msra.mxu0 0.0
  %193 = vmatpush.msra.mxu0 0.0
  %194 = vmatpush.msra.mxu0 0.0
  %195 = vmatpush.msra.mxu0 0.0
  %196 = vmatpush.msra.mxu0 %v179
  %197 = vmatmul.f32.gmra.mxu0 %v173
  %v198 = vpop.f32.mrf.mxu0
  %v199 = vadd.f32 %v137, %v198
  %200 = vmatmul.f32.gmra.mxu0 %v176
  %v201 = vpop.f32.mrf.mxu0
  %v202 = vadd.f32 %v138, %v201
  %203 = vdwg.mxu0
  %vm204 = vcmp.ge.f32.partialorder %v167, 0.0
  %vm205 = vcmp.ge.f32.partialorder %v170, 0.0
  %vm206 = vcmp.ge.f32.partialorder %v199, 0.0
  %vm207 = vcmp.ge.f32.partialorder %v202, 0.0
  %v208 = vmul.f32 %v167, 0.2
  %v209 = vmul.f32 %v170, 0.2
  %v210 = vmul.f32 %v199, 0.2
  %v211 = vmul.f32 %v202, 0.2
  %v212 = vsel %vm204, %v167, %v208
  %v213 = vsel %vm205, %v170, %v209
  %v214 = vsel %vm206, %v199, %v210
  %v215 = vsel %vm207, %v202, %v211
  %vm216 = vcmask 261120
  %217 = vst.msk [vmem:[%s4] sm:$0xff] %vm216, %v212
  %218 = vst.msk [vmem:[%s4 + $0x8] sm:$0xff] %vm216, %v213
  %219 = vst.msk [vmem:[%s4 + $0x10] sm:$0xff] %vm216, %v214
  %220 = vst.msk [vmem:[%s4 + $0x18] sm:$0xff] %vm216, %v215
  // Predicated region
  $region18: #{nlayer_discriminator.10} parent=0 // pred_check
    _
  $region19: #{nlayer_discriminator.10} parent=0 // pred_check_branch
    %222 = sbr.rel (0) target = $region21
  $region20: #{nlayer_discriminator.10} parent=0 // pred_region
    _
  $region21: #{nlayer_discriminator.10} parent=0 // pred_fallthru
    _
  // Predicated region
  $region22: #{nlayer_discriminator.10} parent=0 // pred_check
    _
  $region23: #{nlayer_discriminator.10} parent=0 // pred_check_branch
    %224 = sbr.rel (0) target = $region25
  $region24: #{nlayer_discriminator.10} parent=0 // pred_region
    _
  $region25: #{nlayer_discriminator.10} parent=0 // pred_fallthru
    _

// kernel: nlayer_discriminator.11
$region0: #{nlayer_discriminator.11}
  #allocation0 [shape = 'u32[]', space=smem, size = 0x4, offset = 0x4, fixed_abs, tag = 'smem constant byte address 0x4 - core index']
  #allocation1 [shape = 'u32[72,128]{1,0:T(1,128)}', space=vmem, size = 0x9000, scoped, tag = 'internal scratch']
  %s0 = inlined_call_operand.vmem [shape: f32[18,512], index: 0, kind: input, shape index: {}]
  %s1 = inlined_call_operand.vmem [shape: f32[512,64], index: 1, kind: input, shape index: {}]
  %s2 = inlined_call_operand.vmem [shape: f32[1,64], index: 2, kind: input, shape index: {}]
  %s3 = inlined_call_operand.vmem [shape: f32[1,64], index: 3, kind: input, shape index: {}]
  %s4 = inlined_call_operand.vmem [shape: f32[16,8,18], index: 4, kind: input, shape index: {}]
  %s5 = inlined_call_operand.vmem [shape: f32[16,64,8], index: 5, kind: input, shape index: {}]
  %s6 = inlined_call_operand.vmem [shape: f32[1,8], index: 6, kind: input, shape index: {}]
  %s7 = inlined_call_operand.vmem [shape: f32[8,8], index: 7, kind: output, shape index: {}]
  %s8 = sld [smem:[#allocation0]]
  $region38: #{nlayer_discriminator.11} parent=0
    _
  %s10 = ssub.s32 1, %s8
  %s11 = scalar_select 0, %s10, %s8
  // Predicated region
  $region2: #{nlayer_discriminator.11} parent=0 // pred_check
    _
  $region3: #{nlayer_discriminator.11} parent=0 // pred_check_branch
    %13 = sbr.rel (0) target = $region5
  $region4: #{nlayer_discriminator.11} parent=0 // pred_region
    _
  $region5: #{nlayer_discriminator.11} parent=0 // pred_fallthru
    _
  // Predicated region
  $region6: #{nlayer_discriminator.11} parent=0 // pred_check
    _
  $region7: #{nlayer_discriminator.11} parent=0 // pred_check_branch
    %15 = sbr.rel (0) target = $region9
  $region8: #{nlayer_discriminator.11} parent=0 // pred_region
    _
  $region9: #{nlayer_discriminator.11} parent=0 // pred_fallthru
    _
  // Predicated region
  $region10: #{nlayer_discriminator.11} parent=0 // pred_check
    _
  $region11: #{nlayer_discriminator.11} parent=0 // pred_check_branch
    %17 = sbr.rel (0) target = $region13
  $region12: #{nlayer_discriminator.11} parent=0 // pred_region
    _
  $region13: #{nlayer_discriminator.11} parent=0 // pred_fallthru
    _
  // Predicated region
  $region14: #{nlayer_discriminator.11} parent=0 // pred_check
    _
  $region15: #{nlayer_discriminator.11} parent=0 // pred_check_branch
    %19 = sbr.rel (0) target = $region17
  $region16: #{nlayer_discriminator.11} parent=0 // pred_region
    _
  $region17: #{nlayer_discriminator.11} parent=0 // pred_fallthru
    _
  // Predicated region
  $region18: #{nlayer_discriminator.11} parent=0 // pred_check
    _
  $region19: #{nlayer_discriminator.11} parent=0 // pred_check_branch
    %21 = sbr.rel (0) target = $region21
  $region20: #{nlayer_discriminator.11} parent=0 // pred_region
    _
  $region21: #{nlayer_discriminator.11} parent=0 // pred_fallthru
    _
  // Predicated region
  $region22: #{nlayer_discriminator.11} parent=0 // pred_check
    _
  $region23: #{nlayer_discriminator.11} parent=0 // pred_check_branch
    %23 = sbr.rel (0) target = $region25
  $region24: #{nlayer_discriminator.11} parent=0 // pred_region
    _
  $region25: #{nlayer_discriminator.11} parent=0 // pred_fallthru
    _
  // Predicated region
  $region26: #{nlayer_discriminator.11} parent=0 // pred_check
    _
  $region27: #{nlayer_discriminator.11} parent=0 // pred_check_branch
    %25 = sbr.rel (0) target = $region29
  $region28: #{nlayer_discriminator.11} parent=0 // pred_region
    _
  $region29: #{nlayer_discriminator.11} parent=0 // pred_fallthru
    _
  %v26 = vld [vmem:[%s0] sm:$0xff]
  %v27 = vld [vmem:[%s0 + $0x8] sm:$0xff]
  %v28 = vld [vmem:[%s0 + $0x10] sm:$0xff]
  %v29 = vld [vmem:[%s0 + $0x18] sm:$0xff]
  %v30 = vld [vmem:[%s0 + $0x20] sm:$0xff]
  %v31 = vld [vmem:[%s0 + $0x28] sm:$0xff]
  %v32 = vld [vmem:[%s0 + $0x30] sm:$0xff]
  %v33 = vld [vmem:[%s0 + $0x38] sm:$0xff]
  %v34 = vld [vmem:[%s0 + $0x40] sm:$0x3]
  %v35 = vld [vmem:[%s0 + $0x48] sm:$0x3]
  %v36 = vld [vmem:[%s0 + $0x50] sm:$0x3]
  %v37 = vld [vmem:[%s0 + $0x58] sm:$0x3]
  %v38 = vld [vmem:[%s1] sm:$0xff]
  %v39 = vld [vmem:[%s1 + $0x8] sm:$0xff]
  %v40 = vld [vmem:[%s1 + $0x10] sm:$0xff]
  %v41 = vld [vmem:[%s1 + $0x18] sm:$0xff]
  %v42 = vld [vmem:[%s1 + $0x20] sm:$0xff]
  %v43 = vld [vmem:[%s1 + $0x28] sm:$0xff]
  %v44 = vld [vmem:[%s1 + $0x30] sm:$0xff]
  %v45 = vld [vmem:[%s1 + $0x38] sm:$0xff]
  %v46 = vld [vmem:[%s1 + $0x40] sm:$0xff]
  %v47 = vld [vmem:[%s1 + $0x48] sm:$0xff]
  %v48 = vld [vmem:[%s1 + $0x50] sm:$0xff]
  %v49 = vld [vmem:[%s1 + $0x58] sm:$0xff]
  %v50 = vld [vmem:[%s1 + $0x60] sm:$0xff]
  %v51 = vld [vmem:[%s1 + $0x68] sm:$0xff]
  %v52 = vld [vmem:[%s1 + $0x70] sm:$0xff]
  %v53 = vld [vmem:[%s1 + $0x78] sm:$0xff]
  %v54 = vld [vmem:[%s1 + $0x80] sm:$0xff]
  %v55 = vld [vmem:[%s1 + $0x88] sm:$0xff]
  %v56 = vld [vmem:[%s1 + $0x90] sm:$0xff]
  %v57 = vld [vmem:[%s1 + $0x98] sm:$0xff]
  %v58 = vld [vmem:[%s1 + $0xa0] sm:$0xff]
  %v59 = vld [vmem:[%s1 + $0xa8] sm:$0xff]
  %v60 = vld [vmem:[%s1 + $0xb0] sm:$0xff]
  %v61 = vld [vmem:[%s1 + $0xb8] sm:$0xff]
  %v62 = vld [vmem:[%s1 + $0xc0] sm:$0xff]
  %v63 = vld [vmem:[%s1 + $0xc8] sm:$0xff]
  %v64 = vld [vmem:[%s1 + $0xd0] sm:$0xff]
  %v65 = vld [vmem:[%s1 + $0xd8] sm:$0xff]
  %v66 = vld [vmem:[%s1 + $0xe0] sm:$0xff]
  %v67 = vld [vmem:[%s1 + $0xe8] sm:$0xff]
  %v68 = vld [vmem:[%s1 + $0xf0] sm:$0xff]
  %v69 = vld [vmem:[%s1 + $0xf8] sm:$0xff]
  %v70 = vld [vmem:[%s1 + $0x100] sm:$0xff]
  %v71 = vld [vmem:[%s1 + $0x108] sm:$0xff]
  %v72 = vld [vmem:[%s1 + $0x110] sm:$0xff]
  %v73 = vld [vmem:[%s1 + $0x118] sm:$0xff]
  %v74 = vld [vmem:[%s1 + $0x120] sm:$0xff]
  %v75 = vld [vmem:[%s1 + $0x128] sm:$0xff]
  %v76 = vld [vmem:[%s1 + $0x130] sm:$0xff]
  %v77 = vld [vmem:[%s1 + $0x138] sm:$0xff]
  %v78 = vld [vmem:[%s1 + $0x140] sm:$0xff]
  %v79 = vld [vmem:[%s1 + $0x148] sm:$0xff]
  %v80 = vld [vmem:[%s1 + $0x150] sm:$0xff]
  %v81 = vld [vmem:[%s1 + $0x158] sm:$0xff]
  %v82 = vld [vmem:[%s1 + $0x160] sm:$0xff]
  %v83 = vld [vmem:[%s1 + $0x168] sm:$0xff]
  %v84 = vld [vmem:[%s1 + $0x170] sm:$0xff]
  %v85 = vld [vmem:[%s1 + $0x178] sm:$0xff]
  %v86 = vld [vmem:[%s1 + $0x180] sm:$0xff]
  %v87 = vld [vmem:[%s1 + $0x188] sm:$0xff]
  %v88 = vld [vmem:[%s1 + $0x190] sm:$0xff]
  %v89 = vld [vmem:[%s1 + $0x198] sm:$0xff]
  %v90 = vld [vmem:[%s1 + $0x1a0] sm:$0xff]
  %v91 = vld [vmem:[%s1 + $0x1a8] sm:$0xff]
  %v92 = vld [vmem:[%s1 + $0x1b0] sm:$0xff]
  %v93 = vld [vmem:[%s1 + $0x1b8] sm:$0xff]
  %v94 = vld [vmem:[%s1 + $0x1c0] sm:$0xff]
  %v95 = vld [vmem:[%s1 + $0x1c8] sm:$0xff]
  %v96 = vld [vmem:[%s1 + $0x1d0] sm:$0xff]
  %v97 = vld [vmem:[%s1 + $0x1d8] sm:$0xff]
  %v98 = vld [vmem:[%s1 + $0x1e0] sm:$0xff]
  %v99 = vld [vmem:[%s1 + $0x1e8] sm:$0xff]
  %v100 = vld [vmem:[%s1 + $0x1f0] sm:$0xff]
  %v101 = vld [vmem:[%s1 + $0x1f8] sm:$0xff]
  %102 = vmatpush.msra.mxu0 %v53
  %103 = vmatpush.msra.mxu0 %v52
  %104 = vmatpush.msra.mxu0 %v51
  %105 = vmatpush.msra.mxu0 %v50
  %106 = vmatpush.msra.mxu0 %v49
  %107 = vmatpush.msra.mxu0 %v48
  %108 = vmatpush.msra.mxu0 %v47
  %109 = vmatpush.msra.mxu0 %v46
  %110 = vmatpush.msra.mxu0 %v45
  %111 = vmatpush.msra.mxu0 %v44
  %112 = vmatpush.msra.mxu0 %v43
  %113 = vmatpush.msra.mxu0 %v42
  %114 = vmatpush.msra.mxu0 %v41
  %115 = vmatpush.msra.mxu0 %v40
  %116 = vmatpush.msra.mxu0 %v39
  %117 = vmatpush.msra.mxu0 %v38
  %118 = vmatmul.f32.gmra.mxu0 %v26
  %v119 = vpop.f32.mrf.mxu0
  %v120 = vadd.f32 0.0, %v119
  %121 = vmatmul.f32.gmra.mxu0 %v30
  %v122 = vpop.f32.mrf.mxu0
  %v123 = vadd.f32 0.0, %v122
  %124 = vmatmul.f32.gmra.mxu0 %v34
  %v125 = vpop.f32.mrf.mxu0
  %v126 = vadd.f32 0.0, %v125
  %127 = vdwg.mxu0
  %128 = vmatpush.msra.mxu0 %v69
  %129 = vmatpush.msra.mxu0 %v68
  %130 = vmatpush.msra.mxu0 %v67
  %131 = vmatpush.msra.mxu0 %v66
  %132 = vmatpush.msra.mxu0 %v65
  %133 = vmatpush.msra.mxu0 %v64
  %134 = vmatpush.msra.mxu0 %v63
  %135 = vmatpush.msra.mxu0 %v62
  %136 = vmatpush.msra.mxu0 %v61
  %137 = vmatpush.msra.mxu0 %v60
  %138 = vmatpush.msra.mxu0 %v59
  %139 = vmatpush.msra.mxu0 %v58
  %140 = vmatpush.msra.mxu0 %v57
  %141 = vmatpush.msra.mxu0 %v56
  %142 = vmatpush.msra.mxu0 %v55
  %143 = vmatpush.msra.mxu0 %v54
  %144 = vmatmul.f32.gmra.mxu0 %v27
  %v145 = vpop.f32.mrf.mxu0
  %v146 = vadd.f32 %v120, %v145
  %147 = vmatmul.f32.gmra.mxu0 %v31
  %v148 = vpop.f32.mrf.mxu0
  %v149 = vadd.f32 %v123, %v148
  %150 = vmatmul.f32.gmra.mxu0 %v35
  %v151 = vpop.f32.mrf.mxu0
  %v152 = vadd.f32 %v126, %v151
  %153 = vdwg.mxu0
  %154 = vmatpush.msra.mxu0 %v85
  %155 = vmatpush.msra.mxu0 %v84
  %156 = vmatpush.msra.mxu0 %v83
  %157 = vmatpush.msra.mxu0 %v82
  %158 = vmatpush.msra.mxu0 %v81
  %159 = vmatpush.msra.mxu0 %v80
  %160 = vmatpush.msra.mxu0 %v79
  %161 = vmatpush.msra.mxu0 %v78
  %162 = vmatpush.msra.mxu0 %v77
  %163 = vmatpush.msra.mxu0 %v76
  %164 = vmatpush.msra.mxu0 %v75
  %165 = vmatpush.msra.mxu0 %v74
  %166 = vmatpush.msra.mxu0 %v73
  %167 = vmatpush.msra.mxu0 %v72
  %168 = vmatpush.msra.mxu0 %v71
  %169 = vmatpush.msra.mxu0 %v70
  %170 = vmatmul.f32.gmra.mxu0 %v28
  %v171 = vpop.f32.mrf.mxu0
  %v172 = vadd.f32 %v146, %v171
  %173 = vmatmul.f32.gmra.mxu0 %v32
  %v174 = vpop.f32.mrf.mxu0
  %v175 = vadd.f32 %v149, %v174
  %176 = vmatmul.f32.gmra.mxu0 %v36
  %v177 = vpop.f32.mrf.mxu0
  %v178 = vadd.f32 %v152, %v177
  %179 = vdwg.mxu0
  %180 = vmatpush.msra.mxu0 %v101
  %181 = vmatpush.msra.mxu0 %v100
  %182 = vmatpush.msra.mxu0 %v99
  %183 = vmatpush.msra.mxu0 %v98
  %184 = vmatpush.msra.mxu0 %v97
  %185 = vmatpush.msra.mxu0 %v96
  %186 = vmatpush.msra.mxu0 %v95
  %187 = vmatpush.msra.mxu0 %v94
  %188 = vmatpush.msra.mxu0 %v93
  %189 = vmatpush.msra.mxu0 %v92
  %190 = vmatpush.msra.mxu0 %v91
  %191 = vmatpush.msra.mxu0 %v90
  %192 = vmatpush.msra.mxu0 %v89
  %193 = vmatpush.msra.mxu0 %v88
  %194 = vmatpush.msra.mxu0 %v87
  %195 = vmatpush.msra.mxu0 %v86
  %196 = vmatmul.f32.gmra.mxu0 %v29
  %v197 = vpop.f32.mrf.mxu0
  %v198 = vadd.f32 %v172, %v197
  %199 = vmatmul.f32.gmra.mxu0 %v33
  %v200 = vpop.f32.mrf.mxu0
  %v201 = vadd.f32 %v175, %v200
  %202 = vmatmul.f32.gmra.mxu0 %v37
  %v203 = vpop.f32.mrf.mxu0
  %v204 = vadd.f32 %v178, %v203
  %205 = vdwg.mxu0
  %v206 = vld [vmem:[%s2] sm:$0x1]
  %v207 = vld [vmem:[%s3] sm:$0x1]
  %vm208 = vcmask 523264
  %v209 = vsel %vm208, %v198, 0.0
  %v210 = vsel %vm208, %v201, 0.0
  %v211 = vadd.f32 %v209, %v210
  %vm212 = vcmask 517120
  %v213 = vsel %vm212, %v204, 0.0
  %v214 = vadd.f32 %v211, %v213
  %v215 = vrot.slane %v214, 4
  %v216 = vadd.f32 %v214, %v215
  %v217 = vrot.slane %v216, 2
  %v218 = vadd.f32 %v216, %v217
  %v219 = vrot.slane %v218, 1
  %v220 = vadd.f32 %v218, %v219
  %v221 = vrcp.pop 18.0
  %v222 = vmul.f32 18.0, %v221
  %v223 = vsub.f32 1.0, %v222
  %v224 = vmul.f32 %v221, %v223
  %v225 = vadd.f32 %v221, %v224
  %vm226 = vweird.f32 %v221
  %v227 = vsel %vm226, %v221, %v225
  %v228 = vmul.f32 %v220, %v227
  %v229 = vsub.f32 %v198, %v228
  %v230 = vsub.f32 %v201, %v228
  %v231 = vsub.f32 %v204, %v228
  %v232 = vmul.f32 %v229, %v229
  %v233 = vmul.f32 %v230, %v230
  %v234 = vmul.f32 %v231, %v231
  %v235 = vsel %vm208, %v232, 0.0
  %v236 = vsel %vm208, %v233, 0.0
  %v237 = vadd.f32 %v235, %v236
  %v238 = vsel %vm212, %v234, 0.0
  %v239 = vadd.f32 %v237, %v238
  %v240 = vrot.slane %v239, 4
  %v241 = vadd.f32 %v239, %v240
  %v242 = vrot.slane %v241, 2
  %v243 = vadd.f32 %v241, %v242
  %v244 = vrot.slane %v243, 1
  %v245 = vadd.f32 %v243, %v244
  %v246 = vmul.f32 %v245, %v227
  %v247 = vadd.f32 %v246, 1e-05
  %v248 = vrsqrt.pop %v247
  %v249 = vmul.f32 %v248, %v247
  %v250 = vmul.f32 %v249, %v248
  %v251 = vmul.f32 0.5, %v250
  %v252 = vsub.f32 1.5, %v251
  %v253 = vmul.f32 %v248, %v252
  %vm254 = vweird.f32 %v247
  %vm255 = vweird.f32 %v248
  %vm256 = vmor %vm254, %vm255
  %v257 = vsel %vm256, %v248, %v253
  %v258 = vmul.f32 %v257, %v206
  %v259 = vperm.slane %v258, 0
  %v260 = vmul.f32 %v229, %v259
  %v261 = vmul.f32 %v230, %v259
  %v262 = vmul.f32 %v231, %v259
  %v264 = vperm.slane %v207, 0
  %v266 = vadd.f32 %v260, %v264
  %v267 = vadd.f32 %v261, %v264
  %v268 = vadd.f32 %v262, %v264
  %vm269 = vcmp.ge.f32.partialorder %v266, 0.0
  %vm270 = vcmp.ge.f32.partialorder %v267, 0.0
  %vm271 = vcmp.ge.f32.partialorder %v268, 0.0
  %v272 = vmul.f32 %v266, 0.2
  %v273 = vmul.f32 %v267, 0.2
  %v274 = vmul.f32 %v268, 0.2
  %v275 = vsel %vm269, %v266, %v272
  %v276 = vsel %vm270, %v267, %v273
  %v277 = vsel %vm271, %v268, %v274
  %v278 = vld [vmem:[%s4] sm:$0xff]
  %vm279 = vcmask 146432
  %v281 = vsel %vm279, %v278, 0
  %vm283 = vcmask 1041408
  %v285 = vsel %vm283, %v277, 0
  %287 = vmatpush.msra.mxu0 0.0
  %288 = vmatpush.msra.mxu0 0.0
  %289 = vmatpush.msra.mxu0 0.0
  %290 = vmatpush.msra.mxu0 0.0
  %291 = vmatpush.msra.mxu0 0.0
  %292 = vmatpush.msra.mxu0 0.0
  %293 = vmatpush.msra.mxu0 0.0
  %294 = vmatpush.msra.mxu0 0.0
  %295 = vmatpush.msra.mxu0 0.0
  %296 = vmatpush.msra.mxu0 0.0
  %297 = vmatpush.msra.mxu0 0.0
  %298 = vmatpush.msra.mxu0 0.0
  %299 = vmatpush.msra.mxu0 0.0
  %300 = vmatpush.msra.mxu0 %v285
  %301 = vmatpush.msra.mxu0 %v276
  %302 = vmatpush.msra.mxu0 %v275
  %303 = vmatmul.f32.gmra.mxu0 %v281
  %v304 = vpop.f32.mrf.mxu0
  %v305 = vadd.f32 0.0, %v304
  %306 = vdwg.mxu0
  %v307 = vld [vmem:[%s5] sm:$0xff]
  %v308 = vld [vmem:[%s5 + $0x8] sm:$0xff]
  %v309 = vld [vmem:[%s5 + $0x10] sm:$0xff]
  %v310 = vld [vmem:[%s5 + $0x18] sm:$0xff]
  %v311 = vld [vmem:[%s5 + $0x20] sm:$0xff]
  %v312 = vld [vmem:[%s5 + $0x28] sm:$0xff]
  %v313 = vld [vmem:[%s5 + $0x30] sm:$0xff]
  %v314 = vld [vmem:[%s5 + $0x38] sm:$0xff]
  %s315 = scalar_lea.vmem %s4, 8
  %v316 = vld [vmem:[%s315] sm:$0xff]
  %v318 = vsel %vm279, %v316, 0
  %320 = vmatpush.msra.mxu0 0.0
  %321 = vmatpush.msra.mxu0 0.0
  %322 = vmatpush.msra.mxu0 0.0
  %323 = vmatpush.msra.mxu0 0.0
  %324 = vmatpush.msra.mxu0 0.0
  %325 = vmatpush.msra.mxu0 0.0
  %326 = vmatpush.msra.mxu0 0.0
  %327 = vmatpush.msra.mxu0 0.0
  %328 = vmatpush.msra.mxu0 0.0
  %329 = vmatpush.msra.mxu0 0.0
  %330 = vmatpush.msra.mxu0 0.0
  %331 = vmatpush.msra.mxu0 0.0
  %332 = vmatpush.msra.mxu0 0.0
  %333 = vmatpush.msra.mxu0 %v285
  %334 = vmatpush.msra.mxu0 %v276
  %335 = vmatpush.msra.mxu0 %v275
  %336 = vmatmul.f32.gmra.mxu0 %v318
  %v337 = vpop.f32.mrf.mxu0
  %v338 = vadd.f32 0.0, %v337
  %339 = vdwg.mxu0
  %s340 = scalar_lea.vmem %s5, 64
  %v341 = vld [vmem:[%s340] sm:$0xff]
  %v342 = vld [vmem:[%s340 + $0x8] sm:$0xff]
  %v343 = vld [vmem:[%s340 + $0x10] sm:$0xff]
  %v344 = vld [vmem:[%s340 + $0x18] sm:$0xff]
  %v345 = vld [vmem:[%s340 + $0x20] sm:$0xff]
  %v346 = vld [vmem:[%s340 + $0x28] sm:$0xff]
  %v347 = vld [vmem:[%s340 + $0x30] sm:$0xff]
  %v348 = vld [vmem:[%s340 + $0x38] sm:$0xff]
  %v350 = vsel %vm208, %v338, 0
  %352 = vmatpush.msra.mxu0 0.0
  %353 = vmatpush.msra.mxu0 0.0
  %354 = vmatpush.msra.mxu0 0.0
  %355 = vmatpush.msra.mxu0 0.0
  %356 = vmatpush.msra.mxu0 0.0
  %357 = vmatpush.msra.mxu0 0.0
  %358 = vmatpush.msra.mxu0 0.0
  %359 = vmatpush.msra.mxu0 0.0
  %360 = vmatpush.msra.mxu0 %v348
  %361 = vmatpush.msra.mxu0 %v347
  %362 = vmatpush.msra.mxu0 %v346
  %363 = vmatpush.msra.mxu0 %v345
  %364 = vmatpush.msra.mxu0 %v344
  %365 = vmatpush.msra.mxu0 %v343
  %366 = vmatpush.msra.mxu0 %v342
  %367 = vmatpush.msra.mxu0 %v341
  %368 = vmatmul.f32.gmra.mxu0 %v350
  %v369 = vpop.f32.mrf.mxu0
  %v370 = vadd.f32 0.0, %v369
  %371 = vdwg.mxu0
  %v373 = vsel %vm208, %v305, 0
  %375 = vmatpush.msra.mxu0 0.0
  %376 = vmatpush.msra.mxu0 0.0
  %377 = vmatpush.msra.mxu0 0.0
  %378 = vmatpush.msra.mxu0 0.0
  %379 = vmatpush.msra.mxu0 0.0
  %380 = vmatpush.msra.mxu0 0.0
  %381 = vmatpush.msra.mxu0 0.0
  %382 = vmatpush.msra.mxu0 0.0
  %383 = vmatpush.msra.mxu0 %v314
  %384 = vmatpush.msra.mxu0 %v313
  %385 = vmatpush.msra.mxu0 %v312
  %386 = vmatpush.msra.mxu0 %v311
  %387 = vmatpush.msra.mxu0 %v310
  %388 = vmatpush.msra.mxu0 %v309
  %389 = vmatpush.msra.mxu0 %v308
  %390 = vmatpush.msra.mxu0 %v307
  %391 = vmatmul.f32.gmra.mxu0 %v373
  %v392 = vpop.f32.mrf.mxu0
  %v393 = vadd.f32 %v370, %v392
  %394 = vdwg.mxu0
  %s395 = scalar_lea.vmem %s4, 16
  %v396 = vld [vmem:[%s395] sm:$0xff]
  %v398 = vsel %vm279, %v396, 0
  %400 = vmatpush.msra.mxu0 0.0
  %401 = vmatpush.msra.mxu0 0.0
  %402 = vmatpush.msra.mxu0 0.0
  %403 = vmatpush.msra.mxu0 0.0
  %404 = vmatpush.msra.mxu0 0.0
  %405 = vmatpush.msra.mxu0 0.0
  %406 = vmatpush.msra.mxu0 0.0
  %407 = vmatpush.msra.mxu0 0.0
  %408 = vmatpush.msra.mxu0 0.0
  %409 = vmatpush.msra.mxu0 0.0
  %410 = vmatpush.msra.mxu0 0.0
  %411 = vmatpush.msra.mxu0 0.0
  %412 = vmatpush.msra.mxu0 0.0
  %413 = vmatpush.msra.mxu0 %v285
  %414 = vmatpush.msra.mxu0 %v276
  %415 = vmatpush.msra.mxu0 %v275
  %416 = vmatmul.f32.gmra.mxu0 %v398
  %v417 = vpop.f32.mrf.mxu0
  %v418 = vadd.f32 0.0, %v417
  %419 = vdwg.mxu0
  %s420 = scalar_lea.vmem %s5, 128
  %v421 = vld [vmem:[%s420] sm:$0xff]
  %v422 = vld [vmem:[%s420 + $0x8] sm:$0xff]
  %v423 = vld [vmem:[%s420 + $0x10] sm:$0xff]
  %v424 = vld [vmem:[%s420 + $0x18] sm:$0xff]
  %v425 = vld [vmem:[%s420 + $0x20] sm:$0xff]
  %v426 = vld [vmem:[%s420 + $0x28] sm:$0xff]
  %v427 = vld [vmem:[%s420 + $0x30] sm:$0xff]
  %v428 = vld [vmem:[%s420 + $0x38] sm:$0xff]
  %v430 = vsel %vm208, %v418, 0
  %432 = vmatpush.msra.mxu0 0.0
  %433 = vmatpush.msra.mxu0 0.0
  %434 = vmatpush.msra.mxu0 0.0
  %435 = vmatpush.msra.mxu0 0.0
  %436 = vmatpush.msra.mxu0 0.0
  %437 = vmatpush.msra.mxu0 0.0
  %438 = vmatpush.msra.mxu0 0.0
  %439 = vmatpush.msra.mxu0 0.0
  %440 = vmatpush.msra.mxu0 %v428
  %441 = vmatpush.msra.mxu0 %v427
  %442 = vmatpush.msra.mxu0 %v426
  %443 = vmatpush.msra.mxu0 %v425
  %444 = vmatpush.msra.mxu0 %v424
  %445 = vmatpush.msra.mxu0 %v423
  %446 = vmatpush.msra.mxu0 %v422
  %447 = vmatpush.msra.mxu0 %v421
  %448 = vmatmul.f32.gmra.mxu0 %v430
  %v449 = vpop.f32.mrf.mxu0
  %v450 = vadd.f32 0.0, %v449
  %451 = vdwg.mxu0
  %v452 = vadd.f32 %v393, %v450
  %s453 = scalar_lea.vmem %s4, 24
  %v454 = vld [vmem:[%s453] sm:$0xff]
  %v456 = vsel %vm279, %v454, 0
  %458 = vmatpush.msra.mxu0 0.0
  %459 = vmatpush.msra.mxu0 0.0
  %460 = vmatpush.msra.mxu0 0.0
  %461 = vmatpush.msra.mxu0 0.0
  %462 = vmatpush.msra.mxu0 0.0
  %463 = vmatpush.msra.mxu0 0.0
  %464 = vmatpush.msra.mxu0 0.0
  %465 = vmatpush.msra.mxu0 0.0
  %466 = vmatpush.msra.mxu0 0.0
  %467 = vmatpush.msra.mxu0 0.0
  %468 = vmatpush.msra.mxu0 0.0
  %469 = vmatpush.msra.mxu0 0.0
  %470 = vmatpush.msra.mxu0 0.0
  %471 = vmatpush.msra.mxu0 %v285
  %472 = vmatpush.msra.mxu0 %v276
  %473 = vmatpush.msra.mxu0 %v275
  %474 = vmatmul.f32.gmra.mxu0 %v456
  %v475 = vpop.f32.mrf.mxu0
  %v476 = vadd.f32 0.0, %v475
  %477 = vdwg.mxu0
  %s478 = scalar_lea.vmem %s5, 192
  %v479 = vld [vmem:[%s478] sm:$0xff]
  %v480 = vld [vmem:[%s478 + $0x8] sm:$0xff]
  %v481 = vld [vmem:[%s478 + $0x10] sm:$0xff]
  %v482 = vld [vmem:[%s478 + $0x18] sm:$0xff]
  %v483 = vld [vmem:[%s478 + $0x20] sm:$0xff]
  %v484 = vld [vmem:[%s478 + $0x28] sm:$0xff]
  %v485 = vld [vmem:[%s478 + $0x30] sm:$0xff]
  %v486 = vld [vmem:[%s478 + $0x38] sm:$0xff]
  %v488 = vsel %vm208, %v476, 0
  %490 = vmatpush.msra.mxu0 0.0
  %491 = vmatpush.msra.mxu0 0.0
  %492 = vmatpush.msra.mxu0 0.0
  %493 = vmatpush.msra.mxu0 0.0
  %494 = vmatpush.msra.mxu0 0.0
  %495 = vmatpush.msra.mxu0 0.0
  %496 = vmatpush.msra.mxu0 0.0
  %497 = vmatpush.msra.mxu0 0.0
  %498 = vmatpush.msra.mxu0 %v486
  %499 = vmatpush.msra.mxu0 %v485
  %500 = vmatpush.msra.mxu0 %v484
  %501 = vmatpush.msra.mxu0 %v483
  %502 = vmatpush.msra.mxu0 %v482
  %503 = vmatpush.msra.mxu0 %v481
  %504 = vmatpush.msra.mxu0 %v480
  %505 = vmatpush.msra.mxu0 %v479
  %506 = vmatmul.f32.gmra.mxu0 %v488
  %v507 = vpop.f32.mrf.mxu0
  %v508 = vadd.f32 0.0, %v507
  %509 = vdwg.mxu0
  %v510 = vadd.f32 %v452, %v508
  %s511 = scalar_lea.vmem %s4, 32
  %v512 = vld [vmem:[%s511] sm:$0xff]
  %v514 = vsel %vm279, %v512, 0
  %516 = vmatpush.msra.mxu0 0.0
  %517 = vmatpush.msra.mxu0 0.0
  %518 = vmatpush.msra.mxu0 0.0
  %519 = vmatpush.msra.mxu0 0.0
  %520 = vmatpush.msra.mxu0 0.0
  %521 = vmatpush.msra.mxu0 0.0
  %522 = vmatpush.msra.mxu0 0.0
  %523 = vmatpush.msra.mxu0 0.0
  %524 = vmatpush.msra.mxu0 0.0
  %525 = vmatpush.msra.mxu0 0.0
  %526 = vmatpush.msra.mxu0 0.0
  %527 = vmatpush.msra.mxu0 0.0
  %528 = vmatpush.msra.mxu0 0.0
  %529 = vmatpush.msra.mxu0 %v285
  %530 = vmatpush.msra.mxu0 %v276
  %531 = vmatpush.msra.mxu0 %v275
  %532 = vmatmul.f32.gmra.mxu0 %v514
  %v533 = vpop.f32.mrf.mxu0
  %v534 = vadd.f32 0.0, %v533
  %535 = vdwg.mxu0
  %s536 = scalar_lea.vmem %s5, 256
  %v537 = vld [vmem:[%s536] sm:$0xff]
  %v538 = vld [vmem:[%s536 + $0x8] sm:$0xff]
  %v539 = vld [vmem:[%s536 + $0x10] sm:$0xff]
  %v540 = vld [vmem:[%s536 + $0x18] sm:$0xff]
  %v541 = vld [vmem:[%s536 + $0x20] sm:$0xff]
  %v542 = vld [vmem:[%s536 + $0x28] sm:$0xff]
  %v543 = vld [vmem:[%s536 + $0x30] sm:$0xff]
  %v544 = vld [vmem:[%s536 + $0x38] sm:$0xff]
  %v546 = vsel %vm208, %v534, 0
  %548 = vmatpush.msra.mxu0 0.0
  %549 = vmatpush.msra.mxu0 0.0
  %550 = vmatpush.msra.mxu0 0.0
  %551 = vmatpush.msra.mxu0 0.0
  %552 = vmatpush.msra.mxu0 0.0
  %553 = vmatpush.msra.mxu0 0.0
  %554 = vmatpush.msra.mxu0 0.0
  %555 = vmatpush.msra.mxu0 0.0
  %556 = vmatpush.msra.mxu0 %v544
  %557 = vmatpush.msra.mxu0 %v543
  %558 = vmatpush.msra.mxu0 %v542
  %559 = vmatpush.msra.mxu0 %v541
  %560 = vmatpush.msra.mxu0 %v540
  %561 = vmatpush.msra.mxu0 %v539
  %562 = vmatpush.msra.mxu0 %v538
  %563 = vmatpush.msra.mxu0 %v537
  %564 = vmatmul.f32.gmra.mxu0 %v546
  %v565 = vpop.f32.mrf.mxu0
  %v566 = vadd.f32 0.0, %v565
  %567 = vdwg.mxu0
  %v568 = vadd.f32 %v510, %v566
  %s569 = scalar_lea.vmem %s4, 40
  %v570 = vld [vmem:[%s569] sm:$0xff]
  %v572 = vsel %vm279, %v570, 0
  %574 = vmatpush.msra.mxu0 0.0
  %575 = vmatpush.msra.mxu0 0.0
  %576 = vmatpush.msra.mxu0 0.0
  %577 = vmatpush.msra.mxu0 0.0
  %578 = vmatpush.msra.mxu0 0.0
  %579 = vmatpush.msra.mxu0 0.0
  %580 = vmatpush.msra.mxu0 0.0
  %581 = vmatpush.msra.mxu0 0.0
  %582 = vmatpush.msra.mxu0 0.0
  %583 = vmatpush.msra.mxu0 0.0
  %584 = vmatpush.msra.mxu0 0.0
  %585 = vmatpush.msra.mxu0 0.0
  %586 = vmatpush.msra.mxu0 0.0
  %587 = vmatpush.msra.mxu0 %v285
  %588 = vmatpush.msra.mxu0 %v276
  %589 = vmatpush.msra.mxu0 %v275
  %590 = vmatmul.f32.gmra.mxu0 %v572
  %v591 = vpop.f32.mrf.mxu0
  %v592 = vadd.f32 0.0, %v591
  %593 = vdwg.mxu0
  %s594 = scalar_lea.vmem %s5, 320
  %v595 = vld [vmem:[%s594] sm:$0xff]
  %v596 = vld [vmem:[%s594 + $0x8] sm:$0xff]
  %v597 = vld [vmem:[%s594 + $0x10] sm:$0xff]
  %v598 = vld [vmem:[%s594 + $0x18] sm:$0xff]
  %v599 = vld [vmem:[%s594 + $0x20] sm:$0xff]
  %v600 = vld [vmem:[%s594 + $0x28] sm:$0xff]
  %v601 = vld [vmem:[%s594 + $0x30] sm:$0xff]
  %v602 = vld [vmem:[%s594 + $0x38] sm:$0xff]
  %v604 = vsel %vm208, %v592, 0
  %606 = vmatpush.msra.mxu0 0.0
  %607 = vmatpush.msra.mxu0 0.0
  %608 = vmatpush.msra.mxu0 0.0
  %609 = vmatpush.msra.mxu0 0.0
  %610 = vmatpush.msra.mxu0 0.0
  %611 = vmatpush.msra.mxu0 0.0
  %612 = vmatpush.msra.mxu0 0.0
  %613 = vmatpush.msra.mxu0 0.0
  %614 = vmatpush.msra.mxu0 %v602
  %615 = vmatpush.msra.mxu0 %v601
  %616 = vmatpush.msra.mxu0 %v600
  %617 = vmatpush.msra.mxu0 %v599
  %618 = vmatpush.msra.mxu0 %v598
  %619 = vmatpush.msra.mxu0 %v597
  %620 = vmatpush.msra.mxu0 %v596
  %621 = vmatpush.msra.mxu0 %v595
  %622 = vmatmul.f32.gmra.mxu0 %v604
  %v623 = vpop.f32.mrf.mxu0
  %v624 = vadd.f32 0.0, %v623
  %625 = vdwg.mxu0
  %v626 = vadd.f32 %v568, %v624
  %s627 = scalar_lea.vmem %s4, 48
  %v628 = vld [vmem:[%s627] sm:$0xff]
  %v630 = vsel %vm279, %v628, 0
  %632 = vmatpush.msra.mxu0 0.0
  %633 = vmatpush.msra.mxu0 0.0
  %634 = vmatpush.msra.mxu0 0.0
  %635 = vmatpush.msra.mxu0 0.0
  %636 = vmatpush.msra.mxu0 0.0
  %637 = vmatpush.msra.mxu0 0.0
  %638 = vmatpush.msra.mxu0 0.0
  %639 = vmatpush.msra.mxu0 0.0
  %640 = vmatpush.msra.mxu0 0.0
  %641 = vmatpush.msra.mxu0 0.0
  %642 = vmatpush.msra.mxu0 0.0
  %643 = vmatpush.msra.mxu0 0.0
  %644 = vmatpush.msra.mxu0 0.0
  %645 = vmatpush.msra.mxu0 %v285
  %646 = vmatpush.msra.mxu0 %v276
  %647 = vmatpush.msra.mxu0 %v275
  %648 = vmatmul.f32.gmra.mxu0 %v630
  %v649 = vpop.f32.mrf.mxu0
  %v650 = vadd.f32 0.0, %v649
  %651 = vdwg.mxu0
  %s652 = scalar_lea.vmem %s5, 384
  %v653 = vld [vmem:[%s652] sm:$0xff]
  %v654 = vld [vmem:[%s652 + $0x8] sm:$0xff]
  %v655 = vld [vmem:[%s652 + $0x10] sm:$0xff]
  %v656 = vld [vmem:[%s652 + $0x18] sm:$0xff]
  %v657 = vld [vmem:[%s652 + $0x20] sm:$0xff]
  %v658 = vld [vmem:[%s652 + $0x28] sm:$0xff]
  %v659 = vld [vmem:[%s652 + $0x30] sm:$0xff]
  %v660 = vld [vmem:[%s652 + $0x38] sm:$0xff]
  %v662 = vsel %vm208, %v650, 0
  %664 = vmatpush.msra.mxu0 0.0
  %665 = vmatpush.msra.mxu0 0.0
  %666 = vmatpush.msra.mxu0 0.0
  %667 = vmatpush.msra.mxu0 0.0
  %668 = vmatpush.msra.mxu0 0.0
  %669 = vmatpush.msra.mxu0 0.0
  %670 = vmatpush.msra.mxu0 0.0
  %671 = vmatpush.msra.mxu0 0.0
  %672 = vmatpush.msra.mxu0 %v660
  %673 = vmatpush.msra.mxu0 %v659
  %674 = vmatpush.msra.mxu0 %v658
  %675 = vmatpush.msra.mxu0 %v657
  %676 = vmatpush.msra.mxu0 %v656
  %677 = vmatpush.msra.mxu0 %v655
  %678 = vmatpush.msra.mxu0 %v654
  %679 = vmatpush.msra.mxu0 %v653
  %680 = vmatmul.f32.gmra.mxu0 %v662
  %v681 = vpop.f32.mrf.mxu0
  %v682 = vadd.f32 0.0, %v681
  %683 = vdwg.mxu0
  %v684 = vadd.f32 %v626, %v682
  %s685 = scalar_lea.vmem %s4, 56
  %v686 = vld [vmem:[%s685] sm:$0xff]
  %v688 = vsel %vm279, %v686, 0
  %690 = vmatpush.msra.mxu0 0.0
  %691 = vmatpush.msra.mxu0 0.0
  %692 = vmatpush.msra.mxu0 0.0
  %693 = vmatpush.msra.mxu0 0.0
  %694 = vmatpush.msra.mxu0 0.0
  %695 = vmatpush.msra.mxu0 0.0
  %696 = vmatpush.msra.mxu0 0.0
  %697 = vmatpush.msra.mxu0 0.0
  %698 = vmatpush.msra.mxu0 0.0
  %699 = vmatpush.msra.mxu0 0.0
  %700 = vmatpush.msra.mxu0 0.0
  %701 = vmatpush.msra.mxu0 0.0
  %702 = vmatpush.msra.mxu0 0.0
  %703 = vmatpush.msra.mxu0 %v285
  %704 = vmatpush.msra.mxu0 %v276
  %705 = vmatpush.msra.mxu0 %v275
  %706 = vmatmul.f32.gmra.mxu0 %v688
  %v707 = vpop.f32.mrf.mxu0
  %v708 = vadd.f32 0.0, %v707
  %709 = vdwg.mxu0
  %s710 = scalar_lea.vmem %s5, 448
  %v711 = vld [vmem:[%s710] sm:$0xff]
  %v712 = vld [vmem:[%s710 + $0x8] sm:$0xff]
  %v713 = vld [vmem:[%s710 + $0x10] sm:$0xff]
  %v714 = vld [vmem:[%s710 + $0x18] sm:$0xff]
  %v715 = vld [vmem:[%s710 + $0x20] sm:$0xff]
  %v716 = vld [vmem:[%s710 + $0x28] sm:$0xff]
  %v717 = vld [vmem:[%s710 + $0x30] sm:$0xff]
  %v718 = vld [vmem:[%s710 + $0x38] sm:$0xff]
  %v720 = vsel %vm208, %v708, 0
  %722 = vmatpush.msra.mxu0 0.0
  %723 = vmatpush.msra.mxu0 0.0
  %724 = vmatpush.msra.mxu0 0.0
  %725 = vmatpush.msra.mxu0 0.0
  %726 = vmatpush.msra.mxu0 0.0
  %727 = vmatpush.msra.mxu0 0.0
  %728 = vmatpush.msra.mxu0 0.0
  %729 = vmatpush.msra.mxu0 0.0
  %730 = vmatpush.msra.mxu0 %v718
  %731 = vmatpush.msra.mxu0 %v717
  %732 = vmatpush.msra.mxu0 %v716
  %733 = vmatpush.msra.mxu0 %v715
  %734 = vmatpush.msra.mxu0 %v714
  %735 = vmatpush.msra.mxu0 %v713
  %736 = vmatpush.msra.mxu0 %v712
  %737 = vmatpush.msra.mxu0 %v711
  %738 = vmatmul.f32.gmra.mxu0 %v720
  %v739 = vpop.f32.mrf.mxu0
  %v740 = vadd.f32 0.0, %v739
  %741 = vdwg.mxu0
  %v742 = vadd.f32 %v684, %v740
  %s743 = scalar_lea.vmem %s4, 64
  %v744 = vld [vmem:[%s743] sm:$0xff]
  %v746 = vsel %vm279, %v744, 0
  %748 = vmatpush.msra.mxu0 0.0
  %749 = vmatpush.msra.mxu0 0.0
  %750 = vmatpush.msra.mxu0 0.0
  %751 = vmatpush.msra.mxu0 0.0
  %752 = vmatpush.msra.mxu0 0.0
  %753 = vmatpush.msra.mxu0 0.0
  %754 = vmatpush.msra.mxu0 0.0
  %755 = vmatpush.msra.mxu0 0.0
  %756 = vmatpush.msra.mxu0 0.0
  %757 = vmatpush.msra.mxu0 0.0
  %758 = vmatpush.msra.mxu0 0.0
  %759 = vmatpush.msra.mxu0 0.0
  %760 = vmatpush.msra.mxu0 0.0
  %761 = vmatpush.msra.mxu0 %v285
  %762 = vmatpush.msra.mxu0 %v276
  %763 = vmatpush.msra.mxu0 %v275
  %764 = vmatmul.f32.gmra.mxu0 %v746
  %v765 = vpop.f32.mrf.mxu0
  %v766 = vadd.f32 0.0, %v765
  %767 = vdwg.mxu0
  %s768 = scalar_lea.vmem %s5, 512
  %v769 = vld [vmem:[%s768] sm:$0xff]
  %v770 = vld [vmem:[%s768 + $0x8] sm:$0xff]
  %v771 = vld [vmem:[%s768 + $0x10] sm:$0xff]
  %v772 = vld [vmem:[%s768 + $0x18] sm:$0xff]
  %v773 = vld [vmem:[%s768 + $0x20] sm:$0xff]
  %v774 = vld [vmem:[%s768 + $0x28] sm:$0xff]
  %v775 = vld [vmem:[%s768 + $0x30] sm:$0xff]
  %v776 = vld [vmem:[%s768 + $0x38] sm:$0xff]
  %v778 = vsel %vm208, %v766, 0
  %780 = vmatpush.msra.mxu0 0.0
  %781 = vmatpush.msra.mxu0 0.0
  %782 = vmatpush.msra.mxu0 0.0
  %783 = vmatpush.msra.mxu0 0.0
  %784 = vmatpush.msra.mxu0 0.0
  %785 = vmatpush.msra.mxu0 0.0
  %786 = vmatpush.msra.mxu0 0.0
  %787 = vmatpush.msra.mxu0 0.0
  %788 = vmatpush.msra.mxu0 %v776
  %789 = vmatpush.msra.mxu0 %v775
  %790 = vmatpush.msra.mxu0 %v774
  %791 = vmatpush.msra.mxu0 %v773
  %792 = vmatpush.msra.mxu0 %v772
  %793 = vmatpush.msra.mxu0 %v771
  %794 = vmatpush.msra.mxu0 %v770
  %795 = vmatpush.msra.mxu0 %v769
  %796 = vmatmul.f32.gmra.mxu0 %v778
  %v797 = vpop.f32.mrf.mxu0
  %v798 = vadd.f32 0.0, %v797
  %799 = vdwg.mxu0
  %v800 = vadd.f32 %v742, %v798
  %s801 = scalar_lea.vmem %s4, 72
  %v802 = vld [vmem:[%s801] sm:$0xff]
  %v804 = vsel %vm279, %v802, 0
  %806 = vmatpush.msra.mxu0 0.0
  %807 = vmatpush.msra.mxu0 0.0
  %808 = vmatpush.msra.mxu0 0.0
  %809 = vmatpush.msra.mxu0 0.0
  %810 = vmatpush.msra.mxu0 0.0
  %811 = vmatpush.msra.mxu0 0.0
  %812 = vmatpush.msra.mxu0 0.0
  %813 = vmatpush.msra.mxu0 0.0
  %814 = vmatpush.msra.mxu0 0.0
  %815 = vmatpush.msra.mxu0 0.0
  %816 = vmatpush.msra.mxu0 0.0
  %817 = vmatpush.msra.mxu0 0.0
  %818 = vmatpush.msra.mxu0 0.0
  %819 = vmatpush.msra.mxu0 %v285
  %820 = vmatpush.msra.mxu0 %v276
  %821 = vmatpush.msra.mxu0 %v275
  %822 = vmatmul.f32.gmra.mxu0 %v804
  %v823 = vpop.f32.mrf.mxu0
  %v824 = vadd.f32 0.0, %v823
  %825 = vdwg.mxu0
  %s826 = scalar_lea.vmem %s5, 576
  %v827 = vld [vmem:[%s826] sm:$0xff]
  %v828 = vld [vmem:[%s826 + $0x8] sm:$0xff]
  %v829 = vld [vmem:[%s826 + $0x10] sm:$0xff]
  %v830 = vld [vmem:[%s826 + $0x18] sm:$0xff]
  %v831 = vld [vmem:[%s826 + $0x20] sm:$0xff]
  %v832 = vld [vmem:[%s826 + $0x28] sm:$0xff]
  %v833 = vld [vmem:[%s826 + $0x30] sm:$0xff]
  %v834 = vld [vmem:[%s826 + $0x38] sm:$0xff]
  %v836 = vsel %vm208, %v824, 0
  %838 = vmatpush.msra.mxu0 0.0
  %839 = vmatpush.msra.mxu0 0.0
  %840 = vmatpush.msra.mxu0 0.0
  %841 = vmatpush.msra.mxu0 0.0
  %842 = vmatpush.msra.mxu0 0.0
  %843 = vmatpush.msra.mxu0 0.0
  %844 = vmatpush.msra.mxu0 0.0
  %845 = vmatpush.msra.mxu0 0.0
  %846 = vmatpush.msra.mxu0 %v834
  %847 = vmatpush.msra.mxu0 %v833
  %848 = vmatpush.msra.mxu0 %v832
  %849 = vmatpush.msra.mxu0 %v831
  %850 = vmatpush.msra.mxu0 %v830
  %851 = vmatpush.msra.mxu0 %v829
  %852 = vmatpush.msra.mxu0 %v828
  %853 = vmatpush.msra.mxu0 %v827
  %854 = vmatmul.f32.gmra.mxu0 %v836
  %v855 = vpop.f32.mrf.mxu0
  %v856 = vadd.f32 0.0, %v855
  %857 = vdwg.mxu0
  %v858 = vadd.f32 %v800, %v856
  %s859 = scalar_lea.vmem %s4, 80
  %v860 = vld [vmem:[%s859] sm:$0xff]
  %v862 = vsel %vm279, %v860, 0
  %864 = vmatpush.msra.mxu0 0.0
  %865 = vmatpush.msra.mxu0 0.0
  %866 = vmatpush.msra.mxu0 0.0
  %867 = vmatpush.msra.mxu0 0.0
  %868 = vmatpush.msra.mxu0 0.0
  %869 = vmatpush.msra.mxu0 0.0
  %870 = vmatpush.msra.mxu0 0.0
  %871 = vmatpush.msra.mxu0 0.0
  %872 = vmatpush.msra.mxu0 0.0
  %873 = vmatpush.msra.mxu0 0.0
  %874 = vmatpush.msra.mxu0 0.0
  %875 = vmatpush.msra.mxu0 0.0
  %876 = vmatpush.msra.mxu0 0.0
  %877 = vmatpush.msra.mxu0 %v285
  %878 = vmatpush.msra.mxu0 %v276
  %879 = vmatpush.msra.mxu0 %v275
  %880 = vmatmul.f32.gmra.mxu0 %v862
  %v881 = vpop.f32.mrf.mxu0
  %v882 = vadd.f32 0.0, %v881
  %883 = vdwg.mxu0
  %s884 = scalar_lea.vmem %s5, 640
  %v885 = vld [vmem:[%s884] sm:$0xff]
  %v886 = vld [vmem:[%s884 + $0x8] sm:$0xff]
  %v887 = vld [vmem:[%s884 + $0x10] sm:$0xff]
  %v888 = vld [vmem:[%s884 + $0x18] sm:$0xff]
  %v889 = vld [vmem:[%s884 + $0x20] sm:$0xff]
  %v890 = vld [vmem:[%s884 + $0x28] sm:$0xff]
  %v891 = vld [vmem:[%s884 + $0x30] sm:$0xff]
  %v892 = vld [vmem:[%s884 + $0x38] sm:$0xff]
  %v894 = vsel %vm208, %v882, 0
  %896 = vmatpush.msra.mxu0 0.0
  %897 = vmatpush.msra.mxu0 0.0
  %898 = vmatpush.msra.mxu0 0.0
  %899 = vmatpush.msra.mxu0 0.0
  %900 = vmatpush.msra.mxu0 0.0
  %901 = vmatpush.msra.mxu0 0.0
  %902 = vmatpush.msra.mxu0 0.0
  %903 = vmatpush.msra.mxu0 0.0
  %904 = vmatpush.msra.mxu0 %v892
  %905 = vmatpush.msra.mxu0 %v891
  %906 = vmatpush.msra.mxu0 %v890
  %907 = vmatpush.msra.mxu0 %v889
  %908 = vmatpush.msra.mxu0 %v888
  %909 = vmatpush.msra.mxu0 %v887
  %910 = vmatpush.msra.mxu0 %v886
  %911 = vmatpush.msra.mxu0 %v885
  %912 = vmatmul.f32.gmra.mxu0 %v894
  %v913 = vpop.f32.mrf.mxu0
  %v914 = vadd.f32 0.0, %v913
  %915 = vdwg.mxu0
  %v916 = vadd.f32 %v858, %v914
  %s917 = scalar_lea.vmem %s4, 88
  %v918 = vld [vmem:[%s917] sm:$0xff]
  %v920 = vsel %vm279, %v918, 0
  %922 = vmatpush.msra.mxu0 0.0
  %923 = vmatpush.msra.mxu0 0.0
  %924 = vmatpush.msra.mxu0 0.0
  %925 = vmatpush.msra.mxu0 0.0
  %926 = vmatpush.msra.mxu0 0.0
  %927 = vmatpush.msra.mxu0 0.0
  %928 = vmatpush.msra.mxu0 0.0
  %929 = vmatpush.msra.mxu0 0.0
  %930 = vmatpush.msra.mxu0 0.0
  %931 = vmatpush.msra.mxu0 0.0
  %932 = vmatpush.msra.mxu0 0.0
  %933 = vmatpush.msra.mxu0 0.0
  %934 = vmatpush.msra.mxu0 0.0
  %935 = vmatpush.msra.mxu0 %v285
  %936 = vmatpush.msra.mxu0 %v276
  %937 = vmatpush.msra.mxu0 %v275
  %938 = vmatmul.f32.gmra.mxu0 %v920
  %v939 = vpop.f32.mrf.mxu0
  %v940 = vadd.f32 0.0, %v939
  %941 = vdwg.mxu0
  %s942 = scalar_lea.vmem %s5, 704
  %v943 = vld [vmem:[%s942] sm:$0xff]
  %v944 = vld [vmem:[%s942 + $0x8] sm:$0xff]
  %v945 = vld [vmem:[%s942 + $0x10] sm:$0xff]
  %v946 = vld [vmem:[%s942 + $0x18] sm:$0xff]
  %v947 = vld [vmem:[%s942 + $0x20] sm:$0xff]
  %v948 = vld [vmem:[%s942 + $0x28] sm:$0xff]
  %v949 = vld [vmem:[%s942 + $0x30] sm:$0xff]
  %v950 = vld [vmem:[%s942 + $0x38] sm:$0xff]
  %v952 = vsel %vm208, %v940, 0
  %954 = vmatpush.msra.mxu0 0.0
  %955 = vmatpush.msra.mxu0 0.0
  %956 = vmatpush.msra.mxu0 0.0
  %957 = vmatpush.msra.mxu0 0.0
  %958 = vmatpush.msra.mxu0 0.0
  %959 = vmatpush.msra.mxu0 0.0
  %960 = vmatpush.msra.mxu0 0.0
  %961 = vmatpush.msra.mxu0 0.0
  %962 = vmatpush.msra.mxu0 %v950
  %963 = vmatpush.msra.mxu0 %v949
  %964 = vmatpush.msra.mxu0 %v948
  %965 = vmatpush.msra.mxu0 %v947
  %966 = vmatpush.msra.mxu0 %v946
  %967 = vmatpush.msra.mxu0 %v945
  %968 = vmatpush.msra.mxu0 %v944
  %969 = vmatpush.msra.mxu0 %v943
  %970 = vmatmul.f32.gmra.mxu0 %v952
  %v971 = vpop.f32.mrf.mxu0
  %v972 = vadd.f32 0.0, %v971
  %973 = vdwg.mxu0
  %v974 = vadd.f32 %v916, %v972
  %s975 = scalar_lea.vmem %s4, 96
  %v976 = vld [vmem:[%s975] sm:$0xff]
  %v978 = vsel %vm279, %v976, 0
  %980 = vmatpush.msra.mxu0 0.0
  %981 = vmatpush.msra.mxu0 0.0
  %982 = vmatpush.msra.mxu0 0.0
  %983 = vmatpush.msra.mxu0 0.0
  %984 = vmatpush.msra.mxu0 0.0
  %985 = vmatpush.msra.mxu0 0.0
  %986 = vmatpush.msra.mxu0 0.0
  %987 = vmatpush.msra.mxu0 0.0
  %988 = vmatpush.msra.mxu0 0.0
  %989 = vmatpush.msra.mxu0 0.0
  %990 = vmatpush.msra.mxu0 0.0
  %991 = vmatpush.msra.mxu0 0.0
  %992 = vmatpush.msra.mxu0 0.0
  %993 = vmatpush.msra.mxu0 %v285
  %994 = vmatpush.msra.mxu0 %v276
  %995 = vmatpush.msra.mxu0 %v275
  %996 = vmatmul.f32.gmra.mxu0 %v978
  %v997 = vpop.f32.mrf.mxu0
  %v998 = vadd.f32 0.0, %v997
  %999 = vdwg.mxu0
  %s1000 = scalar_lea.vmem %s5, 768
  %v1001 = vld [vmem:[%s1000] sm:$0xff]
  %v1002 = vld [vmem:[%s1000 + $0x8] sm:$0xff]
  %v1003 = vld [vmem:[%s1000 + $0x10] sm:$0xff]
  %v1004 = vld [vmem:[%s1000 + $0x18] sm:$0xff]
  %v1005 = vld [vmem:[%s1000 + $0x20] sm:$0xff]
  %v1006 = vld [vmem:[%s1000 + $0x28] sm:$0xff]
  %v1007 = vld [vmem:[%s1000 + $0x30] sm:$0xff]
  %v1008 = vld [vmem:[%s1000 + $0x38] sm:$0xff]
  %v1010 = vsel %vm208, %v998, 0
  %1012 = vmatpush.msra.mxu0 0.0
  %1013 = vmatpush.msra.mxu0 0.0
  %1014 = vmatpush.msra.mxu0 0.0
  %1015 = vmatpush.msra.mxu0 0.0
  %1016 = vmatpush.msra.mxu0 0.0
  %1017 = vmatpush.msra.mxu0 0.0
  %1018 = vmatpush.msra.mxu0 0.0
  %1019 = vmatpush.msra.mxu0 0.0
  %1020 = vmatpush.msra.mxu0 %v1008
  %1021 = vmatpush.msra.mxu0 %v1007
  %1022 = vmatpush.msra.mxu0 %v1006
  %1023 = vmatpush.msra.mxu0 %v1005
  %1024 = vmatpush.msra.mxu0 %v1004
  %1025 = vmatpush.msra.mxu0 %v1003
  %1026 = vmatpush.msra.mxu0 %v1002
  %1027 = vmatpush.msra.mxu0 %v1001
  %1028 = vmatmul.f32.gmra.mxu0 %v1010
  %v1029 = vpop.f32.mrf.mxu0
  %v1030 = vadd.f32 0.0, %v1029
  %1031 = vdwg.mxu0
  %v1032 = vadd.f32 %v974, %v1030
  %s1033 = scalar_lea.vmem %s4, 104
  %v1034 = vld [vmem:[%s1033] sm:$0xff]
  %v1036 = vsel %vm279, %v1034, 0
  %1038 = vmatpush.msra.mxu0 0.0
  %1039 = vmatpush.msra.mxu0 0.0
  %1040 = vmatpush.msra.mxu0 0.0
  %1041 = vmatpush.msra.mxu0 0.0
  %1042 = vmatpush.msra.mxu0 0.0
  %1043 = vmatpush.msra.mxu0 0.0
  %1044 = vmatpush.msra.mxu0 0.0
  %1045 = vmatpush.msra.mxu0 0.0
  %1046 = vmatpush.msra.mxu0 0.0
  %1047 = vmatpush.msra.mxu0 0.0
  %1048 = vmatpush.msra.mxu0 0.0
  %1049 = vmatpush.msra.mxu0 0.0
  %1050 = vmatpush.msra.mxu0 0.0
  %1051 = vmatpush.msra.mxu0 %v285
  %1052 = vmatpush.msra.mxu0 %v276
  %1053 = vmatpush.msra.mxu0 %v275
  %1054 = vmatmul.f32.gmra.mxu0 %v1036
  %v1055 = vpop.f32.mrf.mxu0
  %v1056 = vadd.f32 0.0, %v1055
  %1057 = vdwg.mxu0
  %s1058 = scalar_lea.vmem %s5, 832
  %v1059 = vld [vmem:[%s1058] sm:$0xff]
  %v1060 = vld [vmem:[%s1058 + $0x8] sm:$0xff]
  %v1061 = vld [vmem:[%s1058 + $0x10] sm:$0xff]
  %v1062 = vld [vmem:[%s1058 + $0x18] sm:$0xff]
  %v1063 = vld [vmem:[%s1058 + $0x20] sm:$0xff]
  %v1064 = vld [vmem:[%s1058 + $0x28] sm:$0xff]
  %v1065 = vld [vmem:[%s1058 + $0x30] sm:$0xff]
  %v1066 = vld [vmem:[%s1058 + $0x38] sm:$0xff]
  %v1068 = vsel %vm208, %v1056, 0
  %1070 = vmatpush.msra.mxu0 0.0
  %1071 = vmatpush.msra.mxu0 0.0
  %1072 = vmatpush.msra.mxu0 0.0
  %1073 = vmatpush.msra.mxu0 0.0
  %1074 = vmatpush.msra.mxu0 0.0
  %1075 = vmatpush.msra.mxu0 0.0
  %1076 = vmatpush.msra.mxu0 0.0
  %1077 = vmatpush.msra.mxu0 0.0
  %1078 = vmatpush.msra.mxu0 %v1066
  %1079 = vmatpush.msra.mxu0 %v1065
  %1080 = vmatpush.msra.mxu0 %v1064
  %1081 = vmatpush.msra.mxu0 %v1063
  %1082 = vmatpush.msra.mxu0 %v1062
  %1083 = vmatpush.msra.mxu0 %v1061
  %1084 = vmatpush.msra.mxu0 %v1060
  %1085 = vmatpush.msra.mxu0 %v1059
  %1086 = vmatmul.f32.gmra.mxu0 %v1068
  %v1087 = vpop.f32.mrf.mxu0
  %v1088 = vadd.f32 0.0, %v1087
  %1089 = vdwg.mxu0
  %v1090 = vadd.f32 %v1032, %v1088
  %s1091 = scalar_lea.vmem %s4, 112
  %v1092 = vld [vmem:[%s1091] sm:$0xff]
  %v1094 = vsel %vm279, %v1092, 0
  %1096 = vmatpush.msra.mxu0 0.0
  %1097 = vmatpush.msra.mxu0 0.0
  %1098 = vmatpush.msra.mxu0 0.0
  %1099 = vmatpush.msra.mxu0 0.0
  %1100 = vmatpush.msra.mxu0 0.0
  %1101 = vmatpush.msra.mxu0 0.0
  %1102 = vmatpush.msra.mxu0 0.0
  %1103 = vmatpush.msra.mxu0 0.0
  %1104 = vmatpush.msra.mxu0 0.0
  %1105 = vmatpush.msra.mxu0 0.0
  %1106 = vmatpush.msra.mxu0 0.0
  %1107 = vmatpush.msra.mxu0 0.0
  %1108 = vmatpush.msra.mxu0 0.0
  %1109 = vmatpush.msra.mxu0 %v285
  %1110 = vmatpush.msra.mxu0 %v276
  %1111 = vmatpush.msra.mxu0 %v275
  %1112 = vmatmul.f32.gmra.mxu0 %v1094
  %v1113 = vpop.f32.mrf.mxu0
  %v1114 = vadd.f32 0.0, %v1113
  %1115 = vdwg.mxu0
  %s1116 = scalar_lea.vmem %s5, 896
  %v1117 = vld [vmem:[%s1116] sm:$0xff]
  %v1118 = vld [vmem:[%s1116 + $0x8] sm:$0xff]
  %v1119 = vld [vmem:[%s1116 + $0x10] sm:$0xff]
  %v1120 = vld [vmem:[%s1116 + $0x18] sm:$0xff]
  %v1121 = vld [vmem:[%s1116 + $0x20] sm:$0xff]
  %v1122 = vld [vmem:[%s1116 + $0x28] sm:$0xff]
  %v1123 = vld [vmem:[%s1116 + $0x30] sm:$0xff]
  %v1124 = vld [vmem:[%s1116 + $0x38] sm:$0xff]
  %v1126 = vsel %vm208, %v1114, 0
  %1128 = vmatpush.msra.mxu0 0.0
  %1129 = vmatpush.msra.mxu0 0.0
  %1130 = vmatpush.msra.mxu0 0.0
  %1131 = vmatpush.msra.mxu0 0.0
  %1132 = vmatpush.msra.mxu0 0.0
  %1133 = vmatpush.msra.mxu0 0.0
  %1134 = vmatpush.msra.mxu0 0.0
  %1135 = vmatpush.msra.mxu0 0.0
  %1136 = vmatpush.msra.mxu0 %v1124
  %1137 = vmatpush.msra.mxu0 %v1123
  %1138 = vmatpush.msra.mxu0 %v1122
  %1139 = vmatpush.msra.mxu0 %v1121
  %1140 = vmatpush.msra.mxu0 %v1120
  %1141 = vmatpush.msra.mxu0 %v1119
  %1142 = vmatpush.msra.mxu0 %v1118
  %1143 = vmatpush.msra.mxu0 %v1117
  %1144 = vmatmul.f32.gmra.mxu0 %v1126
  %v1145 = vpop.f32.mrf.mxu0
  %v1146 = vadd.f32 0.0, %v1145
  %1147 = vdwg.mxu0
  %v1148 = vadd.f32 %v1090, %v1146
  %s1149 = scalar_lea.vmem %s4, 120
  %v1150 = vld [vmem:[%s1149] sm:$0xff]
  %v1152 = vsel %vm279, %v1150, 0
  %1154 = vmatpush.msra.mxu0 0.0
  %1155 = vmatpush.msra.mxu0 0.0
  %1156 = vmatpush.msra.mxu0 0.0
  %1157 = vmatpush.msra.mxu0 0.0
  %1158 = vmatpush.msra.mxu0 0.0
  %1159 = vmatpush.msra.mxu0 0.0
  %1160 = vmatpush.msra.mxu0 0.0
  %1161 = vmatpush.msra.mxu0 0.0
  %1162 = vmatpush.msra.mxu0 0.0
  %1163 = vmatpush.msra.mxu0 0.0
  %1164 = vmatpush.msra.mxu0 0.0
  %1165 = vmatpush.msra.mxu0 0.0
  %1166 = vmatpush.msra.mxu0 0.0
  %1167 = vmatpush.msra.mxu0 %v285
  %1168 = vmatpush.msra.mxu0 %v276
  %1169 = vmatpush.msra.mxu0 %v275
  %1170 = vmatmul.f32.gmra.mxu0 %v1152
  %v1171 = vpop.f32.mrf.mxu0
  %v1172 = vadd.f32 0.0, %v1171
  %1173 = vdwg.mxu0
  %s1174 = scalar_lea.vmem %s5, 960
  %v1175 = vld [vmem:[%s1174] sm:$0xff]
  %v1176 = vld [vmem:[%s1174 + $0x8] sm:$0xff]
  %v1177 = vld [vmem:[%s1174 + $0x10] sm:$0xff]
  %v1178 = vld [vmem:[%s1174 + $0x18] sm:$0xff]
  %v1179 = vld [vmem:[%s1174 + $0x20] sm:$0xff]
  %v1180 = vld [vmem:[%s1174 + $0x28] sm:$0xff]
  %v1181 = vld [vmem:[%s1174 + $0x30] sm:$0xff]
  %v1182 = vld [vmem:[%s1174 + $0x38] sm:$0xff]
  %v1184 = vsel %vm208, %v1172, 0
  %1186 = vmatpush.msra.mxu0 0.0
  %1187 = vmatpush.msra.mxu0 0.0
  %1188 = vmatpush.msra.mxu0 0.0
  %1189 = vmatpush.msra.mxu0 0.0
  %1190 = vmatpush.msra.mxu0 0.0
  %1191 = vmatpush.msra.mxu0 0.0
  %1192 = vmatpush.msra.mxu0 0.0
  %1193 = vmatpush.msra.mxu0 0.0
  %1194 = vmatpush.msra.mxu0 %v1182
  %1195 = vmatpush.msra.mxu0 %v1181
  %1196 = vmatpush.msra.mxu0 %v1180
  %1197 = vmatpush.msra.mxu0 %v1179
  %1198 = vmatpush.msra.mxu0 %v1178
  %1199 = vmatpush.msra.mxu0 %v1177
  %1200 = vmatpush.msra.mxu0 %v1176
  %1201 = vmatpush.msra.mxu0 %v1175
  %1202 = vmatmul.f32.gmra.mxu0 %v1184
  %v1203 = vpop.f32.mrf.mxu0
  %v1204 = vadd.f32 0.0, %v1203
  %1205 = vdwg.mxu0
  %v1206 = vadd.f32 %v1148, %v1204
  %v1207 = vld [vmem:[%s6] sm:$0x1]
  %v1209 = vperm.slane %v1207, 0
  %v1211 = vadd.f32 %v1206, %v1209
  %v1212 = vtanh.pop %v1211
  %vm1213 = vcmask 64512
  %1214 = vst.msk [vmem:[%s7] sm:$0xff] %vm1213, %v1212
  // Predicated region
  $region30: #{nlayer_discriminator.11} parent=0 // pred_check
    _
  $region31: #{nlayer_discriminator.11} parent=0 // pred_check_branch
    %1216 = sbr.rel (0) target = $region33
  $region32: #{nlayer_discriminator.11} parent=0 // pred_region
    _
  $region33: #{nlayer_discriminator.11} parent=0 // pred_fallthru
    _
  // Predicated region
  $region34: #{nlayer_discriminator.11} parent=0 // pred_check
    _
  $region35: #{nlayer_discriminator.11} parent=0 // pred_check_branch
    %1218 = sbr.rel (0) target = $region37
  $region36: #{nlayer_discriminator.11} parent=0 // pred_region
    _
  $region37: #{nlayer_discriminator.11} parent=0 // pred_fallthru
    _

</llo_original>
